<compile_context>
chip_gen: v7x
topology: tpu7x:2x2x1
jax: 0.10.0
libtpu: 0.0.40
codegen_flags: <defaults>
</compile_context>

<pallas_src>
import jax
import jax.numpy as jnp
from jax import lax
from jax.experimental import pallas as pl
from jax.experimental.pallas import tpu as pltpu

_EPS = 1e-5
_LANES = 128
_VMEM_LIMIT = 32 * 1024 * 1024


def _round_up(x, m):
    return ((x + m - 1) // m) * m


# ----------------------------------------------------------------------------
# Kernel 1: per-channel sum / sum-of-squares of the original input (one pass)
# ----------------------------------------------------------------------------
def _make_stats_kernel(H, W, C):
    HW = H * W

    def kernel(x_ref, sum_ref, sumsq_ref):
        n = pl.program_id(0)

        @pl.when(n == 0)
        def _():
            sum_ref[...] = jnp.zeros_like(sum_ref)
            sumsq_ref[...] = jnp.zeros_like(sumsq_ref)

        x = x_ref[0].reshape(HW, C)
        sum_ref[...] += jnp.sum(x, axis=0, keepdims=True)
        sumsq_ref[...] += jnp.sum(x * x, axis=0, keepdims=True)

    return kernel


def channel_sums(x):
    """x: (N, H, W, C) with C a multiple of 128 -> per-channel (sum, sumsq)."""
    N, H, W, C = x.shape
    s, ss = pl.pallas_call(
        _make_stats_kernel(H, W, C),
        grid=(N,),
        in_specs=[pl.BlockSpec((1, H, W, C), lambda n: (n, 0, 0, 0))],
        out_specs=(pl.BlockSpec((1, C), lambda n: (0, 0)),
                   pl.BlockSpec((1, C), lambda n: (0, 0))),
        out_shape=(jax.ShapeDtypeStruct((1, C), jnp.float32),
                   jax.ShapeDtypeStruct((1, C), jnp.float32)),
        compiler_params=pltpu.CompilerParams(
            dimension_semantics=("arbitrary",),
            vmem_limit_bytes=_VMEM_LIMIT),
    )(x)
    return s[0], ss[0]


# ----------------------------------------------------------------------------
# Kernel 2: fused BatchNorm + ReLU + 3x3 conv (9 shifted MXU matmuls),
#           writing the new part in place into the slab and emitting its
#           per-image channel sums for the next block's BN statistics.
# ----------------------------------------------------------------------------
def _make_conv_kernel(H, W, CPAD):
    HW = H * W

    def kernel(x_ref, scale_ref, shift_ref, w_ref, bias_ref,
               slab_ref, ysum_ref, ysumsq_ref, apad_ref, acc_ref):
        p = pl.program_id(1)
        last = pl.num_programs(1) - 1

        # Initialize the f32 accumulator with the conv bias at the first part.
        @pl.when(p == 0)
        def _():
            acc_ref[...] = jnp.broadcast_to(bias_ref[...], (HW, CPAD))

        # Fused BatchNorm (precomputed per-channel scale/shift) + ReLU (f32, VPU).
        a = jnp.maximum(x_ref[0] * scale_ref[0] + shift_ref[0], 0.0)  # (H, W, CPAD)

        # Zero-padded activation tile in VMEM (implements Conv2d padding=1).
        apad_ref[...] = jnp.zeros((H + 2, W + 2, CPAD), jnp.float32)
        apad_ref[1:H + 1, 1:W + 1, :] = a

        # 3x3 conv as 9 shifted matmuls on the MXU (bf16 in, f32 accumulate).
        acc = acc_ref[...]
        for t in range(9):
            dh, dw = t // 3, t % 3
            a_tap = apad_ref[dh:dh + H, dw:dw + W, :].reshape(HW, CPAD)
            acc = acc + jnp.dot(a_tap.astype(jnp.bfloat16), w_ref[0, t],
                                preferred_element_type=jnp.float32)
        acc_ref[...] = acc

        # After the last input part: write this image's conv output into its
        # slab slot and emit fused batch statistics for the next conv_block.
        @pl.when(p == last)
        def _():
            slab_ref[0] = acc.reshape(H, W, CPAD)
            ysum_ref[0] = jnp.sum(acc, axis=0, keepdims=True)
            ysumsq_ref[0] = jnp.sum(acc * acc, axis=0, keepdims=True)

    return kernel


def conv_block_call(slab, scales, shifts, wparts, bias_pad, *, N, H, W, CPAD,
                    out_part):
    """One conv_block: reads parts 0..n_parts-1 of the slab, writes part out_part."""
    n_parts = scales.shape[0]
    return pl.pallas_call(
        _make_conv_kernel(H, W, CPAD),
        grid=(N, n_parts),
        in_specs=[
            pl.BlockSpec((1, H, W, CPAD), lambda n, p: (p * N + n, 0, 0, 0)),
            pl.BlockSpec((1, 1, CPAD), lambda n, p: (p, 0, 0)),
            pl.BlockSpec((1, 1, CPAD), lambda n, p: (p, 0, 0)),
            pl.BlockSpec((1, 9, CPAD, CPAD), lambda n, p: (p, 0, 0, 0)),
            pl.BlockSpec((1, CPAD), lambda n, p: (0, 0)),
        ],
        out_specs=(
            pl.BlockSpec((1, H, W, CPAD),
                         lambda n, p: (out_part * N + n, 0, 0, 0)),
            pl.BlockSpec((1, 1, CPAD), lambda n, p: (n, 0, 0)),
            pl.BlockSpec((1, 1, CPAD), lambda n, p: (n, 0, 0)),
        ),
        out_shape=(
            jax.ShapeDtypeStruct(slab.shape, slab.dtype),
            jax.ShapeDtypeStruct((N, 1, CPAD), jnp.float32),
            jax.ShapeDtypeStruct((N, 1, CPAD), jnp.float32),
        ),
        scratch_shapes=[
            pltpu.VMEM((H + 2, W + 2, CPAD), jnp.float32),
            pltpu.VMEM((H * W, CPAD), jnp.float32),
        ],
        input_output_aliases={0: 0},   # write the new part into the slab in place
        compiler_params=pltpu.CompilerParams(
            dimension_semantics=("parallel", "arbitrary"),
            vmem_limit_bytes=_VMEM_LIMIT),
    )(slab, scales, shifts, wparts, bias_pad)


# ----------------------------------------------------------------------------
# DenseBlock forward (wrapper glue: layout, per-channel scale/shift, weights)
# ----------------------------------------------------------------------------
@jax.jit
def dense_block_forward(x_nchw, params_list):
    N, C0, H, W = x_nchw.shape
    L = len(params_list)
    cout = params_list[0][2].shape[0]               # growth rate (num_channels)
    CPAD = _round_up(max(C0, cout), _LANES)         # lane-padded per-part width
    count = N * H * W

    x_nhwc = jnp.transpose(x_nchw, (0, 2, 3, 1)).astype(jnp.float32)
    x0 = jnp.pad(x_nhwc, ((0, 0), (0, 0), (0, 0), (0, CPAD - C0)))

    # Pre-allocated feature slab: rows [p*N, (p+1)*N) hold part p.
    slab = jnp.zeros(((L + 1) * N, H, W, CPAD), jnp.float32).at[0:N].set(x0)

    # Per-part batch statistics (each part is reduced exactly once).
    s0, ss0 = channel_sums(x0)
    part_sums, part_sumsqs, part_real = [s0], [ss0], [C0]

    for i, (gamma, beta, w_oihw, bias) in enumerate(params_list):
        n_parts = i + 1
        cin = C0 + i * cout

        # Per-part BN scale/shift (training-mode batch stats, biased variance).
        scales, shifts, off = [], [], 0
        for p in range(n_parts):
            cr = part_real[p]
            mean = part_sums[p][:cr] / count
            var = part_sumsqs[p][:cr] / count - mean * mean
            sc = gamma[off:off + cr] / jnp.sqrt(var + _EPS)
            sh = beta[off:off + cr] - mean * sc
            scales.append(jnp.pad(sc, (0, CPAD - cr)))
            shifts.append(jnp.pad(sh, (0, CPAD - cr)))
            off += cr
        scales = jnp.stack(scales)[:, None, :]       # (n_parts, 1, CPAD)
        shifts = jnp.stack(shifts)[:, None, :]

        # Conv weight (Cout, Cin, 3, 3) -> per part, per tap (CPAD, CPAD) bf16.
        w_taps = jnp.transpose(w_oihw, (2, 3, 1, 0)).reshape(9, cin, cout)
        wparts, off = [], 0
        for p in range(n_parts):
            cr = part_real[p]
            wp = w_taps[:, off:off + cr, :]
            wparts.append(jnp.pad(wp, ((0, 0), (0, CPAD - cr), (0, CPAD - cout))))
            off += cr
        wparts = jnp.stack(wparts).astype(jnp.bfloat16)   # (n_parts, 9, CPAD, CPAD)
        bias_pad = jnp.pad(bias, (0, CPAD - cout))[None, :].astype(jnp.float32)

        slab, ysum, ysumsq = conv_block_call(
            slab, scales, shifts, wparts, bias_pad,
            N=N, H=H, W=W, CPAD=CPAD, out_part=i + 1)

        part_sums.append(jnp.sum(ysum, axis=(0, 1)))
        part_sumsqs.append(jnp.sum(ysumsq, axis=(0, 1)))
        part_real.append(cout)

    # Gather the real channels back into PyTorch's concat order / NCHW layout.
    pieces = [slab[0:N, ..., :C0]] + [
        slab[(p + 1) * N:(p + 2) * N, ..., :cout] for p in range(L)]
    out_nhwc = jnp.concatenate(pieces, axis=-1)
    return jnp.transpose(out_nhwc, (0, 3, 1, 2))


# ----------------------------------------------------------------------------
# Deterministic parameter init (shapes match nn.BatchNorm2d / nn.Conv2d)
# ----------------------------------------------------------------------------
def init_dense_block_params(key, num_convs, input_channels, num_channels):
    params = []
    for i in range(num_convs):
        cin = input_channels + i * num_channels
        key, kw, kb = jax.random.split(key, 3)
        gamma = jnp.ones((cin,), jnp.float32)            # BN weight default
        beta = jnp.zeros((cin,), jnp.float32)            # BN bias default
        w = 0.1 * jax.random.normal(kw, (num_channels, cin, 3, 3), jnp.float32)
        b = 0.1 * jax.random.normal(kb, (num_channels,), jnp.float32)
        params.append((gamma, beta, w, b))
    return params


# ----------------------------------------------------------------------------
# Pure-JAX reference (for correctness check)
# ----------------------------------------------------------------------------
def conv_block_ref(x_nhwc, params):
    gamma, beta, w_oihw, bias = params
    mean = jnp.mean(x_nhwc, axis=(0, 1, 2))
    var = jnp.mean((x_nhwc - mean) ** 2, axis=(0, 1, 2))
    a = jnp.maximum((x_nhwc - mean) / jnp.sqrt(var + _EPS) * gamma + beta, 0.0)
    w_hwio = jnp.transpose(w_oihw, (2, 3, 1, 0))
    y = lax.conv_general_dilated(
        a, w_hwio, window_strides=(1, 1), padding=((1, 1), (1, 1)),
        dimension_numbers=("NHWC", "HWIO", "NHWC"),
        precision=lax.Precision.HIGHEST,
    )
    return y + bias


def dense_block_ref(x_nchw, params_list):
    x = jnp.transpose(x_nchw, (0, 2, 3, 1))
    for params in params_list:
        y = conv_block_ref(x, params)
        x = jnp.concatenate([x, y], axis=-1)
    return jnp.transpose(x, (0, 3, 1, 2))


if __name__ == "__main__":
    key = jax.random.PRNGKey(0)
    key, kx, kp = jax.random.split(key, 3)

    # Shapes from the module: DenseBlock(2, 3, 10) on X of shape (4, 3, 8, 8)
    # -> output (4, 3 + 2*10, 8, 8) = (4, 23, 8, 8).
    num_convs, input_channels, num_channels = 2, 3, 10
    x = jax.random.normal(kx, (4, input_channels, 8, 8), jnp.float32)
    params_list = init_dense_block_params(kp, num_convs, input_channels,
                                          num_channels)

    out = jax.block_until_ready(dense_block_forward(x, params_list))
    assert out.shape == (4, input_channels + num_convs * num_channels, 8, 8), out.shape

    ref = jax.block_until_ready(dense_block_ref(x, params_list))
    max_err = float(jnp.max(jnp.abs(out - ref)))
    # bf16 MXU operands with f32 accumulation vs. Precision.HIGHEST reference.
    assert max_err < 5e-2, f"max abs err {max_err}"

    print("KERNEL_OK")
</pallas_src>

<mosaic_0001>
module attributes {stable_mosaic.version = 11 : i64} {
  func.func @kernel(%arg0: i32, %arg1: memref<1x8x8x128xf32, #tpu.memory_space<vmem>>, %arg2: memref<1x128xf32, #tpu.memory_space<vmem>>, %arg3: memref<1x128xf32, #tpu.memory_space<vmem>>) attributes {dimension_semantics = [#tpu.dimension_semantics<arbitrary>], iteration_bounds = array<i64: 4>, scalar_prefetch = 0 : i64, scratch_operands = 0 : i64, tpu.core_type = #tpu.core_type<tc>, window_params = [{transform_indices = @transform_0, window_bounds = array<i64: 1, 8, 8, 128>}, {pipeline_mode = #tpu.pipeline_mode<synchronous>, transform_indices = @transform_1, window_bounds = array<i64: 1, 128>}, {pipeline_mode = #tpu.pipeline_mode<synchronous>, transform_indices = @transform_2, window_bounds = array<i64: 1, 128>}]} {
    %c0_i32 = arith.constant 0 : i32
    %0 = arith.cmpi eq, %arg0, %c0_i32 : i32
    %1 = arith.extui %0 : i1 to i32
    %c0_i32_0 = arith.constant 0 : i32
    %2 = arith.cmpi ne, %1, %c0_i32_0 : i32
    scf.if %2 {
      %cst_13 = arith.constant 0.000000e+00 : f32
      %17 = vector.broadcast %cst_13 : f32 to vector<1x128xf32>
      %c0_14 = arith.constant 0 : index
      %c0_15 = arith.constant 0 : index
      %18 = vector.load %arg2[%c0_14, %c0_15] : memref<1x128xf32, #tpu.memory_space<vmem>>, vector<1x128xf32>
      tpu.vector_store %arg2[%c0_14, %c0_15], %17 {strides = array<i32>} : memref<1x128xf32, #tpu.memory_space<vmem>>, vector<1x128xf32>,
      %cst_16 = arith.constant 0.000000e+00 : f32
      %19 = vector.broadcast %cst_16 : f32 to vector<1x128xf32>
      %c0_17 = arith.constant 0 : index
      %c0_18 = arith.constant 0 : index
      %20 = vector.load %arg3[%c0_17, %c0_18] : memref<1x128xf32, #tpu.memory_space<vmem>>, vector<1x128xf32>
      tpu.vector_store %arg3[%c0_17, %c0_18], %19 {strides = array<i32>} : memref<1x128xf32, #tpu.memory_space<vmem>>, vector<1x128xf32>,
    } else {
    }
    %c0 = arith.constant 0 : index
    %c0_1 = arith.constant 0 : index
    %c0_2 = arith.constant 0 : index
    %c0_3 = arith.constant 0 : index
    %3 = vector.load %arg1[%c0, %c0_1, %c0_2, %c0_3] : memref<1x8x8x128xf32, #tpu.memory_space<vmem>>, vector<1x8x8x128xf32>
    %4 = vector.shape_cast %3 : vector<1x8x8x128xf32> to vector<8x8x128xf32>
    %5 = vector.shape_cast %4 : vector<8x8x128xf32> to vector<64x128xf32>
    %c0_4 = arith.constant 0 : index
    %c0_5 = arith.constant 0 : index
    %6 = vector.load %arg2[%c0_4, %c0_5] : memref<1x128xf32, #tpu.memory_space<vmem>>, vector<1x128xf32>
    %cst = arith.constant dense<0.000000e+00> : vector<128xf32>
    %7 = vector.multi_reduction <add>, %5, %cst [0] : vector<64x128xf32> to vector<128xf32>
    %8 = vector.shape_cast %7 : vector<128xf32> to vector<1x128xf32>
    %9 = arith.addf %6, %8 : vector<1x128xf32>
    %c0_6 = arith.constant 0 : index
    %c0_7 = arith.constant 0 : index
    %10 = vector.load %arg2[%c0_6, %c0_7] : memref<1x128xf32, #tpu.memory_space<vmem>>, vector<1x128xf32>
    tpu.vector_store %arg2[%c0_6, %c0_7], %9 {strides = array<i32>} : memref<1x128xf32, #tpu.memory_space<vmem>>, vector<1x128xf32>,
    %c0_8 = arith.constant 0 : index
    %c0_9 = arith.constant 0 : index
    %11 = vector.load %arg3[%c0_8, %c0_9] : memref<1x128xf32, #tpu.memory_space<vmem>>, vector<1x128xf32>
    %12 = arith.mulf %5, %5 : vector<64x128xf32>
    %cst_10 = arith.constant dense<0.000000e+00> : vector<128xf32>
    %13 = vector.multi_reduction <add>, %12, %cst_10 [0] : vector<64x128xf32> to vector<128xf32>
    %14 = vector.shape_cast %13 : vector<128xf32> to vector<1x128xf32>
    %15 = arith.addf %11, %14 : vector<1x128xf32>
    %c0_11 = arith.constant 0 : index
    %c0_12 = arith.constant 0 : index
    %16 = vector.load %arg3[%c0_11, %c0_12] : memref<1x128xf32, #tpu.memory_space<vmem>>, vector<1x128xf32>
    tpu.vector_store %arg3[%c0_11, %c0_12], %15 {strides = array<i32>} : memref<1x128xf32, #tpu.memory_space<vmem>>, vector<1x128xf32>,
    return
  }
  func.func @transform_0(%arg0: i32) -> (i32, i32, i32, i32) {
    %c0_i32 = arith.constant 0 : i32
    %c0_i32_0 = arith.constant 0 : i32
    %c0_i32_1 = arith.constant 0 : i32
    %c0_i32_2 = arith.constant 0 : i32
    return %arg0, %c0_i32, %c0_i32_0, %c0_i32_1 : i32, i32, i32, i32
  }
  func.func @transform_1(%arg0: i32) -> (i32, i32) {
    %c0_i32 = arith.constant 0 : i32
    %c0_i32_0 = arith.constant 0 : i32
    %c0_i32_1 = arith.constant 0 : i32
    return %c0_i32, %c0_i32_0 : i32, i32
  }
  func.func @transform_2(%arg0: i32) -> (i32, i32) {
    %c0_i32 = arith.constant 0 : i32
    %c0_i32_0 = arith.constant 0 : i32
    %c0_i32_1 = arith.constant 0 : i32
    return %c0_i32, %c0_i32_0 : i32, i32
  }
}

module attributes {stable_mosaic.version = 11 : i64} {
  func.func @kernel(%arg0: i32, %arg1: i32, %arg2: memref<1x8x8x128xf32, #tpu.memory_space<vmem>>, %arg3: memref<1x1x128xf32, #tpu.memory_space<vmem>>, %arg4: memref<1x1x128xf32, #tpu.memory_space<vmem>>, %arg5: memref<1x9x128x128xbf16, #tpu.memory_space<vmem>>, %arg6: memref<1x128xf32, #tpu.memory_space<vmem>>, %arg7: memref<1x8x8x128xf32, #tpu.memory_space<vmem>>, %arg8: memref<1x1x128xf32, #tpu.memory_space<vmem>>, %arg9: memref<1x1x128xf32, #tpu.memory_space<vmem>>, %arg10: memref<10x10x128xf32, #tpu.memory_space<vmem>>, %arg11: memref<64x128xf32, #tpu.memory_space<vmem>>) attributes {dimension_semantics = [#tpu.dimension_semantics<parallel>, #tpu.dimension_semantics<arbitrary>], iteration_bounds = array<i64: 4, 1>, scalar_prefetch = 0 : i64, scratch_operands = 2 : i64, tpu.core_type = #tpu.core_type<tc>, window_params = [{transform_indices = @transform_0, window_bounds = array<i64: 1, 8, 8, 128>}, {transform_indices = @transform_1, window_bounds = array<i64: 1, 1, 128>}, {transform_indices = @transform_2, window_bounds = array<i64: 1, 1, 128>}, {transform_indices = @transform_3, window_bounds = array<i64: 1, 9, 128, 128>}, {pipeline_mode = #tpu.pipeline_mode<synchronous>, transform_indices = @transform_4, window_bounds = array<i64: 1, 128>}, {transform_indices = @transform_5, window_bounds = array<i64: 1, 8, 8, 128>}, {transform_indices = @transform_6, window_bounds = array<i64: 1, 1, 128>}, {transform_indices = @transform_7, window_bounds = array<i64: 1, 1, 128>}]} {
    %c0_i32 = arith.constant 0 : i32
    %0 = arith.cmpi eq, %arg1, %c0_i32 : i32
    %1 = arith.extui %0 : i1 to i32
    %c0_i32_0 = arith.constant 0 : i32
    %2 = arith.cmpi ne, %1, %c0_i32_0 : i32
    scf.if %2 {
      %c0_87 = arith.constant 0 : index
      %c0_88 = arith.constant 0 : index
      %88 = vector.load %arg6[%c0_87, %c0_88] : memref<1x128xf32, #tpu.memory_space<vmem>>, vector<1x128xf32>
      %89 = vector.shape_cast %88 : vector<1x128xf32> to vector<1x128xf32>
      %90 = vector.broadcast %89 : vector<1x128xf32> to vector<64x128xf32>
      %c0_89 = arith.constant 0 : index
      %c0_90 = arith.constant 0 : index
      %91 = vector.load %arg11[%c0_89, %c0_90] : memref<64x128xf32, #tpu.memory_space<vmem>>, vector<64x128xf32>
      tpu.vector_store %arg11[%c0_89, %c0_90], %90 {strides = array<i32>} : memref<64x128xf32, #tpu.memory_space<vmem>>, vector<64x128xf32>,
    } else {
    }
    %c0 = arith.constant 0 : index
    %c0_1 = arith.constant 0 : index
    %c0_2 = arith.constant 0 : index
    %c0_3 = arith.constant 0 : index
    %3 = vector.load %arg2[%c0, %c0_1, %c0_2, %c0_3] : memref<1x8x8x128xf32, #tpu.memory_space<vmem>>, vector<1x8x8x128xf32>
    %4 = vector.shape_cast %3 : vector<1x8x8x128xf32> to vector<8x8x128xf32>
    %c0_4 = arith.constant 0 : index
    %c0_5 = arith.constant 0 : index
    %c0_6 = arith.constant 0 : index
    %5 = vector.load %arg3[%c0_4, %c0_5, %c0_6] : memref<1x1x128xf32, #tpu.memory_space<vmem>>, vector<1x1x128xf32>
    %6 = vector.shape_cast %5 : vector<1x1x128xf32> to vector<1x128xf32>
    %7 = vector.shape_cast %6 : vector<1x128xf32> to vector<1x1x128xf32>
    %8 = vector.broadcast %7 : vector<1x1x128xf32> to vector<8x8x128xf32>
    %9 = arith.mulf %4, %8 : vector<8x8x128xf32>
    %c0_7 = arith.constant 0 : index
    %c0_8 = arith.constant 0 : index
    %c0_9 = arith.constant 0 : index
    %10 = vector.load %arg4[%c0_7, %c0_8, %c0_9] : memref<1x1x128xf32, #tpu.memory_space<vmem>>, vector<1x1x128xf32>
    %11 = vector.shape_cast %10 : vector<1x1x128xf32> to vector<1x128xf32>
    %12 = vector.shape_cast %11 : vector<1x128xf32> to vector<1x1x128xf32>
    %13 = vector.broadcast %12 : vector<1x1x128xf32> to vector<8x8x128xf32>
    %14 = arith.addf %9, %13 : vector<8x8x128xf32>
    %cst = arith.constant 0.000000e+00 : f32
    %15 = vector.broadcast %cst : f32 to vector<8x8x128xf32>
    %16 = arith.maximumf %14, %15 : vector<8x8x128xf32>
    %cst_10 = arith.constant 0.000000e+00 : f32
    %17 = vector.broadcast %cst_10 : f32 to vector<10x10x128xf32>
    %c0_11 = arith.constant 0 : index
    %c0_12 = arith.constant 0 : index
    %c0_13 = arith.constant 0 : index
    %18 = vector.load %arg10[%c0_11, %c0_12, %c0_13] : memref<10x10x128xf32, #tpu.memory_space<vmem>>, vector<10x10x128xf32>
    tpu.vector_store %arg10[%c0_11, %c0_12, %c0_13], %17 {strides = array<i32>} : memref<10x10x128xf32, #tpu.memory_space<vmem>>, vector<10x10x128xf32>,
    %c1 = arith.constant 1 : index
    %c1_14 = arith.constant 1 : index
    %c0_15 = arith.constant 0 : index
    %19 = vector.load %arg10[%c1, %c1_14, %c0_15] : memref<10x10x128xf32, #tpu.memory_space<vmem>>, vector<8x8x128xf32>
    tpu.vector_store %arg10[%c1, %c1_14, %c0_15], %16 {strides = array<i32>} : memref<10x10x128xf32, #tpu.memory_space<vmem>>, vector<8x8x128xf32>,
    %c0_16 = arith.constant 0 : index
    %c0_17 = arith.constant 0 : index
    %20 = vector.load %arg11[%c0_16, %c0_17] : memref<64x128xf32, #tpu.memory_space<vmem>>, vector<64x128xf32>
    %c0_18 = arith.constant 0 : index
    %c0_19 = arith.constant 0 : index
    %c0_20 = arith.constant 0 : index
    %21 = vector.load %arg10[%c0_18, %c0_19, %c0_20] : memref<10x10x128xf32, #tpu.memory_space<vmem>>, vector<8x8x128xf32>
    %22 = vector.shape_cast %21 : vector<8x8x128xf32> to vector<64x128xf32>
    %23 = arith.truncf %22 : vector<64x128xf32> to vector<64x128xbf16>
    %c0_21 = arith.constant 0 : index
    %c0_22 = arith.constant 0 : index
    %c0_23 = arith.constant 0 : index
    %c0_24 = arith.constant 0 : index
    %24 = vector.load %arg5[%c0_21, %c0_22, %c0_23, %c0_24] : memref<1x9x128x128xbf16, #tpu.memory_space<vmem>>, vector<1x1x128x128xbf16>
    %25 = vector.shape_cast %24 : vector<1x1x128x128xbf16> to vector<128x128xbf16>
    %cst_25 = arith.constant dense<0.000000e+00> : vector<64x128xf32>
    %26 = tpu.matmul %23, %25, %cst_25 {dimension_numbers = #tpu.dot_dimension_numbers<[1], [0], [0], [1], [0, 0, 1, 1], [], []>} : vector<64x128xbf16>, vector<128x128xbf16>, vector<64x128xf32> -> vector<64x128xf32>
    %27 = arith.addf %20, %26 : vector<64x128xf32>
    %c0_26 = arith.constant 0 : index
    %c1_27 = arith.constant 1 : index
    %c0_28 = arith.constant 0 : index
    %28 = vector.load %arg10[%c0_26, %c1_27, %c0_28] : memref<10x10x128xf32, #tpu.memory_space<vmem>>, vector<8x8x128xf32>
    %29 = vector.shape_cast %28 : vector<8x8x128xf32> to vector<64x128xf32>
    %30 = arith.truncf %29 : vector<64x128xf32> to vector<64x128xbf16>
    %c0_29 = arith.constant 0 : index
    %c1_30 = arith.constant 1 : index
    %c0_31 = arith.constant 0 : index
    %c0_32 = arith.constant 0 : index
    %31 = vector.load %arg5[%c0_29, %c1_30, %c0_31, %c0_32] : memref<1x9x128x128xbf16, #tpu.memory_space<vmem>>, vector<1x1x128x128xbf16>
    %32 = vector.shape_cast %31 : vector<1x1x128x128xbf16> to vector<128x128xbf16>
    %cst_33 = arith.constant dense<0.000000e+00> : vector<64x128xf32>
    %33 = tpu.matmul %30, %32, %cst_33 {dimension_numbers = #tpu.dot_dimension_numbers<[1], [0], [0], [1], [0, 0, 1, 1], [], []>} : vector<64x128xbf16>, vector<128x128xbf16>, vector<64x128xf32> -> vector<64x128xf32>
    %34 = arith.addf %27, %33 : vector<64x128xf32>
    %c0_34 = arith.constant 0 : index
    %c2 = arith.constant 2 : index
    %c0_35 = arith.constant 0 : index
    %35 = vector.load %arg10[%c0_34, %c2, %c0_35] : memref<10x10x128xf32, #tpu.memory_space<vmem>>, vector<8x8x128xf32>
    %36 = vector.shape_cast %35 : vector<8x8x128xf32> to vector<64x128xf32>
    %37 = arith.truncf %36 : vector<64x128xf32> to vector<64x128xbf16>
    %c0_36 = arith.constant 0 : index
    %c2_37 = arith.constant 2 : index
    %c0_38 = arith.constant 0 : index
    %c0_39 = arith.constant 0 : index
    %38 = vector.load %arg5[%c0_36, %c2_37, %c0_38, %c0_39] : memref<1x9x128x128xbf16, #tpu.memory_space<vmem>>, vector<1x1x128x128xbf16>
    %39 = vector.shape_cast %38 : vector<1x1x128x128xbf16> to vector<128x128xbf16>
    %cst_40 = arith.constant dense<0.000000e+00> : vector<64x128xf32>
    %40 = tpu.matmul %37, %39, %cst_40 {dimension_numbers = #tpu.dot_dimension_numbers<[1], [0], [0], [1], [0, 0, 1, 1], [], []>} : vector<64x128xbf16>, vector<128x128xbf16>, vector<64x128xf32> -> vector<64x128xf32>
    %41 = arith.addf %34, %40 : vector<64x128xf32>
    %c1_41 = arith.constant 1 : index
    %c0_42 = arith.constant 0 : index
    %c0_43 = arith.constant 0 : index
    %42 = vector.load %arg10[%c1_41, %c0_42, %c0_43] : memref<10x10x128xf32, #tpu.memory_space<vmem>>, vector<8x8x128xf32>
    %43 = vector.shape_cast %42 : vector<8x8x128xf32> to vector<64x128xf32>
    %44 = arith.truncf %43 : vector<64x128xf32> to vector<64x128xbf16>
    %c0_44 = arith.constant 0 : index
    %c3 = arith.constant 3 : index
    %c0_45 = arith.constant 0 : index
    %c0_46 = arith.constant 0 : index
    %45 = vector.load %arg5[%c0_44, %c3, %c0_45, %c0_46] : memref<1x9x128x128xbf16, #tpu.memory_space<vmem>>, vector<1x1x128x128xbf16>
    %46 = vector.shape_cast %45 : vector<1x1x128x128xbf16> to vector<128x128xbf16>
    %cst_47 = arith.constant dense<0.000000e+00> : vector<64x128xf32>
    %47 = tpu.matmul %44, %46, %cst_47 {dimension_numbers = #tpu.dot_dimension_numbers<[1], [0], [0], [1], [0, 0, 1, 1], [], []>} : vector<64x128xbf16>, vector<128x128xbf16>, vector<64x128xf32> -> vector<64x128xf32>
    %48 = arith.addf %41, %47 : vector<64x128xf32>
    %c1_48 = arith.constant 1 : index
    %c1_49 = arith.constant 1 : index
    %c0_50 = arith.constant 0 : index
    %49 = vector.load %arg10[%c1_48, %c1_49, %c0_50] : memref<10x10x128xf32, #tpu.memory_space<vmem>>, vector<8x8x128xf32>
    %50 = vector.shape_cast %49 : vector<8x8x128xf32> to vector<64x128xf32>
    %51 = arith.truncf %50 : vector<64x128xf32> to vector<64x128xbf16>
    %c0_51 = arith.constant 0 : index
    %c4 = arith.constant 4 : index
    %c0_52 = arith.constant 0 : index
    %c0_53 = arith.constant 0 : index
    %52 = vector.load %arg5[%c0_51, %c4, %c0_52, %c0_53] : memref<1x9x128x128xbf16, #tpu.memory_space<vmem>>, vector<1x1x128x128xbf16>
    %53 = vector.shape_cast %52 : vector<1x1x128x128xbf16> to vector<128x128xbf16>
    %cst_54 = arith.constant dense<0.000000e+00> : vector<64x128xf32>
    %54 = tpu.matmul %51, %53, %cst_54 {dimension_numbers = #tpu.dot_dimension_numbers<[1], [0], [0], [1], [0, 0, 1, 1], [], []>} : vector<64x128xbf16>, vector<128x128xbf16>, vector<64x128xf32> -> vector<64x128xf32>
    %55 = arith.addf %48, %54 : vector<64x128xf32>
    %c1_55 = arith.constant 1 : index
    %c2_56 = arith.constant 2 : index
    %c0_57 = arith.constant 0 : index
    %56 = vector.load %arg10[%c1_55, %c2_56, %c0_57] : memref<10x10x128xf32, #tpu.memory_space<vmem>>, vector<8x8x128xf32>
    %57 = vector.shape_cast %56 : vector<8x8x128xf32> to vector<64x128xf32>
    %58 = arith.truncf %57 : vector<64x128xf32> to vector<64x128xbf16>
    %c0_58 = arith.constant 0 : index
    %c5 = arith.constant 5 : index
    %c0_59 = arith.constant 0 : index
    %c0_60 = arith.constant 0 : index
    %59 = vector.load %arg5[%c0_58, %c5, %c0_59, %c0_60] : memref<1x9x128x128xbf16, #tpu.memory_space<vmem>>, vector<1x1x128x128xbf16>
    %60 = vector.shape_cast %59 : vector<1x1x128x128xbf16> to vector<128x128xbf16>
    %cst_61 = arith.constant dense<0.000000e+00> : vector<64x128xf32>
    %61 = tpu.matmul %58, %60, %cst_61 {dimension_numbers = #tpu.dot_dimension_numbers<[1], [0], [0], [1], [0, 0, 1, 1], [], []>} : vector<64x128xbf16>, vector<128x128xbf16>, vector<64x128xf32> -> vector<64x128xf32>
    %62 = arith.addf %55, %61 : vector<64x128xf32>
    %c2_62 = arith.constant 2 : index
    %c0_63 = arith.constant 0 : index
    %c0_64 = arith.constant 0 : index
    %63 = vector.load %arg10[%c2_62, %c0_63, %c0_64] : memref<10x10x128xf32, #tpu.memory_space<vmem>>, vector<8x8x128xf32>
    %64 = vector.shape_cast %63 : vector<8x8x128xf32> to vector<64x128xf32>
    %65 = arith.truncf %64 : vector<64x128xf32> to vector<64x128xbf16>
    %c0_65 = arith.constant 0 : index
    %c6 = arith.constant 6 : index
    %c0_66 = arith.constant 0 : index
    %c0_67 = arith.constant 0 : index
    %66 = vector.load %arg5[%c0_65, %c6, %c0_66, %c0_67] : memref<1x9x128x128xbf16, #tpu.memory_space<vmem>>, vector<1x1x128x128xbf16>
    %67 = vector.shape_cast %66 : vector<1x1x128x128xbf16> to vector<128x128xbf16>
    %cst_68 = arith.constant dense<0.000000e+00> : vector<64x128xf32>
    %68 = tpu.matmul %65, %67, %cst_68 {dimension_numbers = #tpu.dot_dimension_numbers<[1], [0], [0], [1], [0, 0, 1, 1], [], []>} : vector<64x128xbf16>, vector<128x128xbf16>, vector<64x128xf32> -> vector<64x128xf32>
    %69 = arith.addf %62, %68 : vector<64x128xf32>
    %c2_69 = arith.constant 2 : index
    %c1_70 = arith.constant 1 : index
    %c0_71 = arith.constant 0 : index
    %70 = vector.load %arg10[%c2_69, %c1_70, %c0_71] : memref<10x10x128xf32, #tpu.memory_space<vmem>>, vector<8x8x128xf32>
    %71 = vector.shape_cast %70 : vector<8x8x128xf32> to vector<64x128xf32>
    %72 = arith.truncf %71 : vector<64x128xf32> to vector<64x128xbf16>
    %c0_72 = arith.constant 0 : index
    %c7 = arith.constant 7 : index
    %c0_73 = arith.constant 0 : index
    %c0_74 = arith.constant 0 : index
    %73 = vector.load %arg5[%c0_72, %c7, %c0_73, %c0_74] : memref<1x9x128x128xbf16, #tpu.memory_space<vmem>>, vector<1x1x128x128xbf16>
    %74 = vector.shape_cast %73 : vector<1x1x128x128xbf16> to vector<128x128xbf16>
    %cst_75 = arith.constant dense<0.000000e+00> : vector<64x128xf32>
    %75 = tpu.matmul %72, %74, %cst_75 {dimension_numbers = #tpu.dot_dimension_numbers<[1], [0], [0], [1], [0, 0, 1, 1], [], []>} : vector<64x128xbf16>, vector<128x128xbf16>, vector<64x128xf32> -> vector<64x128xf32>
    %76 = arith.addf %69, %75 : vector<64x128xf32>
    %c2_76 = arith.constant 2 : index
    %c2_77 = arith.constant 2 : index
    %c0_78 = arith.constant 0 : index
    %77 = vector.load %arg10[%c2_76, %c2_77, %c0_78] : memref<10x10x128xf32, #tpu.memory_space<vmem>>, vector<8x8x128xf32>
    %78 = vector.shape_cast %77 : vector<8x8x128xf32> to vector<64x128xf32>
    %79 = arith.truncf %78 : vector<64x128xf32> to vector<64x128xbf16>
    %c0_79 = arith.constant 0 : index
    %c8 = arith.constant 8 : index
    %c0_80 = arith.constant 0 : index
    %c0_81 = arith.constant 0 : index
    %80 = vector.load %arg5[%c0_79, %c8, %c0_80, %c0_81] : memref<1x9x128x128xbf16, #tpu.memory_space<vmem>>, vector<1x1x128x128xbf16>
    %81 = vector.shape_cast %80 : vector<1x1x128x128xbf16> to vector<128x128xbf16>
    %cst_82 = arith.constant dense<0.000000e+00> : vector<64x128xf32>
    %82 = tpu.matmul %79, %81, %cst_82 {dimension_numbers = #tpu.dot_dimension_numbers<[1], [0], [0], [1], [0, 0, 1, 1], [], []>} : vector<64x128xbf16>, vector<128x128xbf16>, vector<64x128xf32> -> vector<64x128xf32>
    %83 = arith.addf %76, %82 : vector<64x128xf32>
    %c0_83 = arith.constant 0 : index
    %c0_84 = arith.constant 0 : index
    %84 = vector.load %arg11[%c0_83, %c0_84] : memref<64x128xf32, #tpu.memory_space<vmem>>, vector<64x128xf32>
    tpu.vector_store %arg11[%c0_83, %c0_84], %83 {strides = array<i32>} : memref<64x128xf32, #tpu.memory_space<vmem>>, vector<64x128xf32>,
    %c0_i32_85 = arith.constant 0 : i32
    %85 = arith.cmpi eq, %arg1, %c0_i32_85 : i32
    %86 = arith.extui %85 : i1 to i32
    %c0_i32_86 = arith.constant 0 : i32
    %87 = arith.cmpi ne, %86, %c0_i32_86 : i32
    scf.if %87 {
      %88 = vector.shape_cast %83 : vector<64x128xf32> to vector<8x8x128xf32>
      %c0_87 = arith.constant 0 : index
      %c0_88 = arith.constant 0 : index
      %c0_89 = arith.constant 0 : index
      %c0_90 = arith.constant 0 : index
      %89 = vector.load %arg7[%c0_87, %c0_88, %c0_89, %c0_90] : memref<1x8x8x128xf32, #tpu.memory_space<vmem>>, vector<1x8x8x128xf32>
      %90 = vector.shape_cast %89 : vector<1x8x8x128xf32> to vector<8x8x128xf32>
      %91 = vector.shape_cast %88 : vector<8x8x128xf32> to vector<1x8x8x128xf32>
      tpu.vector_store %arg7[%c0_87, %c0_88, %c0_89, %c0_90], %91 {strides = array<i32>} : memref<1x8x8x128xf32, #tpu.memory_space<vmem>>, vector<1x8x8x128xf32>,
      %cst_91 = arith.constant dense<0.000000e+00> : vector<128xf32>
      %92 = vector.multi_reduction <add>, %83, %cst_91 [0] : vector<64x128xf32> to vector<128xf32>
      %93 = vector.shape_cast %92 : vector<128xf32> to vector<1x128xf32>
      %c0_92 = arith.constant 0 : index
      %c0_93 = arith.constant 0 : index
      %c0_94 = arith.constant 0 : index
      %94 = vector.load %arg8[%c0_92, %c0_93, %c0_94] : memref<1x1x128xf32, #tpu.memory_space<vmem>>, vector<1x1x128xf32>
      %95 = vector.shape_cast %94 : vector<1x1x128xf32> to vector<1x128xf32>
      %96 = vector.shape_cast %93 : vector<1x128xf32> to vector<1x1x128xf32>
      tpu.vector_store %arg8[%c0_92, %c0_93, %c0_94], %96 {strides = array<i32>} : memref<1x1x128xf32, #tpu.memory_space<vmem>>, vector<1x1x128xf32>,
      %97 = arith.mulf %83, %83 : vector<64x128xf32>
      %cst_95 = arith.constant dense<0.000000e+00> : vector<128xf32>
      %98 = vector.multi_reduction <add>, %97, %cst_95 [0] : vector<64x128xf32> to vector<128xf32>
      %99 = vector.shape_cast %98 : vector<128xf32> to vector<1x128xf32>
      %c0_96 = arith.constant 0 : index
      %c0_97 = arith.constant 0 : index
      %c0_98 = arith.constant 0 : index
      %100 = vector.load %arg9[%c0_96, %c0_97, %c0_98] : memref<1x1x128xf32, #tpu.memory_space<vmem>>, vector<1x1x128xf32>
      %101 = vector.shape_cast %100 : vector<1x1x128xf32> to vector<1x128xf32>
      %102 = vector.shape_cast %99 : vector<1x128xf32> to vector<1x1x128xf32>
      tpu.vector_store %arg9[%c0_96, %c0_97, %c0_98], %102 {strides = array<i32>} : memref<1x1x128xf32, #tpu.memory_space<vmem>>, vector<1x1x128xf32>,
    } else {
    }
    return
  }
  func.func @transform_0(%arg0: i32, %arg1: i32) -> (i32, i32, i32, i32) {
    %c4_i32 = arith.constant 4 : i32
    %0 = arith.muli %arg1, %c4_i32 : i32
    %1 = arith.addi %0, %arg0 : i32
    %c0_i32 = arith.constant 0 : i32
    %c0_i32_0 = arith.constant 0 : i32
    %c0_i32_1 = arith.constant 0 : i32
    %c0_i32_2 = arith.constant 0 : i32
    return %1, %c0_i32, %c0_i32_0, %c0_i32_1 : i32, i32, i32, i32
  }
  func.func @transform_1(%arg0: i32, %arg1: i32) -> (i32, i32, i32) {
    %c0_i32 = arith.constant 0 : i32
    %c0_i32_0 = arith.constant 0 : i32
    %c0_i32_1 = arith.constant 0 : i32
    return %arg1, %c0_i32, %c0_i32_0 : i32, i32, i32
  }
  func.func @transform_2(%arg0: i32, %arg1: i32) -> (i32, i32, i32) {
    %c0_i32 = arith.constant 0 : i32
    %c0_i32_0 = arith.constant 0 : i32
    %c0_i32_1 = arith.constant 0 : i32
    return %arg1, %c0_i32, %c0_i32_0 : i32, i32, i32
  }
  func.func @transform_3(%arg0: i32, %arg1: i32) -> (i32, i32, i32, i32) {
    %c0_i32 = arith.constant 0 : i32
    %c0_i32_0 = arith.constant 0 : i32
    %c0_i32_1 = arith.constant 0 : i32
    %c0_i32_2 = arith.constant 0 : i32
    return %arg1, %c0_i32, %c0_i32_0, %c0_i32_1 : i32, i32, i32, i32
  }
  func.func @transform_4(%arg0: i32, %arg1: i32) -> (i32, i32) {
    %c0_i32 = arith.constant 0 : i32
    %c0_i32_0 = arith.constant 0 : i32
    %c0_i32_1 = arith.constant 0 : i32
    return %c0_i32, %c0_i32_0 : i32, i32
  }
  func.func @transform_5(%arg0: i32, %arg1: i32) -> (i32, i32, i32, i32) {
    %c4_i32 = arith.constant 4 : i32
    %0 = arith.addi %c4_i32, %arg0 : i32
    %c0_i32 = arith.constant 0 : i32
    %c0_i32_0 = arith.constant 0 : i32
    %c0_i32_1 = arith.constant 0 : i32
    %c0_i32_2 = arith.constant 0 : i32
    return %0, %c0_i32, %c0_i32_0, %c0_i32_1 : i32, i32, i32, i32
  }
  func.func @transform_6(%arg0: i32, %arg1: i32) -> (i32, i32, i32) {
    %c0_i32 = arith.constant 0 : i32
    %c0_i32_0 = arith.constant 0 : i32
    %c0_i32_1 = arith.constant 0 : i32
    return %arg0, %c0_i32, %c0_i32_0 : i32, i32, i32
  }
  func.func @transform_7(%arg0: i32, %arg1: i32) -> (i32, i32, i32) {
    %c0_i32 = arith.constant 0 : i32
    %c0_i32_0 = arith.constant 0 : i32
    %c0_i32_1 = arith.constant 0 : i32
    return %arg0, %c0_i32, %c0_i32_0 : i32, i32, i32
  }
}

module attributes {stable_mosaic.version = 11 : i64} {
  func.func @kernel(%arg0: i32, %arg1: i32, %arg2: memref<1x8x8x128xf32, #tpu.memory_space<vmem>>, %arg3: memref<1x1x128xf32, #tpu.memory_space<vmem>>, %arg4: memref<1x1x128xf32, #tpu.memory_space<vmem>>, %arg5: memref<1x9x128x128xbf16, #tpu.memory_space<vmem>>, %arg6: memref<1x128xf32, #tpu.memory_space<vmem>>, %arg7: memref<1x8x8x128xf32, #tpu.memory_space<vmem>>, %arg8: memref<1x1x128xf32, #tpu.memory_space<vmem>>, %arg9: memref<1x1x128xf32, #tpu.memory_space<vmem>>, %arg10: memref<10x10x128xf32, #tpu.memory_space<vmem>>, %arg11: memref<64x128xf32, #tpu.memory_space<vmem>>) attributes {dimension_semantics = [#tpu.dimension_semantics<parallel>, #tpu.dimension_semantics<arbitrary>], iteration_bounds = array<i64: 4, 2>, scalar_prefetch = 0 : i64, scratch_operands = 2 : i64, tpu.core_type = #tpu.core_type<tc>, window_params = [{transform_indices = @transform_0, window_bounds = array<i64: 1, 8, 8, 128>}, {transform_indices = @transform_1, window_bounds = array<i64: 1, 1, 128>}, {transform_indices = @transform_2, window_bounds = array<i64: 1, 1, 128>}, {transform_indices = @transform_3, window_bounds = array<i64: 1, 9, 128, 128>}, {pipeline_mode = #tpu.pipeline_mode<synchronous>, transform_indices = @transform_4, window_bounds = array<i64: 1, 128>}, {transform_indices = @transform_5, window_bounds = array<i64: 1, 8, 8, 128>}, {transform_indices = @transform_6, window_bounds = array<i64: 1, 1, 128>}, {transform_indices = @transform_7, window_bounds = array<i64: 1, 1, 128>}]} {
    %c0_i32 = arith.constant 0 : i32
    %0 = arith.cmpi eq, %arg1, %c0_i32 : i32
    %1 = arith.extui %0 : i1 to i32
    %c0_i32_0 = arith.constant 0 : i32
    %2 = arith.cmpi ne, %1, %c0_i32_0 : i32
    scf.if %2 {
      %c0_86 = arith.constant 0 : index
      %c0_87 = arith.constant 0 : index
      %88 = vector.load %arg6[%c0_86, %c0_87] : memref<1x128xf32, #tpu.memory_space<vmem>>, vector<1x128xf32>
      %89 = vector.shape_cast %88 : vector<1x128xf32> to vector<1x128xf32>
      %90 = vector.broadcast %89 : vector<1x128xf32> to vector<64x128xf32>
      %c0_88 = arith.constant 0 : index
      %c0_89 = arith.constant 0 : index
      %91 = vector.load %arg11[%c0_88, %c0_89] : memref<64x128xf32, #tpu.memory_space<vmem>>, vector<64x128xf32>
      tpu.vector_store %arg11[%c0_88, %c0_89], %90 {strides = array<i32>} : memref<64x128xf32, #tpu.memory_space<vmem>>, vector<64x128xf32>,
    } else {
    }
    %c0 = arith.constant 0 : index
    %c0_1 = arith.constant 0 : index
    %c0_2 = arith.constant 0 : index
    %c0_3 = arith.constant 0 : index
    %3 = vector.load %arg2[%c0, %c0_1, %c0_2, %c0_3] : memref<1x8x8x128xf32, #tpu.memory_space<vmem>>, vector<1x8x8x128xf32>
    %4 = vector.shape_cast %3 : vector<1x8x8x128xf32> to vector<8x8x128xf32>
    %c0_4 = arith.constant 0 : index
    %c0_5 = arith.constant 0 : index
    %c0_6 = arith.constant 0 : index
    %5 = vector.load %arg3[%c0_4, %c0_5, %c0_6] : memref<1x1x128xf32, #tpu.memory_space<vmem>>, vector<1x1x128xf32>
    %6 = vector.shape_cast %5 : vector<1x1x128xf32> to vector<1x128xf32>
    %7 = vector.shape_cast %6 : vector<1x128xf32> to vector<1x1x128xf32>
    %8 = vector.broadcast %7 : vector<1x1x128xf32> to vector<8x8x128xf32>
    %9 = arith.mulf %4, %8 : vector<8x8x128xf32>
    %c0_7 = arith.constant 0 : index
    %c0_8 = arith.constant 0 : index
    %c0_9 = arith.constant 0 : index
    %10 = vector.load %arg4[%c0_7, %c0_8, %c0_9] : memref<1x1x128xf32, #tpu.memory_space<vmem>>, vector<1x1x128xf32>
    %11 = vector.shape_cast %10 : vector<1x1x128xf32> to vector<1x128xf32>
    %12 = vector.shape_cast %11 : vector<1x128xf32> to vector<1x1x128xf32>
    %13 = vector.broadcast %12 : vector<1x1x128xf32> to vector<8x8x128xf32>
    %14 = arith.addf %9, %13 : vector<8x8x128xf32>
    %cst = arith.constant 0.000000e+00 : f32
    %15 = vector.broadcast %cst : f32 to vector<8x8x128xf32>
    %16 = arith.maximumf %14, %15 : vector<8x8x128xf32>
    %cst_10 = arith.constant 0.000000e+00 : f32
    %17 = vector.broadcast %cst_10 : f32 to vector<10x10x128xf32>
    %c0_11 = arith.constant 0 : index
    %c0_12 = arith.constant 0 : index
    %c0_13 = arith.constant 0 : index
    %18 = vector.load %arg10[%c0_11, %c0_12, %c0_13] : memref<10x10x128xf32, #tpu.memory_space<vmem>>, vector<10x10x128xf32>
    tpu.vector_store %arg10[%c0_11, %c0_12, %c0_13], %17 {strides = array<i32>} : memref<10x10x128xf32, #tpu.memory_space<vmem>>, vector<10x10x128xf32>,
    %c1 = arith.constant 1 : index
    %c1_14 = arith.constant 1 : index
    %c0_15 = arith.constant 0 : index
    %19 = vector.load %arg10[%c1, %c1_14, %c0_15] : memref<10x10x128xf32, #tpu.memory_space<vmem>>, vector<8x8x128xf32>
    tpu.vector_store %arg10[%c1, %c1_14, %c0_15], %16 {strides = array<i32>} : memref<10x10x128xf32, #tpu.memory_space<vmem>>, vector<8x8x128xf32>,
    %c0_16 = arith.constant 0 : index
    %c0_17 = arith.constant 0 : index
    %20 = vector.load %arg11[%c0_16, %c0_17] : memref<64x128xf32, #tpu.memory_space<vmem>>, vector<64x128xf32>
    %c0_18 = arith.constant 0 : index
    %c0_19 = arith.constant 0 : index
    %c0_20 = arith.constant 0 : index
    %21 = vector.load %arg10[%c0_18, %c0_19, %c0_20] : memref<10x10x128xf32, #tpu.memory_space<vmem>>, vector<8x8x128xf32>
    %22 = vector.shape_cast %21 : vector<8x8x128xf32> to vector<64x128xf32>
    %23 = arith.truncf %22 : vector<64x128xf32> to vector<64x128xbf16>
    %c0_21 = arith.constant 0 : index
    %c0_22 = arith.constant 0 : index
    %c0_23 = arith.constant 0 : index
    %c0_24 = arith.constant 0 : index
    %24 = vector.load %arg5[%c0_21, %c0_22, %c0_23, %c0_24] : memref<1x9x128x128xbf16, #tpu.memory_space<vmem>>, vector<1x1x128x128xbf16>
    %25 = vector.shape_cast %24 : vector<1x1x128x128xbf16> to vector<128x128xbf16>
    %cst_25 = arith.constant dense<0.000000e+00> : vector<64x128xf32>
    %26 = tpu.matmul %23, %25, %cst_25 {dimension_numbers = #tpu.dot_dimension_numbers<[1], [0], [0], [1], [0, 0, 1, 1], [], []>} : vector<64x128xbf16>, vector<128x128xbf16>, vector<64x128xf32> -> vector<64x128xf32>
    %27 = arith.addf %20, %26 : vector<64x128xf32>
    %c0_26 = arith.constant 0 : index
    %c1_27 = arith.constant 1 : index
    %c0_28 = arith.constant 0 : index
    %28 = vector.load %arg10[%c0_26, %c1_27, %c0_28] : memref<10x10x128xf32, #tpu.memory_space<vmem>>, vector<8x8x128xf32>
    %29 = vector.shape_cast %28 : vector<8x8x128xf32> to vector<64x128xf32>
    %30 = arith.truncf %29 : vector<64x128xf32> to vector<64x128xbf16>
    %c0_29 = arith.constant 0 : index
    %c1_30 = arith.constant 1 : index
    %c0_31 = arith.constant 0 : index
    %c0_32 = arith.constant 0 : index
    %31 = vector.load %arg5[%c0_29, %c1_30, %c0_31, %c0_32] : memref<1x9x128x128xbf16, #tpu.memory_space<vmem>>, vector<1x1x128x128xbf16>
    %32 = vector.shape_cast %31 : vector<1x1x128x128xbf16> to vector<128x128xbf16>
    %cst_33 = arith.constant dense<0.000000e+00> : vector<64x128xf32>
    %33 = tpu.matmul %30, %32, %cst_33 {dimension_numbers = #tpu.dot_dimension_numbers<[1], [0], [0], [1], [0, 0, 1, 1], [], []>} : vector<64x128xbf16>, vector<128x128xbf16>, vector<64x128xf32> -> vector<64x128xf32>
    %34 = arith.addf %27, %33 : vector<64x128xf32>
    %c0_34 = arith.constant 0 : index
    %c2 = arith.constant 2 : index
    %c0_35 = arith.constant 0 : index
    %35 = vector.load %arg10[%c0_34, %c2, %c0_35] : memref<10x10x128xf32, #tpu.memory_space<vmem>>, vector<8x8x128xf32>
    %36 = vector.shape_cast %35 : vector<8x8x128xf32> to vector<64x128xf32>
    %37 = arith.truncf %36 : vector<64x128xf32> to vector<64x128xbf16>
    %c0_36 = arith.constant 0 : index
    %c2_37 = arith.constant 2 : index
    %c0_38 = arith.constant 0 : index
    %c0_39 = arith.constant 0 : index
    %38 = vector.load %arg5[%c0_36, %c2_37, %c0_38, %c0_39] : memref<1x9x128x128xbf16, #tpu.memory_space<vmem>>, vector<1x1x128x128xbf16>
    %39 = vector.shape_cast %38 : vector<1x1x128x128xbf16> to vector<128x128xbf16>
    %cst_40 = arith.constant dense<0.000000e+00> : vector<64x128xf32>
    %40 = tpu.matmul %37, %39, %cst_40 {dimension_numbers = #tpu.dot_dimension_numbers<[1], [0], [0], [1], [0, 0, 1, 1], [], []>} : vector<64x128xbf16>, vector<128x128xbf16>, vector<64x128xf32> -> vector<64x128xf32>
    %41 = arith.addf %34, %40 : vector<64x128xf32>
    %c1_41 = arith.constant 1 : index
    %c0_42 = arith.constant 0 : index
    %c0_43 = arith.constant 0 : index
    %42 = vector.load %arg10[%c1_41, %c0_42, %c0_43] : memref<10x10x128xf32, #tpu.memory_space<vmem>>, vector<8x8x128xf32>
    %43 = vector.shape_cast %42 : vector<8x8x128xf32> to vector<64x128xf32>
    %44 = arith.truncf %43 : vector<64x128xf32> to vector<64x128xbf16>
    %c0_44 = arith.constant 0 : index
    %c3 = arith.constant 3 : index
    %c0_45 = arith.constant 0 : index
    %c0_46 = arith.constant 0 : index
    %45 = vector.load %arg5[%c0_44, %c3, %c0_45, %c0_46] : memref<1x9x128x128xbf16, #tpu.memory_space<vmem>>, vector<1x1x128x128xbf16>
    %46 = vector.shape_cast %45 : vector<1x1x128x128xbf16> to vector<128x128xbf16>
    %cst_47 = arith.constant dense<0.000000e+00> : vector<64x128xf32>
    %47 = tpu.matmul %44, %46, %cst_47 {dimension_numbers = #tpu.dot_dimension_numbers<[1], [0], [0], [1], [0, 0, 1, 1], [], []>} : vector<64x128xbf16>, vector<128x128xbf16>, vector<64x128xf32> -> vector<64x128xf32>
    %48 = arith.addf %41, %47 : vector<64x128xf32>
    %c1_48 = arith.constant 1 : index
    %c1_49 = arith.constant 1 : index
    %c0_50 = arith.constant 0 : index
    %49 = vector.load %arg10[%c1_48, %c1_49, %c0_50] : memref<10x10x128xf32, #tpu.memory_space<vmem>>, vector<8x8x128xf32>
    %50 = vector.shape_cast %49 : vector<8x8x128xf32> to vector<64x128xf32>
    %51 = arith.truncf %50 : vector<64x128xf32> to vector<64x128xbf16>
    %c0_51 = arith.constant 0 : index
    %c4 = arith.constant 4 : index
    %c0_52 = arith.constant 0 : index
    %c0_53 = arith.constant 0 : index
    %52 = vector.load %arg5[%c0_51, %c4, %c0_52, %c0_53] : memref<1x9x128x128xbf16, #tpu.memory_space<vmem>>, vector<1x1x128x128xbf16>
    %53 = vector.shape_cast %52 : vector<1x1x128x128xbf16> to vector<128x128xbf16>
    %cst_54 = arith.constant dense<0.000000e+00> : vector<64x128xf32>
    %54 = tpu.matmul %51, %53, %cst_54 {dimension_numbers = #tpu.dot_dimension_numbers<[1], [0], [0], [1], [0, 0, 1, 1], [], []>} : vector<64x128xbf16>, vector<128x128xbf16>, vector<64x128xf32> -> vector<64x128xf32>
    %55 = arith.addf %48, %54 : vector<64x128xf32>
    %c1_55 = arith.constant 1 : index
    %c2_56 = arith.constant 2 : index
    %c0_57 = arith.constant 0 : index
    %56 = vector.load %arg10[%c1_55, %c2_56, %c0_57] : memref<10x10x128xf32, #tpu.memory_space<vmem>>, vector<8x8x128xf32>
    %57 = vector.shape_cast %56 : vector<8x8x128xf32> to vector<64x128xf32>
    %58 = arith.truncf %57 : vector<64x128xf32> to vector<64x128xbf16>
    %c0_58 = arith.constant 0 : index
    %c5 = arith.constant 5 : index
    %c0_59 = arith.constant 0 : index
    %c0_60 = arith.constant 0 : index
    %59 = vector.load %arg5[%c0_58, %c5, %c0_59, %c0_60] : memref<1x9x128x128xbf16, #tpu.memory_space<vmem>>, vector<1x1x128x128xbf16>
    %60 = vector.shape_cast %59 : vector<1x1x128x128xbf16> to vector<128x128xbf16>
    %cst_61 = arith.constant dense<0.000000e+00> : vector<64x128xf32>
    %61 = tpu.matmul %58, %60, %cst_61 {dimension_numbers = #tpu.dot_dimension_numbers<[1], [0], [0], [1], [0, 0, 1, 1], [], []>} : vector<64x128xbf16>, vector<128x128xbf16>, vector<64x128xf32> -> vector<64x128xf32>
    %62 = arith.addf %55, %61 : vector<64x128xf32>
    %c2_62 = arith.constant 2 : index
    %c0_63 = arith.constant 0 : index
    %c0_64 = arith.constant 0 : index
    %63 = vector.load %arg10[%c2_62, %c0_63, %c0_64] : memref<10x10x128xf32, #tpu.memory_space<vmem>>, vector<8x8x128xf32>
    %64 = vector.shape_cast %63 : vector<8x8x128xf32> to vector<64x128xf32>
    %65 = arith.truncf %64 : vector<64x128xf32> to vector<64x128xbf16>
    %c0_65 = arith.constant 0 : index
    %c6 = arith.constant 6 : index
    %c0_66 = arith.constant 0 : index
    %c0_67 = arith.constant 0 : index
    %66 = vector.load %arg5[%c0_65, %c6, %c0_66, %c0_67] : memref<1x9x128x128xbf16, #tpu.memory_space<vmem>>, vector<1x1x128x128xbf16>
    %67 = vector.shape_cast %66 : vector<1x1x128x128xbf16> to vector<128x128xbf16>
    %cst_68 = arith.constant dense<0.000000e+00> : vector<64x128xf32>
    %68 = tpu.matmul %65, %67, %cst_68 {dimension_numbers = #tpu.dot_dimension_numbers<[1], [0], [0], [1], [0, 0, 1, 1], [], []>} : vector<64x128xbf16>, vector<128x128xbf16>, vector<64x128xf32> -> vector<64x128xf32>
    %69 = arith.addf %62, %68 : vector<64x128xf32>
    %c2_69 = arith.constant 2 : index
    %c1_70 = arith.constant 1 : index
    %c0_71 = arith.constant 0 : index
    %70 = vector.load %arg10[%c2_69, %c1_70, %c0_71] : memref<10x10x128xf32, #tpu.memory_space<vmem>>, vector<8x8x128xf32>
    %71 = vector.shape_cast %70 : vector<8x8x128xf32> to vector<64x128xf32>
    %72 = arith.truncf %71 : vector<64x128xf32> to vector<64x128xbf16>
    %c0_72 = arith.constant 0 : index
    %c7 = arith.constant 7 : index
    %c0_73 = arith.constant 0 : index
    %c0_74 = arith.constant 0 : index
    %73 = vector.load %arg5[%c0_72, %c7, %c0_73, %c0_74] : memref<1x9x128x128xbf16, #tpu.memory_space<vmem>>, vector<1x1x128x128xbf16>
    %74 = vector.shape_cast %73 : vector<1x1x128x128xbf16> to vector<128x128xbf16>
    %cst_75 = arith.constant dense<0.000000e+00> : vector<64x128xf32>
    %75 = tpu.matmul %72, %74, %cst_75 {dimension_numbers = #tpu.dot_dimension_numbers<[1], [0], [0], [1], [0, 0, 1, 1], [], []>} : vector<64x128xbf16>, vector<128x128xbf16>, vector<64x128xf32> -> vector<64x128xf32>
    %76 = arith.addf %69, %75 : vector<64x128xf32>
    %c2_76 = arith.constant 2 : index
    %c2_77 = arith.constant 2 : index
    %c0_78 = arith.constant 0 : index
    %77 = vector.load %arg10[%c2_76, %c2_77, %c0_78] : memref<10x10x128xf32, #tpu.memory_space<vmem>>, vector<8x8x128xf32>
    %78 = vector.shape_cast %77 : vector<8x8x128xf32> to vector<64x128xf32>
    %79 = arith.truncf %78 : vector<64x128xf32> to vector<64x128xbf16>
    %c0_79 = arith.constant 0 : index
    %c8 = arith.constant 8 : index
    %c0_80 = arith.constant 0 : index
    %c0_81 = arith.constant 0 : index
    %80 = vector.load %arg5[%c0_79, %c8, %c0_80, %c0_81] : memref<1x9x128x128xbf16, #tpu.memory_space<vmem>>, vector<1x1x128x128xbf16>
    %81 = vector.shape_cast %80 : vector<1x1x128x128xbf16> to vector<128x128xbf16>
    %cst_82 = arith.constant dense<0.000000e+00> : vector<64x128xf32>
    %82 = tpu.matmul %79, %81, %cst_82 {dimension_numbers = #tpu.dot_dimension_numbers<[1], [0], [0], [1], [0, 0, 1, 1], [], []>} : vector<64x128xbf16>, vector<128x128xbf16>, vector<64x128xf32> -> vector<64x128xf32>
    %83 = arith.addf %76, %82 : vector<64x128xf32>
    %c0_83 = arith.constant 0 : index
    %c0_84 = arith.constant 0 : index
    %84 = vector.load %arg11[%c0_83, %c0_84] : memref<64x128xf32, #tpu.memory_space<vmem>>, vector<64x128xf32>
    tpu.vector_store %arg11[%c0_83, %c0_84], %83 {strides = array<i32>} : memref<64x128xf32, #tpu.memory_space<vmem>>, vector<64x128xf32>,
    %c1_i32 = arith.constant 1 : i32
    %85 = arith.cmpi eq, %arg1, %c1_i32 : i32
    %86 = arith.extui %85 : i1 to i32
    %c0_i32_85 = arith.constant 0 : i32
    %87 = arith.cmpi ne, %86, %c0_i32_85 : i32
    scf.if %87 {
      %88 = vector.shape_cast %83 : vector<64x128xf32> to vector<8x8x128xf32>
      %c0_86 = arith.constant 0 : index
      %c0_87 = arith.constant 0 : index
      %c0_88 = arith.constant 0 : index
      %c0_89 = arith.constant 0 : index
      %89 = vector.load %arg7[%c0_86, %c0_87, %c0_88, %c0_89] : memref<1x8x8x128xf32, #tpu.memory_space<vmem>>, vector<1x8x8x128xf32>
      %90 = vector.shape_cast %89 : vector<1x8x8x128xf32> to vector<8x8x128xf32>
      %91 = vector.shape_cast %88 : vector<8x8x128xf32> to vector<1x8x8x128xf32>
      tpu.vector_store %arg7[%c0_86, %c0_87, %c0_88, %c0_89], %91 {strides = array<i32>} : memref<1x8x8x128xf32, #tpu.memory_space<vmem>>, vector<1x8x8x128xf32>,
      %cst_90 = arith.constant dense<0.000000e+00> : vector<128xf32>
      %92 = vector.multi_reduction <add>, %83, %cst_90 [0] : vector<64x128xf32> to vector<128xf32>
      %93 = vector.shape_cast %92 : vector<128xf32> to vector<1x128xf32>
      %c0_91 = arith.constant 0 : index
      %c0_92 = arith.constant 0 : index
      %c0_93 = arith.constant 0 : index
      %94 = vector.load %arg8[%c0_91, %c0_92, %c0_93] : memref<1x1x128xf32, #tpu.memory_space<vmem>>, vector<1x1x128xf32>
      %95 = vector.shape_cast %94 : vector<1x1x128xf32> to vector<1x128xf32>
      %96 = vector.shape_cast %93 : vector<1x128xf32> to vector<1x1x128xf32>
      tpu.vector_store %arg8[%c0_91, %c0_92, %c0_93], %96 {strides = array<i32>} : memref<1x1x128xf32, #tpu.memory_space<vmem>>, vector<1x1x128xf32>,
      %97 = arith.mulf %83, %83 : vector<64x128xf32>
      %cst_94 = arith.constant dense<0.000000e+00> : vector<128xf32>
      %98 = vector.multi_reduction <add>, %97, %cst_94 [0] : vector<64x128xf32> to vector<128xf32>
      %99 = vector.shape_cast %98 : vector<128xf32> to vector<1x128xf32>
      %c0_95 = arith.constant 0 : index
      %c0_96 = arith.constant 0 : index
      %c0_97 = arith.constant 0 : index
      %100 = vector.load %arg9[%c0_95, %c0_96, %c0_97] : memref<1x1x128xf32, #tpu.memory_space<vmem>>, vector<1x1x128xf32>
      %101 = vector.shape_cast %100 : vector<1x1x128xf32> to vector<1x128xf32>
      %102 = vector.shape_cast %99 : vector<1x128xf32> to vector<1x1x128xf32>
      tpu.vector_store %arg9[%c0_95, %c0_96, %c0_97], %102 {strides = array<i32>} : memref<1x1x128xf32, #tpu.memory_space<vmem>>, vector<1x1x128xf32>,
    } else {
    }
    return
  }
  func.func @transform_0(%arg0: i32, %arg1: i32) -> (i32, i32, i32, i32) {
    %c4_i32 = arith.constant 4 : i32
    %0 = arith.muli %arg1, %c4_i32 : i32
    %1 = arith.addi %0, %arg0 : i32
    %c0_i32 = arith.constant 0 : i32
    %c0_i32_0 = arith.constant 0 : i32
    %c0_i32_1 = arith.constant 0 : i32
    %c0_i32_2 = arith.constant 0 : i32
    return %1, %c0_i32, %c0_i32_0, %c0_i32_1 : i32, i32, i32, i32
  }
  func.func @transform_1(%arg0: i32, %arg1: i32) -> (i32, i32, i32) {
    %c0_i32 = arith.constant 0 : i32
    %c0_i32_0 = arith.constant 0 : i32
    %c0_i32_1 = arith.constant 0 : i32
    return %arg1, %c0_i32, %c0_i32_0 : i32, i32, i32
  }
  func.func @transform_2(%arg0: i32, %arg1: i32) -> (i32, i32, i32) {
    %c0_i32 = arith.constant 0 : i32
    %c0_i32_0 = arith.constant 0 : i32
    %c0_i32_1 = arith.constant 0 : i32
    return %arg1, %c0_i32, %c0_i32_0 : i32, i32, i32
  }
  func.func @transform_3(%arg0: i32, %arg1: i32) -> (i32, i32, i32, i32) {
    %c0_i32 = arith.constant 0 : i32
    %c0_i32_0 = arith.constant 0 : i32
    %c0_i32_1 = arith.constant 0 : i32
    %c0_i32_2 = arith.constant 0 : i32
    return %arg1, %c0_i32, %c0_i32_0, %c0_i32_1 : i32, i32, i32, i32
  }
  func.func @transform_4(%arg0: i32, %arg1: i32) -> (i32, i32) {
    %c0_i32 = arith.constant 0 : i32
    %c0_i32_0 = arith.constant 0 : i32
    %c0_i32_1 = arith.constant 0 : i32
    return %c0_i32, %c0_i32_0 : i32, i32
  }
  func.func @transform_5(%arg0: i32, %arg1: i32) -> (i32, i32, i32, i32) {
    %c8_i32 = arith.constant 8 : i32
    %0 = arith.addi %c8_i32, %arg0 : i32
    %c0_i32 = arith.constant 0 : i32
    %c0_i32_0 = arith.constant 0 : i32
    %c0_i32_1 = arith.constant 0 : i32
    %c0_i32_2 = arith.constant 0 : i32
    return %0, %c0_i32, %c0_i32_0, %c0_i32_1 : i32, i32, i32, i32
  }
  func.func @transform_6(%arg0: i32, %arg1: i32) -> (i32, i32, i32) {
    %c0_i32 = arith.constant 0 : i32
    %c0_i32_0 = arith.constant 0 : i32
    %c0_i32_1 = arith.constant 0 : i32
    return %arg0, %c0_i32, %c0_i32_0 : i32, i32, i32
  }
  func.func @transform_7(%arg0: i32, %arg1: i32) -> (i32, i32, i32) {
    %c0_i32 = arith.constant 0 : i32
    %c0_i32_0 = arith.constant 0 : i32
    %c0_i32_1 = arith.constant 0 : i32
    return %arg0, %c0_i32, %c0_i32_0 : i32, i32, i32
  }
}

</mosaic_0001>

<llo_original>
// kernel: dense_block_forward.3
$region0: #{dense_block_forward.3}
  #allocation0 [shape = 'u32[]', space=smem, size = 0x4, offset = 0x4, fixed_abs, tag = 'smem constant byte address 0x4 - core index']
  #allocation1 [shape = 'u32[144,128]{1,0:T(1,128)}', space=vmem, size = 0x12000, scoped, tag = 'internal scratch']
  %s0 = inlined_call_operand.vmem [shape: f32[4,8,8,128], index: 0, kind: input, shape index: {}]
  %s1 = inlined_call_operand.vmem [shape: f32[1,128], index: 1, kind: output, shape index: {0}]
  %s2 = inlined_call_operand.vmem [shape: f32[1,128], index: 2, kind: output, shape index: {1}]
  %3 = xla_tuple %s1, %s2
  %s4 = sld [smem:[#allocation0]]
  $region49: #{dense_block_forward.3} parent=0
    _
  %s6 = ssub.s32 1, %s4
  %s7 = scalar_select 0, %s6, %s4
  loop: start=0, step=1, limit=6
  $region2: #{dense_block_forward.3} parent=0 // loop_pre_header
    _
  $region3: #{dense_block_forward.3} parent=0 // loop_header
    %s9 = sphi 0, %s13
    %p10 = scmp.ge.s32.totalorder %s9, 6
    %s19 = sphi 0, %s21
    %s22 = sphi 0, %s19
    %s23 = sphi 0, %s22
    %s39 = sphi 0, %s23
    %s43 = sphi 0, %s43
    %s45 = sphi 0, %s43
    %s46 = sphi 0, %s45
    %s60 = sphi 0, %s46
    %s64 = sphi 0, %s64
    %s66 = sphi 0, %s64
    %s67 = sphi 0, %s66
    %s81 = sphi 0, %s67
  $region4: #{dense_block_forward.3} parent=0 // loop_header_branch
    %12 = sbr.rel (%p10) target = $region8
  $region5: #{dense_block_forward.3} parent=0 // loop_body
    %s14 = ssub.s32 %s9, 1
    %s15 = ssub.s32 %s9, 2
    %s16 = sadd.s32 %s9, 1
    %s17 = ssub.s32 %s9, %s16
    %p18 = scmp.eq.s32.totalorder %s17, 0
    %s20 = sadd.s32 %s19, 1
    %s21 = scalar_select %p18, %s19, %s20
    %p24 = pneg %p18
    %p25 = scmp.eq.s32.totalorder %s9, 3
    %p26 = por %p24, %p25
    %p27 = scmp.ne.s32.totalorder %s19, %s22
    %p28 = scmp.eq.s32.totalorder %s9, 0
    %p29 = por %p27, %p28
    %p30 = scmp.ne.s32.totalorder %s19, %s22
    %p31 = scmp.eq.s32.totalorder %s14, 3
    %p32 = por %p30, %p31
    %p33 = scmp.ne.s32.totalorder %s22, %s23
    %p34 = scmp.eq.s32.totalorder %s14, 0
    %p35 = por %p33, %p34
    %p36 = scmp.ne.s32.totalorder %s22, %s23
    %p37 = scmp.eq.s32.totalorder %s15, 3
    %p38 = por %p36, %p37
    %p40 = scmp.ne.s32.totalorder %s23, %s39
    %p41 = scmp.eq.s32.totalorder %s15, 0
    %p42 = por %p40, %p41
    %s44 = sadd.s32 %s43, 1
    %p47 = scmp.eq.s32.totalorder %s9, 3
    %p48 = scmp.ne.s32.totalorder %s43, %s45
    %p49 = scmp.eq.s32.totalorder %s9, 0
    %p50 = por %p48, %p49
    %p51 = scmp.ne.s32.totalorder %s43, %s45
    %p52 = scmp.eq.s32.totalorder %s14, 3
    %p53 = por %p51, %p52
    %p54 = scmp.ne.s32.totalorder %s45, %s46
    %p55 = scmp.eq.s32.totalorder %s14, 0
    %p56 = por %p54, %p55
    %p57 = scmp.ne.s32.totalorder %s45, %s46
    %p58 = scmp.eq.s32.totalorder %s15, 3
    %p59 = por %p57, %p58
    %p61 = scmp.ne.s32.totalorder %s46, %s60
    %p62 = scmp.eq.s32.totalorder %s15, 0
    %p63 = por %p61, %p62
    %s65 = sadd.s32 %s64, 1
    %p68 = scmp.eq.s32.totalorder %s9, 3
    %p69 = scmp.ne.s32.totalorder %s64, %s66
    %p70 = scmp.eq.s32.totalorder %s9, 0
    %p71 = por %p69, %p70
    %p72 = scmp.ne.s32.totalorder %s64, %s66
    %p73 = scmp.eq.s32.totalorder %s14, 3
    %p74 = por %p72, %p73
    %p75 = scmp.ne.s32.totalorder %s66, %s67
    %p76 = scmp.eq.s32.totalorder %s14, 0
    %p77 = por %p75, %p76
    %p78 = scmp.ne.s32.totalorder %s66, %s67
    %p79 = scmp.eq.s32.totalorder %s15, 3
    %p80 = por %p78, %p79
    %p82 = scmp.ne.s32.totalorder %s67, %s81
    %p83 = scmp.eq.s32.totalorder %s15, 0
    %p84 = por %p82, %p83
    %p85 = scmp.le.s32.totalorder 1, %s9
    %p86 = scmp.lt.s32.totalorder %s9, 5
    %p87 = pnand %p85, %p86
    %p88 = pneg %p87
    // Predicated region
    $region9: #{dense_block_forward.3} parent=5 // pred_check
      _
    $region10: #{dense_block_forward.3} parent=5 // pred_check_branch
      %90 = sbr.rel (%p87) target = $region12
    $region11: #{dense_block_forward.3} parent=5 // pred_region
      %s91 = ssub.s32 %s9, 1
    $region12: #{dense_block_forward.3} parent=5 // pred_fallthru
      _
    %p92 = scmp.lt.s32.totalorder %s9, 4
    // Predicated region
    $region13: #{dense_block_forward.3} parent=5 // pred_check
      %p93 = pneg %p92
    $region14: #{dense_block_forward.3} parent=5 // pred_check_branch
      %95 = sbr.rel (%p93) target = $region16
    $region15: #{dense_block_forward.3} parent=5 // pred_region
      // Predicated region
      $region17: #{dense_block_forward.3} parent=15 // pred_check
        %p96 = pneg %p29
      $region18: #{dense_block_forward.3} parent=15 // pred_check_branch
        %98 = sbr.rel (%p96) target = $region20
      $region19: #{dense_block_forward.3} parent=15 // pred_region
        %p99 = scmp.lt.s32.totalorder %s9, 3
        %s100 = scalar_select %p99, %s9, 3
        %s101 = smul.addr %s100, 8
        %s102 = smul.addr %s101, 8
        %s103 = scalar_lea.vmem %s0, %s102
      $region20: #{dense_block_forward.3} parent=15 // pred_fallthru
        _
    $region16: #{dense_block_forward.3} parent=5 // pred_fallthru
      _
    %p104 = scmp.le.s32.totalorder 1, %s9
    %p105 = scmp.lt.s32.totalorder %s9, 5
    %p106 = pnand %p104, %p105
    %p107 = pneg %p106
    // Predicated region
    $region21: #{dense_block_forward.3} parent=5 // pred_check
      _
    $region22: #{dense_block_forward.3} parent=5 // pred_check_branch
      %109 = sbr.rel (%p106) target = $region24
    $region23: #{dense_block_forward.3} parent=5 // pred_region
      %s110 = ssub.s32 %s9, 1
      %p111 = scmp.lt.s32.totalorder %s14, 3
      %s112 = scalar_select %p111, %s14, 3
      %s113 = smul.addr %s112, 8
      %s114 = smul.addr %s113, 8
      %s115 = scalar_lea.vmem %s0, %s114
      %p116 = pneg %p35
      %p117 = pneg %p32
      %p118 = pneg %p56
      %p119 = pneg %p53
      %p120 = pneg %p77
      %p121 = pneg %p74
      %p122 = scmp.lt.s32.totalorder %s14, 3
      %s123 = scalar_select %p122, %s14, 3
      %s124 = smul.addr %s123, 8
      %s125 = smul.addr %s124, 8
      %s126 = scalar_lea.vmem %s0, %s125
      %p127 = scmp.eq.s32.totalorder %s14, 0
      // Predicated region
      $region25: #{dense_block_forward.3} parent=23 // pred_check
        %p128 = pneg %p127
      $region26: #{dense_block_forward.3} parent=23 // pred_check_branch
        %130 = sbr.rel (%p128) target = $region28
      $region27: #{dense_block_forward.3} parent=23 // pred_region
        %131 = vst [vmem:[%s1] sm:$0x1] 0.0
        %132 = vst [vmem:[%s2] sm:$0x1] 0.0
      $region28: #{dense_block_forward.3} parent=23 // pred_fallthru
        _
      %v133 = vld [vmem:[%s126] sm:$0xff]
      %v134 = vld [vmem:[%s126 + $0x8] sm:$0xff]
      %v135 = vld [vmem:[%s126 + $0x10] sm:$0xff]
      %v136 = vld [vmem:[%s126 + $0x18] sm:$0xff]
      %v137 = vld [vmem:[%s126 + $0x20] sm:$0xff]
      %v138 = vld [vmem:[%s126 + $0x28] sm:$0xff]
      %v139 = vld [vmem:[%s126 + $0x30] sm:$0xff]
      %v140 = vld [vmem:[%s126 + $0x38] sm:$0xff]
      %v141 = vld [vmem:[%s1] sm:$0x1]
      %v142 = vadd.f32 %v133, %v134
      %v143 = vadd.f32 %v142, %v135
      %v144 = vadd.f32 %v143, %v136
      %v145 = vadd.f32 %v144, %v137
      %v146 = vadd.f32 %v145, %v138
      %v147 = vadd.f32 %v146, %v139
      %v148 = vadd.f32 %v147, %v140
      %v149 = vrot.slane %v148, 4
      %v150 = vadd.f32 %v148, %v149
      %v151 = vrot.slane %v150, 2
      %v152 = vadd.f32 %v150, %v151
      %v153 = vrot.slane %v152, 1
      %v154 = vadd.f32 %v152, %v153
      %v155 = vadd.f32 %v141, %v154
      %156 = vst [vmem:[%s1] sm:$0x1] %v155
      %v157 = vld [vmem:[%s2] sm:$0x1]
      %v158 = vmul.f32 %v133, %v133
      %v159 = vmul.f32 %v134, %v134
      %v160 = vmul.f32 %v135, %v135
      %v161 = vmul.f32 %v136, %v136
      %v162 = vmul.f32 %v137, %v137
      %v163 = vmul.f32 %v138, %v138
      %v164 = vmul.f32 %v139, %v139
      %v165 = vmul.f32 %v140, %v140
      %v166 = vadd.f32 %v158, %v159
      %v167 = vadd.f32 %v166, %v160
      %v168 = vadd.f32 %v167, %v161
      %v169 = vadd.f32 %v168, %v162
      %v170 = vadd.f32 %v169, %v163
      %v171 = vadd.f32 %v170, %v164
      %v172 = vadd.f32 %v171, %v165
      %v173 = vrot.slane %v172, 4
      %v174 = vadd.f32 %v172, %v173
      %v175 = vrot.slane %v174, 2
      %v176 = vadd.f32 %v174, %v175
      %v177 = vrot.slane %v176, 1
      %v178 = vadd.f32 %v176, %v177
      %v179 = vadd.f32 %v157, %v178
      %180 = vst [vmem:[%s2] sm:$0x1] %v179
      // Predicated region
      $region29: #{dense_block_forward.3} parent=23 // pred_check
        %p181 = pneg %p53
      $region30: #{dense_block_forward.3} parent=23 // pred_check_branch
        %183 = sbr.rel (%p181) target = $region32
      $region31: #{dense_block_forward.3} parent=23 // pred_region
        _
      $region32: #{dense_block_forward.3} parent=23 // pred_fallthru
        _
      // Predicated region
      $region33: #{dense_block_forward.3} parent=23 // pred_check
        %p184 = pneg %p74
      $region34: #{dense_block_forward.3} parent=23 // pred_check_branch
        %186 = sbr.rel (%p184) target = $region36
      $region35: #{dense_block_forward.3} parent=23 // pred_region
        _
      $region36: #{dense_block_forward.3} parent=23 // pred_fallthru
        _
      // Predicated region
      $region37: #{dense_block_forward.3} parent=23 // pred_check
        %p187 = pneg %p53
      $region38: #{dense_block_forward.3} parent=23 // pred_check_branch
        %189 = sbr.rel (%p187) target = $region40
      $region39: #{dense_block_forward.3} parent=23 // pred_region
        _
      $region40: #{dense_block_forward.3} parent=23 // pred_fallthru
        _
      // Predicated region
      $region41: #{dense_block_forward.3} parent=23 // pred_check
        %p190 = pneg %p74
      $region42: #{dense_block_forward.3} parent=23 // pred_check_branch
        %192 = sbr.rel (%p190) target = $region44
      $region43: #{dense_block_forward.3} parent=23 // pred_region
        _
      $region44: #{dense_block_forward.3} parent=23 // pred_fallthru
        _
    $region24: #{dense_block_forward.3} parent=5 // pred_fallthru
      _
    %p193 = scmp.le.s32.totalorder 2, %s9
    // Predicated region
    $region45: #{dense_block_forward.3} parent=5 // pred_check
      %p194 = pneg %p193
    $region46: #{dense_block_forward.3} parent=5 // pred_check_branch
      %196 = sbr.rel (%p194) target = $region48
    $region47: #{dense_block_forward.3} parent=5 // pred_region
      %s197 = ssub.s32 %s9, 2
    $region48: #{dense_block_forward.3} parent=5 // pred_fallthru
      _
  $region6: #{dense_block_forward.3} parent=0 // loop_footer
    %s13 = sadd.s32 1, %s9
  $region7: #{dense_block_forward.3} parent=0 // loop_footer_branch
    %8 = sbr.rel target = $region3
  $region8: #{dense_block_forward.3} parent=0 // loop_exit
    _

// kernel: dense_block_forward.4
$region0: #{dense_block_forward.4}
  #allocation0 [shape = 'u32[]', space=smem, size = 0x4, offset = 0x4, fixed_abs, tag = 'smem constant byte address 0x4 - core index']
  #allocation1 [shape = 'u32[144,128]{1,0:T(1,128)}', space=vmem, size = 0x12000, scoped, tag = 'internal scratch']
  #allocation2 [shape = 'f32[10,10,128]{2,1,0:T(8,128)}', space=vmem, size = 0x14000, scoped, tag = 'scratch operand']
  #allocation3 [shape = 'f32[64,128]{1,0:T(8,128)}', space=vmem, size = 0x8000, scoped, tag = 'scratch operand']
  %s0 = inlined_call_operand.vmem [shape: f32[12,8,8,128], index: 0, kind: input, shape index: {}, may-alias: {0,5}]
  %s1 = inlined_call_operand.vmem [shape: f32[1,1,128], index: 1, kind: input, shape index: {}]
  %s2 = inlined_call_operand.vmem [shape: f32[1,1,128], index: 2, kind: input, shape index: {}]
  %s3 = inlined_call_operand.vmem [shape: bf16[1,9,128,128], index: 3, kind: input, shape index: {}]
  %s4 = inlined_call_operand.vmem [shape: f32[1,128], index: 4, kind: input, shape index: {}]
  %s5 = inlined_call_operand.vmem [shape: f32[12,8,8,128], index: 5, kind: output, shape index: {0}, may-alias: {0,5}]
  %s6 = inlined_call_operand.vmem [shape: f32[4,1,128], index: 6, kind: output, shape index: {1}]
  %s7 = inlined_call_operand.vmem [shape: f32[4,1,128], index: 7, kind: output, shape index: {2}]
  %8 = xla_tuple %s5, %s6, %s7
  %s9 = sld [smem:[#allocation0]]
  $region77: #{dense_block_forward.4} parent=0
    _
  %s11 = ssub.s32 1, %s9
  %s12 = scalar_select 0, %s11, %s9
  loop: start=0, step=1, limit=6
  $region2: #{dense_block_forward.4} parent=0 // loop_pre_header
    _
  $region3: #{dense_block_forward.4} parent=0 // loop_header
    %s14 = sphi 0, %s18
    %p15 = scmp.ge.s32.totalorder %s14, 6
    %s21 = sphi 0, %s33
    %s22 = sphi 0, %s29
    %s23 = sphi 0, %s21
    %s24 = sphi 0, %s22
    %s25 = sphi 0, %s23
    %s26 = sphi 0, %s24
    %s40 = sphi 0, %s42
    %s43 = sphi 0, %s40
    %s44 = sphi 0, %s43
    %s60 = sphi 0, %s44
    %s66 = sphi 0, %s68
    %s69 = sphi 0, %s66
    %s70 = sphi 0, %s69
    %s86 = sphi 0, %s70
    %s92 = sphi 0, %s94
    %s95 = sphi 0, %s92
    %s96 = sphi 0, %s95
    %s112 = sphi 0, %s96
    %s118 = sphi 0, %s120
    %s121 = sphi 0, %s118
    %s122 = sphi 0, %s121
    %s138 = sphi 0, %s122
    %s142 = sphi 0, %s142
    %s144 = sphi 0, %s142
    %s145 = sphi 0, %s144
    %s159 = sphi 0, %s145
    %s167 = sphi 0, %s169
    %s170 = sphi 0, %s167
    %s171 = sphi 0, %s170
    %s187 = sphi 0, %s171
    %s193 = sphi 0, %s195
    %s196 = sphi 0, %s193
    %s197 = sphi 0, %s196
    %s213 = sphi 0, %s197
    %s219 = sphi 0, %s221
    %s222 = sphi 0, %s219
    %s223 = sphi 0, %s222
    %s239 = sphi 0, %s223
  $region4: #{dense_block_forward.4} parent=0 // loop_header_branch
    %17 = sbr.rel (%p15) target = $region8
  $region5: #{dense_block_forward.4} parent=0 // loop_body
    %s19 = ssub.s32 %s14, 1
    %s20 = ssub.s32 %s14, 2
    %s27 = sadd.s32 1, %s22
    %p28 = scmp.ge.s32.totalorder %s27, 1
    %s29 = scalar_select %p28, 0, %s27
    %s30 = sadd.s32 1, %s21
    %s31 = scalar_select %p28, %s30, %s21
    %p32 = scmp.ge.s32.totalorder %s31, 4
    %s33 = scalar_select %p32, 0, %s31
    %s34 = smul.u32 %s22, 4
    %s35 = sadd.s32 %s34, %s21
    %s36 = smul.u32 %s29, 4
    %s37 = sadd.s32 %s36, %s33
    %s38 = ssub.s32 %s35, %s37
    %p39 = scmp.eq.s32.totalorder %s38, 0
    %s41 = sadd.s32 %s40, 1
    %s42 = scalar_select %p39, %s40, %s41
    %p45 = pneg %p39
    %p46 = scmp.eq.s32.totalorder %s14, 3
    %p47 = por %p45, %p46
    %p48 = scmp.ne.s32.totalorder %s40, %s43
    %p49 = scmp.eq.s32.totalorder %s14, 0
    %p50 = por %p48, %p49
    %p51 = scmp.ne.s32.totalorder %s40, %s43
    %p52 = scmp.eq.s32.totalorder %s19, 3
    %p53 = por %p51, %p52
    %p54 = scmp.ne.s32.totalorder %s43, %s44
    %p55 = scmp.eq.s32.totalorder %s19, 0
    %p56 = por %p54, %p55
    %p57 = scmp.ne.s32.totalorder %s43, %s44
    %p58 = scmp.eq.s32.totalorder %s20, 3
    %p59 = por %p57, %p58
    %p61 = scmp.ne.s32.totalorder %s44, %s60
    %p62 = scmp.eq.s32.totalorder %s20, 0
    %p63 = por %p61, %p62
    %s64 = ssub.s32 %s22, %s29
    %p65 = scmp.eq.s32.totalorder %s64, 0
    %s67 = sadd.s32 %s66, 1
    %s68 = scalar_select %p65, %s66, %s67
    %p71 = pneg %p65
    %p72 = scmp.eq.s32.totalorder %s14, 3
    %p73 = por %p71, %p72
    %p74 = scmp.ne.s32.totalorder %s66, %s69
    %p75 = scmp.eq.s32.totalorder %s14, 0
    %p76 = por %p74, %p75
    %p77 = scmp.ne.s32.totalorder %s66, %s69
    %p78 = scmp.eq.s32.totalorder %s19, 3
    %p79 = por %p77, %p78
    %p80 = scmp.ne.s32.totalorder %s69, %s70
    %p81 = scmp.eq.s32.totalorder %s19, 0
    %p82 = por %p80, %p81
    %p83 = scmp.ne.s32.totalorder %s69, %s70
    %p84 = scmp.eq.s32.totalorder %s20, 3
    %p85 = por %p83, %p84
    %p87 = scmp.ne.s32.totalorder %s70, %s86
    %p88 = scmp.eq.s32.totalorder %s20, 0
    %p89 = por %p87, %p88
    %s90 = ssub.s32 %s22, %s29
    %p91 = scmp.eq.s32.totalorder %s90, 0
    %s93 = sadd.s32 %s92, 1
    %s94 = scalar_select %p91, %s92, %s93
    %p97 = pneg %p91
    %p98 = scmp.eq.s32.totalorder %s14, 3
    %p99 = por %p97, %p98
    %p100 = scmp.ne.s32.totalorder %s92, %s95
    %p101 = scmp.eq.s32.totalorder %s14, 0
    %p102 = por %p100, %p101
    %p103 = scmp.ne.s32.totalorder %s92, %s95
    %p104 = scmp.eq.s32.totalorder %s19, 3
    %p105 = por %p103, %p104
    %p106 = scmp.ne.s32.totalorder %s95, %s96
    %p107 = scmp.eq.s32.totalorder %s19, 0
    %p108 = por %p106, %p107
    %p109 = scmp.ne.s32.totalorder %s95, %s96
    %p110 = scmp.eq.s32.totalorder %s20, 3
    %p111 = por %p109, %p110
    %p113 = scmp.ne.s32.totalorder %s96, %s112
    %p114 = scmp.eq.s32.totalorder %s20, 0
    %p115 = por %p113, %p114
    %s116 = ssub.s32 %s22, %s29
    %p117 = scmp.eq.s32.totalorder %s116, 0
    %s119 = sadd.s32 %s118, 1
    %s120 = scalar_select %p117, %s118, %s119
    %p123 = pneg %p117
    %p124 = scmp.eq.s32.totalorder %s14, 3
    %p125 = por %p123, %p124
    %p126 = scmp.ne.s32.totalorder %s118, %s121
    %p127 = scmp.eq.s32.totalorder %s14, 0
    %p128 = por %p126, %p127
    %p129 = scmp.ne.s32.totalorder %s118, %s121
    %p130 = scmp.eq.s32.totalorder %s19, 3
    %p131 = por %p129, %p130
    %p132 = scmp.ne.s32.totalorder %s121, %s122
    %p133 = scmp.eq.s32.totalorder %s19, 0
    %p134 = por %p132, %p133
    %p135 = scmp.ne.s32.totalorder %s121, %s122
    %p136 = scmp.eq.s32.totalorder %s20, 3
    %p137 = por %p135, %p136
    %p139 = scmp.ne.s32.totalorder %s122, %s138
    %p140 = scmp.eq.s32.totalorder %s20, 0
    %p141 = por %p139, %p140
    %s143 = sadd.s32 %s142, 1
    %p146 = scmp.eq.s32.totalorder %s14, 3
    %p147 = scmp.ne.s32.totalorder %s142, %s144
    %p148 = scmp.eq.s32.totalorder %s14, 0
    %p149 = por %p147, %p148
    %p150 = scmp.ne.s32.totalorder %s142, %s144
    %p151 = scmp.eq.s32.totalorder %s19, 3
    %p152 = por %p150, %p151
    %p153 = scmp.ne.s32.totalorder %s144, %s145
    %p154 = scmp.eq.s32.totalorder %s19, 0
    %p155 = por %p153, %p154
    %p156 = scmp.ne.s32.totalorder %s144, %s145
    %p157 = scmp.eq.s32.totalorder %s20, 3
    %p158 = por %p156, %p157
    %p160 = scmp.ne.s32.totalorder %s145, %s159
    %p161 = scmp.eq.s32.totalorder %s20, 0
    %p162 = por %p160, %p161
    %s163 = sadd.s32 %s21, 4
    %s164 = sadd.s32 %s33, 4
    %s165 = ssub.s32 %s163, %s164
    %p166 = scmp.eq.s32.totalorder %s165, 0
    %s168 = sadd.s32 %s167, 1
    %s169 = scalar_select %p166, %s167, %s168
    %p172 = pneg %p166
    %p173 = scmp.eq.s32.totalorder %s14, 3
    %p174 = por %p172, %p173
    %p175 = scmp.ne.s32.totalorder %s167, %s170
    %p176 = scmp.eq.s32.totalorder %s14, 0
    %p177 = por %p175, %p176
    %p178 = scmp.ne.s32.totalorder %s167, %s170
    %p179 = scmp.eq.s32.totalorder %s19, 3
    %p180 = por %p178, %p179
    %p181 = scmp.ne.s32.totalorder %s170, %s171
    %p182 = scmp.eq.s32.totalorder %s19, 0
    %p183 = por %p181, %p182
    %p184 = scmp.ne.s32.totalorder %s170, %s171
    %p185 = scmp.eq.s32.totalorder %s20, 3
    %p186 = por %p184, %p185
    %p188 = scmp.ne.s32.totalorder %s171, %s187
    %p189 = scmp.eq.s32.totalorder %s20, 0
    %p190 = por %p188, %p189
    %s191 = ssub.s32 %s21, %s33
    %p192 = scmp.eq.s32.totalorder %s191, 0
    %s194 = sadd.s32 %s193, 1
    %s195 = scalar_select %p192, %s193, %s194
    %p198 = pneg %p192
    %p199 = scmp.eq.s32.totalorder %s14, 3
    %p200 = por %p198, %p199
    %p201 = scmp.ne.s32.totalorder %s193, %s196
    %p202 = scmp.eq.s32.totalorder %s14, 0
    %p203 = por %p201, %p202
    %p204 = scmp.ne.s32.totalorder %s193, %s196
    %p205 = scmp.eq.s32.totalorder %s19, 3
    %p206 = por %p204, %p205
    %p207 = scmp.ne.s32.totalorder %s196, %s197
    %p208 = scmp.eq.s32.totalorder %s19, 0
    %p209 = por %p207, %p208
    %p210 = scmp.ne.s32.totalorder %s196, %s197
    %p211 = scmp.eq.s32.totalorder %s20, 3
    %p212 = por %p210, %p211
    %p214 = scmp.ne.s32.totalorder %s197, %s213
    %p215 = scmp.eq.s32.totalorder %s20, 0
    %p216 = por %p214, %p215
    %s217 = ssub.s32 %s21, %s33
    %p218 = scmp.eq.s32.totalorder %s217, 0
    %s220 = sadd.s32 %s219, 1
    %s221 = scalar_select %p218, %s219, %s220
    %p224 = pneg %p218
    %p225 = scmp.eq.s32.totalorder %s14, 3
    %p226 = por %p224, %p225
    %p227 = scmp.ne.s32.totalorder %s219, %s222
    %p228 = scmp.eq.s32.totalorder %s14, 0
    %p229 = por %p227, %p228
    %p230 = scmp.ne.s32.totalorder %s219, %s222
    %p231 = scmp.eq.s32.totalorder %s19, 3
    %p232 = por %p230, %p231
    %p233 = scmp.ne.s32.totalorder %s222, %s223
    %p234 = scmp.eq.s32.totalorder %s19, 0
    %p235 = por %p233, %p234
    %p236 = scmp.ne.s32.totalorder %s222, %s223
    %p237 = scmp.eq.s32.totalorder %s20, 3
    %p238 = por %p236, %p237
    %p240 = scmp.ne.s32.totalorder %s223, %s239
    %p241 = scmp.eq.s32.totalorder %s20, 0
    %p242 = por %p240, %p241
    %p243 = scmp.le.s32.totalorder 1, %s14
    %p244 = scmp.lt.s32.totalorder %s14, 5
    %p245 = pnand %p243, %p244
    %p246 = pneg %p245
    // Predicated region
    $region9: #{dense_block_forward.4} parent=5 // pred_check
      _
    $region10: #{dense_block_forward.4} parent=5 // pred_check_branch
      %248 = sbr.rel (%p245) target = $region12
    $region11: #{dense_block_forward.4} parent=5 // pred_region
      %s249 = ssub.s32 %s14, 1
      // Predicated region
      $region13: #{dense_block_forward.4} parent=11 // pred_check
        %p250 = pneg %p82
      $region14: #{dense_block_forward.4} parent=11 // pred_check_branch
        %252 = sbr.rel (%p250) target = $region16
      $region15: #{dense_block_forward.4} parent=11 // pred_region
        %p253 = scmp.lt.s32.totalorder %s24, 0
        %s254 = scalar_select %p253, %s24, 0
        %s255 = scalar_lea.vmem %s1, %s254
      $region16: #{dense_block_forward.4} parent=11 // pred_fallthru
        _
      // Predicated region
      $region17: #{dense_block_forward.4} parent=11 // pred_check
        %p256 = pneg %p108
      $region18: #{dense_block_forward.4} parent=11 // pred_check_branch
        %258 = sbr.rel (%p256) target = $region20
      $region19: #{dense_block_forward.4} parent=11 // pred_region
        %p259 = scmp.lt.s32.totalorder %s24, 0
        %s260 = scalar_select %p259, %s24, 0
        %s261 = scalar_lea.vmem %s2, %s260
      $region20: #{dense_block_forward.4} parent=11 // pred_fallthru
        _
      // Predicated region
      $region21: #{dense_block_forward.4} parent=11 // pred_check
        %p262 = pneg %p134
      $region22: #{dense_block_forward.4} parent=11 // pred_check_branch
        %264 = sbr.rel (%p262) target = $region24
      $region23: #{dense_block_forward.4} parent=11 // pred_region
        %p265 = scmp.lt.s32.totalorder %s24, 0
        %s266 = scalar_select %p265, %s24, 0
        %s267 = smul.addr %s266, 144
        %s268 = smul.addr %s267, 4
        %s269 = scalar_lea.vmem %s3, %s268
      $region24: #{dense_block_forward.4} parent=11 // pred_fallthru
        _
      // Predicated region
      $region25: #{dense_block_forward.4} parent=11 // pred_check
        %p270 = pneg %p155
      $region26: #{dense_block_forward.4} parent=11 // pred_check_branch
        %272 = sbr.rel (%p270) target = $region28
      $region27: #{dense_block_forward.4} parent=11 // pred_region
        _
      $region28: #{dense_block_forward.4} parent=11 // pred_fallthru
        _
    $region12: #{dense_block_forward.4} parent=5 // pred_fallthru
      _
    %p273 = scmp.lt.s32.totalorder %s14, 4
    // Predicated region
    $region29: #{dense_block_forward.4} parent=5 // pred_check
      %p274 = pneg %p273
    $region30: #{dense_block_forward.4} parent=5 // pred_check_branch
      %276 = sbr.rel (%p274) target = $region32
    $region31: #{dense_block_forward.4} parent=5 // pred_region
      // Predicated region
      $region33: #{dense_block_forward.4} parent=31 // pred_check
        %p277 = pneg %p50
      $region34: #{dense_block_forward.4} parent=31 // pred_check_branch
        %279 = sbr.rel (%p277) target = $region36
      $region35: #{dense_block_forward.4} parent=31 // pred_region
        %s280 = smul.u32 %s22, 4
        %s281 = sadd.s32 %s280, %s21
        %p282 = scmp.lt.s32.totalorder %s281, 11
        %s283 = scalar_select %p282, %s281, 11
        %s284 = smul.addr %s283, 8
        %s285 = smul.addr %s284, 8
        %s286 = scalar_lea.vmem %s0, %s285
        %s287 = smul.u32 %s22, 4
        %s288 = sadd.s32 %s287, %s21
      $region36: #{dense_block_forward.4} parent=31 // pred_fallthru
        _
    $region32: #{dense_block_forward.4} parent=5 // pred_fallthru
      _
    %p289 = scmp.le.s32.totalorder 1, %s14
    %p290 = scmp.lt.s32.totalorder %s14, 5
    %p291 = pnand %p289, %p290
    %p292 = pneg %p291
    // Predicated region
    $region37: #{dense_block_forward.4} parent=5 // pred_check
      _
    $region38: #{dense_block_forward.4} parent=5 // pred_check_branch
      %294 = sbr.rel (%p291) target = $region40
    $region39: #{dense_block_forward.4} parent=5 // pred_region
      %s295 = ssub.s32 %s14, 1
      %s296 = smul.u32 %s24, 4
      %s297 = sadd.s32 %s296, %s23
      %p298 = scmp.lt.s32.totalorder %s297, 11
      %s299 = scalar_select %p298, %s297, 11
      %s300 = smul.addr %s299, 8
      %s301 = smul.addr %s300, 8
      %s302 = scalar_lea.vmem %s0, %s301
      %p303 = pneg %p56
      %p304 = pneg %p53
      %p305 = scmp.lt.s32.totalorder %s24, 0
      %s306 = scalar_select %p305, %s24, 0
      %s307 = scalar_lea.vmem %s1, %s306
      %p308 = pneg %p82
      %p309 = pneg %p79
      %p310 = scmp.lt.s32.totalorder %s24, 0
      %s311 = scalar_select %p310, %s24, 0
      %s312 = scalar_lea.vmem %s2, %s311
      %p313 = pneg %p108
      %p314 = pneg %p105
      %p315 = scmp.lt.s32.totalorder %s24, 0
      %s316 = scalar_select %p315, %s24, 0
      %s317 = smul.addr %s316, 144
      %s318 = smul.addr %s317, 4
      %s319 = scalar_lea.vmem %s3, %s318
      %p320 = pneg %p134
      %p321 = pneg %p131
      %p322 = pneg %p155
      %p323 = pneg %p152
      %p324 = pneg %p183
      %p325 = pneg %p180
      %s326 = sadd.s32 %s23, 4
      %p327 = scmp.lt.s32.totalorder %s326, 11
      %s328 = scalar_select %p327, %s326, 11
      %s329 = smul.addr %s328, 8
      %s330 = smul.addr %s329, 8
      %s331 = scalar_lea.vmem %s5, %s330
      %p332 = pneg %p209
      %p333 = pneg %p206
      %p334 = scmp.lt.s32.totalorder %s23, 3
      %s335 = scalar_select %p334, %s23, 3
      %s336 = scalar_lea.vmem %s6, %s335
      %p337 = pneg %p235
      %p338 = pneg %p232
      %p339 = scmp.lt.s32.totalorder %s23, 3
      %s340 = scalar_select %p339, %s23, 3
      %s341 = scalar_lea.vmem %s7, %s340
      %s342 = smul.u32 %s24, 4
      %s343 = sadd.s32 %s342, %s23
      %p344 = scmp.lt.s32.totalorder %s343, 11
      %s345 = scalar_select %p344, %s343, 11
      %s346 = smul.addr %s345, 8
      %s347 = smul.addr %s346, 8
      %s348 = scalar_lea.vmem %s0, %s347
      %s349 = smul.u32 %s24, 4
      %s350 = sadd.s32 %s349, %s23
      %p351 = scmp.lt.s32.totalorder %s24, 0
      %s352 = scalar_select %p351, %s24, 0
      %s353 = scalar_lea.vmem %s1, %s352
      %p354 = scmp.lt.s32.totalorder %s24, 0
      %s355 = scalar_select %p354, %s24, 0
      %s356 = scalar_lea.vmem %s2, %s355
      %p357 = scmp.lt.s32.totalorder %s24, 0
      %s358 = scalar_select %p357, %s24, 0
      %s359 = smul.addr %s358, 144
      %s360 = smul.addr %s359, 4
      %s361 = scalar_lea.vmem %s3, %s360
      %s362 = sadd.s32 %s23, 4
      %p363 = scmp.lt.s32.totalorder %s362, 11
      %s364 = scalar_select %p363, %s362, 11
      %s365 = smul.addr %s364, 8
      %s366 = smul.addr %s365, 8
      %s367 = scalar_lea.vmem %s5, %s366
      %s368 = sadd.s32 %s23, 4
      %p369 = scmp.lt.s32.totalorder %s23, 3
      %s370 = scalar_select %p369, %s23, 3
      %s371 = scalar_lea.vmem %s6, %s370
      %p372 = scmp.lt.s32.totalorder %s23, 3
      %s373 = scalar_select %p372, %s23, 3
      %s374 = scalar_lea.vmem %s7, %s373
      %p376 = scmp.eq.s32.totalorder %s24, 0
      // Predicated region
      $region41: #{dense_block_forward.4} parent=39 // pred_check
        %p377 = pneg %p376
      $region42: #{dense_block_forward.4} parent=39 // pred_check_branch
        %379 = sbr.rel (%p377) target = $region44
      $region43: #{dense_block_forward.4} parent=39 // pred_region
        %v380 = vld [vmem:[%s4] sm:$0x1]
        %v382 = vlaneseq
        %v383 = vshrl.u32 %v382, 7
        %v384 = vsub.s32 0, %v383
        %v385 = vrot.slane %v380, %v384
        %387 = vst [vmem:[#allocation3] sm:$0xff] %v385
        %388 = vst [vmem:[#allocation3 + $0x8] sm:$0xff] %v385
        %389 = vst [vmem:[#allocation3 + $0x10] sm:$0xff] %v385
        %390 = vst [vmem:[#allocation3 + $0x18] sm:$0xff] %v385
        %391 = vst [vmem:[#allocation3 + $0x20] sm:$0xff] %v385
        %392 = vst [vmem:[#allocation3 + $0x28] sm:$0xff] %v385
        %393 = vst [vmem:[#allocation3 + $0x30] sm:$0xff] %v385
        %394 = vst [vmem:[#allocation3 + $0x38] sm:$0xff] %v385
      $region44: #{dense_block_forward.4} parent=39 // pred_fallthru
        _
      %v395 = vld [vmem:[%s348] sm:$0xff]
      %v396 = vld [vmem:[%s348 + $0x8] sm:$0xff]
      %v397 = vld [vmem:[%s348 + $0x10] sm:$0xff]
      %v398 = vld [vmem:[%s348 + $0x18] sm:$0xff]
      %v399 = vld [vmem:[%s348 + $0x20] sm:$0xff]
      %v400 = vld [vmem:[%s348 + $0x28] sm:$0xff]
      %v401 = vld [vmem:[%s348 + $0x30] sm:$0xff]
      %v402 = vld [vmem:[%s348 + $0x38] sm:$0xff]
      %v403 = vld [vmem:[%s353] sm:$0x1]
      %v405 = vlaneseq
      %v406 = vshrl.u32 %v405, 7
      %v407 = vsub.s32 0, %v406
      %v408 = vrot.slane %v403, %v407
      %v410 = vmul.f32 %v395, %v408
      %v411 = vmul.f32 %v396, %v408
      %v412 = vmul.f32 %v397, %v408
      %v413 = vmul.f32 %v398, %v408
      %v414 = vmul.f32 %v399, %v408
      %v415 = vmul.f32 %v400, %v408
      %v416 = vmul.f32 %v401, %v408
      %v417 = vmul.f32 %v402, %v408
      %v418 = vld [vmem:[%s356] sm:$0x1]
      %v420 = vlaneseq
      %v421 = vshrl.u32 %v420, 7
      %v422 = vsub.s32 0, %v421
      %v423 = vrot.slane %v418, %v422
      %v425 = vadd.f32 %v410, %v423
      %v426 = vadd.f32 %v411, %v423
      %v427 = vadd.f32 %v412, %v423
      %v428 = vadd.f32 %v413, %v423
      %v429 = vadd.f32 %v414, %v423
      %v430 = vadd.f32 %v415, %v423
      %v431 = vadd.f32 %v416, %v423
      %v432 = vadd.f32 %v417, %v423
      %v433 = vmax.f32 %v425, 0.0
      %v434 = vmax.f32 %v426, 0.0
      %v435 = vmax.f32 %v427, 0.0
      %v436 = vmax.f32 %v428, 0.0
      %v437 = vmax.f32 %v429, 0.0
      %v438 = vmax.f32 %v430, 0.0
      %v439 = vmax.f32 %v431, 0.0
      %v440 = vmax.f32 %v432, 0.0
      %441 = vst [vmem:[#allocation2] sm:$0xff] 0.0
      %442 = vst [vmem:[#allocation2 + $0x8] sm:$0x3] 0.0
      %443 = vst [vmem:[#allocation2 + $0x10] sm:$0xff] 0.0
      %444 = vst [vmem:[#allocation2 + $0x18] sm:$0x3] 0.0
      %445 = vst [vmem:[#allocation2 + $0x20] sm:$0xff] 0.0
      %446 = vst [vmem:[#allocation2 + $0x28] sm:$0x3] 0.0
      %447 = vst [vmem:[#allocation2 + $0x30] sm:$0xff] 0.0
      %448 = vst [vmem:[#allocation2 + $0x38] sm:$0x3] 0.0
      %449 = vst [vmem:[#allocation2 + $0x40] sm:$0xff] 0.0
      %450 = vst [vmem:[#allocation2 + $0x48] sm:$0x3] 0.0
      %451 = vst [vmem:[#allocation2 + $0x50] sm:$0xff] 0.0
      %452 = vst [vmem:[#allocation2 + $0x58] sm:$0x3] 0.0
      %453 = vst [vmem:[#allocation2 + $0x60] sm:$0xff] 0.0
      %454 = vst [vmem:[#allocation2 + $0x68] sm:$0x3] 0.0
      %455 = vst [vmem:[#allocation2 + $0x70] sm:$0xff] 0.0
      %456 = vst [vmem:[#allocation2 + $0x78] sm:$0x3] 0.0
      %457 = vst [vmem:[#allocation2 + $0x80] sm:$0xff] 0.0
      %458 = vst [vmem:[#allocation2 + $0x88] sm:$0x3] 0.0
      %459 = vst [vmem:[#allocation2 + $0x90] sm:$0xff] 0.0
      %460 = vst [vmem:[#allocation2 + $0x98] sm:$0x3] 0.0
      %s461 = scalar_lea.vmem [#allocation2], 16
      %462 = vst [vmem:[%s461 + $0x1] sm:$0xff] %v433
      %463 = vst [vmem:[%s461 + $0x11] sm:$0xff] %v434
      %464 = vst [vmem:[%s461 + $0x21] sm:$0xff] %v435
      %465 = vst [vmem:[%s461 + $0x31] sm:$0xff] %v436
      %466 = vst [vmem:[%s461 + $0x41] sm:$0xff] %v437
      %467 = vst [vmem:[%s461 + $0x51] sm:$0xff] %v438
      %468 = vst [vmem:[%s461 + $0x61] sm:$0xff] %v439
      %469 = vst [vmem:[%s461 + $0x71] sm:$0xff] %v440
      %v470 = vld [vmem:[#allocation3] sm:$0xff]
      %v471 = vld [vmem:[#allocation3 + $0x8] sm:$0xff]
      %v472 = vld [vmem:[#allocation3 + $0x10] sm:$0xff]
      %v473 = vld [vmem:[#allocation3 + $0x18] sm:$0xff]
      %v474 = vld [vmem:[#allocation3 + $0x20] sm:$0xff]
      %v475 = vld [vmem:[#allocation3 + $0x28] sm:$0xff]
      %v476 = vld [vmem:[#allocation3 + $0x30] sm:$0xff]
      %v477 = vld [vmem:[#allocation3 + $0x38] sm:$0xff]
      %v478 = vld [vmem:[#allocation2] sm:$0xff]
      %v479 = vld [vmem:[#allocation2 + $0x10] sm:$0xff]
      %v480 = vld [vmem:[#allocation2 + $0x20] sm:$0xff]
      %v481 = vld [vmem:[#allocation2 + $0x30] sm:$0xff]
      %v482 = vld [vmem:[#allocation2 + $0x40] sm:$0xff]
      %v483 = vld [vmem:[#allocation2 + $0x50] sm:$0xff]
      %v484 = vld [vmem:[#allocation2 + $0x60] sm:$0xff]
      %v485 = vld [vmem:[#allocation2 + $0x70] sm:$0xff]
      %v486 = vpack.c.bf16 %v479, %v478
      %v487 = vpack.c.bf16 %v481, %v480
      %v488 = vpack.c.bf16 %v483, %v482
      %v489 = vpack.c.bf16 %v485, %v484
      %v490 = vld [vmem:[%s361] sm:$0xf]
      %v491 = vld [vmem:[%s361 + $0x4] sm:$0xf]
      %v492 = vld [vmem:[%s361 + $0x8] sm:$0xf]
      %v493 = vld [vmem:[%s361 + $0xc] sm:$0xf]
      %v494 = vld [vmem:[%s361 + $0x10] sm:$0xf]
      %v495 = vld [vmem:[%s361 + $0x14] sm:$0xf]
      %v496 = vld [vmem:[%s361 + $0x18] sm:$0xf]
      %v497 = vld [vmem:[%s361 + $0x1c] sm:$0xf]
      %v498 = vld [vmem:[%s361 + $0x20] sm:$0xf]
      %v499 = vld [vmem:[%s361 + $0x24] sm:$0xf]
      %v500 = vld [vmem:[%s361 + $0x28] sm:$0xf]
      %v501 = vld [vmem:[%s361 + $0x2c] sm:$0xf]
      %v502 = vld [vmem:[%s361 + $0x30] sm:$0xf]
      %v503 = vld [vmem:[%s361 + $0x34] sm:$0xf]
      %v504 = vld [vmem:[%s361 + $0x38] sm:$0xf]
      %v505 = vld [vmem:[%s361 + $0x3c] sm:$0xf]
      %v522 = vunpack.c.l.b16 %v490
      %v523 = vunpack.c.l.b16 %v491
      %v524 = vunpack.c.l.b16 %v492
      %v525 = vunpack.c.l.b16 %v493
      %v526 = vunpack.c.l.b16 %v494
      %v527 = vunpack.c.l.b16 %v495
      %v528 = vunpack.c.l.b16 %v496
      %v529 = vunpack.c.l.b16 %v497
      %v530 = vunpack.c.l.b16 %v498
      %v531 = vunpack.c.l.b16 %v499
      %v532 = vunpack.c.l.b16 %v500
      %v533 = vunpack.c.l.b16 %v501
      %v534 = vunpack.c.l.b16 %v502
      %v535 = vunpack.c.l.b16 %v503
      %v536 = vunpack.c.l.b16 %v504
      %v537 = vunpack.c.l.b16 %v505
      %v538 = vpack.c.b16 %v523, %v522
      %v539 = vpack.c.b16 %v525, %v524
      %v540 = vpack.c.b16 %v527, %v526
      %v541 = vpack.c.b16 %v529, %v528
      %v542 = vpack.c.b16 %v531, %v530
      %v543 = vpack.c.b16 %v533, %v532
      %v544 = vpack.c.b16 %v535, %v534
      %v545 = vpack.c.b16 %v537, %v536
      %554 = vmatprep.subr.bf16.mxu0 0
      %555 = vmatpush1.bf16.msra.mxu0 %v538
      %556 = vmatprep.subr.bf16.mxu0 0
      %557 = vmatpush1.bf16.msra.mxu0 %v539
      %558 = vmatprep.subr.bf16.mxu0 0
      %559 = vmatpush1.bf16.msra.mxu0 %v540
      %560 = vmatprep.subr.bf16.mxu0 0
      %561 = vmatpush1.bf16.msra.mxu0 %v541
      %562 = vmatprep.subr.bf16.mxu0 0
      %563 = vmatpush1.bf16.msra.mxu0 %v542
      %564 = vmatprep.subr.bf16.mxu0 0
      %565 = vmatpush1.bf16.msra.mxu0 %v543
      %566 = vmatprep.subr.bf16.mxu0 0
      %567 = vmatpush1.bf16.msra.mxu0 %v544
      %568 = vmatprep.subr.bf16.mxu0 0
      %569 = vmatpush1.bf16.msra.mxu0 %v545
      %570 = vmatprep.subr.bf16.mxu0 0
      %571 = vmatpush1.bf16.msra.mxu0 0
      %572 = vmatprep.subr.bf16.mxu0 0
      %573 = vmatpush1.bf16.msra.mxu0 0
      %574 = vmatprep.subr.bf16.mxu0 0
      %575 = vmatpush1.bf16.msra.mxu0 0
      %576 = vmatprep.subr.bf16.mxu0 0
      %577 = vmatpush1.bf16.msra.mxu0 0
      %578 = vmatprep.subr.bf16.mxu0 0
      %579 = vmatpush1.bf16.msra.mxu0 0
      %580 = vmatprep.subr.bf16.mxu0 0
      %581 = vmatpush1.bf16.msra.mxu0 0
      %582 = vmatprep.subr.bf16.mxu0 0
      %583 = vmatpush1.bf16.msra.mxu0 0
      %584 = vmatprep.subr.bf16.mxu0 0
      %585 = vmatpush1.bf16.msra.mxu0 0
      %586 = vmatprep.mubr.bf16.mxu0 0
      %587 = vmatmul.mubr.bf16.gmra.mrb[0].mxu0 %v486
      %v588 = vpop.f32.mrb[0].mxu0
      %v589 = vadd.f32 0.0, %v588
      %v590 = vpop.f32.mrb[0].mxu0
      %v591 = vpop.f32.mrb[0].mxu0
      %v592 = vadd.f32 0.0, %v591
      %v593 = vpop.f32.mrb[0].mxu0
      %594 = vmatprep.mubr.bf16.mxu0 0
      %595 = vmatmul.mubr.bf16.gmra.mrb[0].mxu0 %v487
      %v596 = vpop.f32.mrb[0].mxu0
      %v597 = vadd.f32 0.0, %v596
      %v598 = vpop.f32.mrb[0].mxu0
      %v599 = vpop.f32.mrb[0].mxu0
      %v600 = vadd.f32 0.0, %v599
      %v601 = vpop.f32.mrb[0].mxu0
      %602 = vmatprep.mubr.bf16.mxu0 0
      %603 = vmatmul.mubr.bf16.gmra.mrb[0].mxu0 %v488
      %v604 = vpop.f32.mrb[0].mxu0
      %v605 = vadd.f32 0.0, %v604
      %v606 = vpop.f32.mrb[0].mxu0
      %v607 = vpop.f32.mrb[0].mxu0
      %v608 = vadd.f32 0.0, %v607
      %v609 = vpop.f32.mrb[0].mxu0
      %610 = vmatprep.mubr.bf16.mxu0 0
      %611 = vmatmul.mubr.bf16.gmra.mrb[0].mxu0 %v489
      %v612 = vpop.f32.mrb[0].mxu0
      %v613 = vadd.f32 0.0, %v612
      %v614 = vpop.f32.mrb[0].mxu0
      %v615 = vpop.f32.mrb[0].mxu0
      %v616 = vadd.f32 0.0, %v615
      %v617 = vpop.f32.mrb[0].mxu0
      %618 = vdwg.mxu0
      %v619 = vadd.f32 %v470, %v589
      %v620 = vadd.f32 %v471, %v592
      %v621 = vadd.f32 %v472, %v597
      %v622 = vadd.f32 %v473, %v600
      %v623 = vadd.f32 %v474, %v605
      %v624 = vadd.f32 %v475, %v608
      %v625 = vadd.f32 %v476, %v613
      %v626 = vadd.f32 %v477, %v616
      %v627 = vld [vmem:[#allocation2 + $0x1] sm:$0xff]
      %v628 = vld [vmem:[#allocation2 + $0x11] sm:$0xff]
      %v629 = vld [vmem:[#allocation2 + $0x21] sm:$0xff]
      %v630 = vld [vmem:[#allocation2 + $0x31] sm:$0xff]
      %v631 = vld [vmem:[#allocation2 + $0x41] sm:$0xff]
      %v632 = vld [vmem:[#allocation2 + $0x51] sm:$0xff]
      %v633 = vld [vmem:[#allocation2 + $0x61] sm:$0xff]
      %v634 = vld [vmem:[#allocation2 + $0x71] sm:$0xff]
      %v635 = vpack.c.bf16 %v628, %v627
      %v636 = vpack.c.bf16 %v630, %v629
      %v637 = vpack.c.bf16 %v632, %v631
      %v638 = vpack.c.bf16 %v634, %v633
      %s639 = scalar_lea.vmem %s361, 64
      %v640 = vld [vmem:[%s639] sm:$0xf]
      %v641 = vld [vmem:[%s639 + $0x4] sm:$0xf]
      %v642 = vld [vmem:[%s639 + $0x8] sm:$0xf]
      %v643 = vld [vmem:[%s639 + $0xc] sm:$0xf]
      %v644 = vld [vmem:[%s639 + $0x10] sm:$0xf]
      %v645 = vld [vmem:[%s639 + $0x14] sm:$0xf]
      %v646 = vld [vmem:[%s639 + $0x18] sm:$0xf]
      %v647 = vld [vmem:[%s639 + $0x1c] sm:$0xf]
      %v648 = vld [vmem:[%s639 + $0x20] sm:$0xf]
      %v649 = vld [vmem:[%s639 + $0x24] sm:$0xf]
      %v650 = vld [vmem:[%s639 + $0x28] sm:$0xf]
      %v651 = vld [vmem:[%s639 + $0x2c] sm:$0xf]
      %v652 = vld [vmem:[%s639 + $0x30] sm:$0xf]
      %v653 = vld [vmem:[%s639 + $0x34] sm:$0xf]
      %v654 = vld [vmem:[%s639 + $0x38] sm:$0xf]
      %v655 = vld [vmem:[%s639 + $0x3c] sm:$0xf]
      %v672 = vunpack.c.l.b16 %v640
      %v673 = vunpack.c.l.b16 %v641
      %v674 = vunpack.c.l.b16 %v642
      %v675 = vunpack.c.l.b16 %v643
      %v676 = vunpack.c.l.b16 %v644
      %v677 = vunpack.c.l.b16 %v645
      %v678 = vunpack.c.l.b16 %v646
      %v679 = vunpack.c.l.b16 %v647
      %v680 = vunpack.c.l.b16 %v648
      %v681 = vunpack.c.l.b16 %v649
      %v682 = vunpack.c.l.b16 %v650
      %v683 = vunpack.c.l.b16 %v651
      %v684 = vunpack.c.l.b16 %v652
      %v685 = vunpack.c.l.b16 %v653
      %v686 = vunpack.c.l.b16 %v654
      %v687 = vunpack.c.l.b16 %v655
      %v688 = vpack.c.b16 %v673, %v672
      %v689 = vpack.c.b16 %v675, %v674
      %v690 = vpack.c.b16 %v677, %v676
      %v691 = vpack.c.b16 %v679, %v678
      %v692 = vpack.c.b16 %v681, %v680
      %v693 = vpack.c.b16 %v683, %v682
      %v694 = vpack.c.b16 %v685, %v684
      %v695 = vpack.c.b16 %v687, %v686
      %704 = vmatprep.subr.bf16.mxu0 0
      %705 = vmatpush1.bf16.msra.mxu0 %v688
      %706 = vmatprep.subr.bf16.mxu0 0
      %707 = vmatpush1.bf16.msra.mxu0 %v689
      %708 = vmatprep.subr.bf16.mxu0 0
      %709 = vmatpush1.bf16.msra.mxu0 %v690
      %710 = vmatprep.subr.bf16.mxu0 0
      %711 = vmatpush1.bf16.msra.mxu0 %v691
      %712 = vmatprep.subr.bf16.mxu0 0
      %713 = vmatpush1.bf16.msra.mxu0 %v692
      %714 = vmatprep.subr.bf16.mxu0 0
      %715 = vmatpush1.bf16.msra.mxu0 %v693
      %716 = vmatprep.subr.bf16.mxu0 0
      %717 = vmatpush1.bf16.msra.mxu0 %v694
      %718 = vmatprep.subr.bf16.mxu0 0
      %719 = vmatpush1.bf16.msra.mxu0 %v695
      %720 = vmatprep.subr.bf16.mxu0 0
      %721 = vmatpush1.bf16.msra.mxu0 0
      %722 = vmatprep.subr.bf16.mxu0 0
      %723 = vmatpush1.bf16.msra.mxu0 0
      %724 = vmatprep.subr.bf16.mxu0 0
      %725 = vmatpush1.bf16.msra.mxu0 0
      %726 = vmatprep.subr.bf16.mxu0 0
      %727 = vmatpush1.bf16.msra.mxu0 0
      %728 = vmatprep.subr.bf16.mxu0 0
      %729 = vmatpush1.bf16.msra.mxu0 0
      %730 = vmatprep.subr.bf16.mxu0 0
      %731 = vmatpush1.bf16.msra.mxu0 0
      %732 = vmatprep.subr.bf16.mxu0 0
      %733 = vmatpush1.bf16.msra.mxu0 0
      %734 = vmatprep.subr.bf16.mxu0 0
      %735 = vmatpush1.bf16.msra.mxu0 0
      %736 = vmatprep.mubr.bf16.mxu0 0
      %737 = vmatmul.mubr.bf16.gmra.mrb[0].mxu0 %v635
      %v738 = vpop.f32.mrb[0].mxu0
      %v739 = vadd.f32 0.0, %v738
      %v740 = vpop.f32.mrb[0].mxu0
      %v741 = vpop.f32.mrb[0].mxu0
      %v742 = vadd.f32 0.0, %v741
      %v743 = vpop.f32.mrb[0].mxu0
      %744 = vmatprep.mubr.bf16.mxu0 0
      %745 = vmatmul.mubr.bf16.gmra.mrb[0].mxu0 %v636
      %v746 = vpop.f32.mrb[0].mxu0
      %v747 = vadd.f32 0.0, %v746
      %v748 = vpop.f32.mrb[0].mxu0
      %v749 = vpop.f32.mrb[0].mxu0
      %v750 = vadd.f32 0.0, %v749
      %v751 = vpop.f32.mrb[0].mxu0
      %752 = vmatprep.mubr.bf16.mxu0 0
      %753 = vmatmul.mubr.bf16.gmra.mrb[0].mxu0 %v637
      %v754 = vpop.f32.mrb[0].mxu0
      %v755 = vadd.f32 0.0, %v754
      %v756 = vpop.f32.mrb[0].mxu0
      %v757 = vpop.f32.mrb[0].mxu0
      %v758 = vadd.f32 0.0, %v757
      %v759 = vpop.f32.mrb[0].mxu0
      %760 = vmatprep.mubr.bf16.mxu0 0
      %761 = vmatmul.mubr.bf16.gmra.mrb[0].mxu0 %v638
      %v762 = vpop.f32.mrb[0].mxu0
      %v763 = vadd.f32 0.0, %v762
      %v764 = vpop.f32.mrb[0].mxu0
      %v765 = vpop.f32.mrb[0].mxu0
      %v766 = vadd.f32 0.0, %v765
      %v767 = vpop.f32.mrb[0].mxu0
      %768 = vdwg.mxu0
      %v769 = vadd.f32 %v619, %v739
      %v770 = vadd.f32 %v620, %v742
      %v771 = vadd.f32 %v621, %v747
      %v772 = vadd.f32 %v622, %v750
      %v773 = vadd.f32 %v623, %v755
      %v774 = vadd.f32 %v624, %v758
      %v775 = vadd.f32 %v625, %v763
      %v776 = vadd.f32 %v626, %v766
      %v777 = vld [vmem:[#allocation2 + $0x2] sm:$0xff]
      %v778 = vld [vmem:[#allocation2 + $0x12] sm:$0xff]
      %v779 = vld [vmem:[#allocation2 + $0x22] sm:$0xff]
      %v780 = vld [vmem:[#allocation2 + $0x32] sm:$0xff]
      %v781 = vld [vmem:[#allocation2 + $0x42] sm:$0xff]
      %v782 = vld [vmem:[#allocation2 + $0x52] sm:$0xff]
      %v783 = vld [vmem:[#allocation2 + $0x62] sm:$0xff]
      %v784 = vld [vmem:[#allocation2 + $0x72] sm:$0xff]
      %v785 = vpack.c.bf16 %v778, %v777
      %v786 = vpack.c.bf16 %v780, %v779
      %v787 = vpack.c.bf16 %v782, %v781
      %v788 = vpack.c.bf16 %v784, %v783
      %s789 = scalar_lea.vmem %s361, 128
      %v790 = vld [vmem:[%s789] sm:$0xf]
      %v791 = vld [vmem:[%s789 + $0x4] sm:$0xf]
      %v792 = vld [vmem:[%s789 + $0x8] sm:$0xf]
      %v793 = vld [vmem:[%s789 + $0xc] sm:$0xf]
      %v794 = vld [vmem:[%s789 + $0x10] sm:$0xf]
      %v795 = vld [vmem:[%s789 + $0x14] sm:$0xf]
      %v796 = vld [vmem:[%s789 + $0x18] sm:$0xf]
      %v797 = vld [vmem:[%s789 + $0x1c] sm:$0xf]
      %v798 = vld [vmem:[%s789 + $0x20] sm:$0xf]
      %v799 = vld [vmem:[%s789 + $0x24] sm:$0xf]
      %v800 = vld [vmem:[%s789 + $0x28] sm:$0xf]
      %v801 = vld [vmem:[%s789 + $0x2c] sm:$0xf]
      %v802 = vld [vmem:[%s789 + $0x30] sm:$0xf]
      %v803 = vld [vmem:[%s789 + $0x34] sm:$0xf]
      %v804 = vld [vmem:[%s789 + $0x38] sm:$0xf]
      %v805 = vld [vmem:[%s789 + $0x3c] sm:$0xf]
      %v822 = vunpack.c.l.b16 %v790
      %v823 = vunpack.c.l.b16 %v791
      %v824 = vunpack.c.l.b16 %v792
      %v825 = vunpack.c.l.b16 %v793
      %v826 = vunpack.c.l.b16 %v794
      %v827 = vunpack.c.l.b16 %v795
      %v828 = vunpack.c.l.b16 %v796
      %v829 = vunpack.c.l.b16 %v797
      %v830 = vunpack.c.l.b16 %v798
      %v831 = vunpack.c.l.b16 %v799
      %v832 = vunpack.c.l.b16 %v800
      %v833 = vunpack.c.l.b16 %v801
      %v834 = vunpack.c.l.b16 %v802
      %v835 = vunpack.c.l.b16 %v803
      %v836 = vunpack.c.l.b16 %v804
      %v837 = vunpack.c.l.b16 %v805
      %v838 = vpack.c.b16 %v823, %v822
      %v839 = vpack.c.b16 %v825, %v824
      %v840 = vpack.c.b16 %v827, %v826
      %v841 = vpack.c.b16 %v829, %v828
      %v842 = vpack.c.b16 %v831, %v830
      %v843 = vpack.c.b16 %v833, %v832
      %v844 = vpack.c.b16 %v835, %v834
      %v845 = vpack.c.b16 %v837, %v836
      %854 = vmatprep.subr.bf16.mxu0 0
      %855 = vmatpush1.bf16.msra.mxu0 %v838
      %856 = vmatprep.subr.bf16.mxu0 0
      %857 = vmatpush1.bf16.msra.mxu0 %v839
      %858 = vmatprep.subr.bf16.mxu0 0
      %859 = vmatpush1.bf16.msra.mxu0 %v840
      %860 = vmatprep.subr.bf16.mxu0 0
      %861 = vmatpush1.bf16.msra.mxu0 %v841
      %862 = vmatprep.subr.bf16.mxu0 0
      %863 = vmatpush1.bf16.msra.mxu0 %v842
      %864 = vmatprep.subr.bf16.mxu0 0
      %865 = vmatpush1.bf16.msra.mxu0 %v843
      %866 = vmatprep.subr.bf16.mxu0 0
      %867 = vmatpush1.bf16.msra.mxu0 %v844
      %868 = vmatprep.subr.bf16.mxu0 0
      %869 = vmatpush1.bf16.msra.mxu0 %v845
      %870 = vmatprep.subr.bf16.mxu0 0
      %871 = vmatpush1.bf16.msra.mxu0 0
      %872 = vmatprep.subr.bf16.mxu0 0
      %873 = vmatpush1.bf16.msra.mxu0 0
      %874 = vmatprep.subr.bf16.mxu0 0
      %875 = vmatpush1.bf16.msra.mxu0 0
      %876 = vmatprep.subr.bf16.mxu0 0
      %877 = vmatpush1.bf16.msra.mxu0 0
      %878 = vmatprep.subr.bf16.mxu0 0
      %879 = vmatpush1.bf16.msra.mxu0 0
      %880 = vmatprep.subr.bf16.mxu0 0
      %881 = vmatpush1.bf16.msra.mxu0 0
      %882 = vmatprep.subr.bf16.mxu0 0
      %883 = vmatpush1.bf16.msra.mxu0 0
      %884 = vmatprep.subr.bf16.mxu0 0
      %885 = vmatpush1.bf16.msra.mxu0 0
      %886 = vmatprep.mubr.bf16.mxu0 0
      %887 = vmatmul.mubr.bf16.gmra.mrb[0].mxu0 %v785
      %v888 = vpop.f32.mrb[0].mxu0
      %v889 = vadd.f32 0.0, %v888
      %v890 = vpop.f32.mrb[0].mxu0
      %v891 = vpop.f32.mrb[0].mxu0
      %v892 = vadd.f32 0.0, %v891
      %v893 = vpop.f32.mrb[0].mxu0
      %894 = vmatprep.mubr.bf16.mxu0 0
      %895 = vmatmul.mubr.bf16.gmra.mrb[0].mxu0 %v786
      %v896 = vpop.f32.mrb[0].mxu0
      %v897 = vadd.f32 0.0, %v896
      %v898 = vpop.f32.mrb[0].mxu0
      %v899 = vpop.f32.mrb[0].mxu0
      %v900 = vadd.f32 0.0, %v899
      %v901 = vpop.f32.mrb[0].mxu0
      %902 = vmatprep.mubr.bf16.mxu0 0
      %903 = vmatmul.mubr.bf16.gmra.mrb[0].mxu0 %v787
      %v904 = vpop.f32.mrb[0].mxu0
      %v905 = vadd.f32 0.0, %v904
      %v906 = vpop.f32.mrb[0].mxu0
      %v907 = vpop.f32.mrb[0].mxu0
      %v908 = vadd.f32 0.0, %v907
      %v909 = vpop.f32.mrb[0].mxu0
      %910 = vmatprep.mubr.bf16.mxu0 0
      %911 = vmatmul.mubr.bf16.gmra.mrb[0].mxu0 %v788
      %v912 = vpop.f32.mrb[0].mxu0
      %v913 = vadd.f32 0.0, %v912
      %v914 = vpop.f32.mrb[0].mxu0
      %v915 = vpop.f32.mrb[0].mxu0
      %v916 = vadd.f32 0.0, %v915
      %v917 = vpop.f32.mrb[0].mxu0
      %918 = vdwg.mxu0
      %v919 = vadd.f32 %v769, %v889
      %v920 = vadd.f32 %v770, %v892
      %v921 = vadd.f32 %v771, %v897
      %v922 = vadd.f32 %v772, %v900
      %v923 = vadd.f32 %v773, %v905
      %v924 = vadd.f32 %v774, %v908
      %v925 = vadd.f32 %v775, %v913
      %v926 = vadd.f32 %v776, %v916
      %v927 = vld [vmem:[%s461] sm:$0xff]
      %v928 = vld [vmem:[%s461 + $0x10] sm:$0xff]
      %v929 = vld [vmem:[%s461 + $0x20] sm:$0xff]
      %v930 = vld [vmem:[%s461 + $0x30] sm:$0xff]
      %v931 = vld [vmem:[%s461 + $0x40] sm:$0xff]
      %v932 = vld [vmem:[%s461 + $0x50] sm:$0xff]
      %v933 = vld [vmem:[%s461 + $0x60] sm:$0xff]
      %v934 = vld [vmem:[%s461 + $0x70] sm:$0xff]
      %v935 = vpack.c.bf16 %v928, %v927
      %v936 = vpack.c.bf16 %v930, %v929
      %v937 = vpack.c.bf16 %v932, %v931
      %v938 = vpack.c.bf16 %v934, %v933
      %s939 = scalar_lea.vmem %s361, 192
      %v940 = vld [vmem:[%s939] sm:$0xf]
      %v941 = vld [vmem:[%s939 + $0x4] sm:$0xf]
      %v942 = vld [vmem:[%s939 + $0x8] sm:$0xf]
      %v943 = vld [vmem:[%s939 + $0xc] sm:$0xf]
      %v944 = vld [vmem:[%s939 + $0x10] sm:$0xf]
      %v945 = vld [vmem:[%s939 + $0x14] sm:$0xf]
      %v946 = vld [vmem:[%s939 + $0x18] sm:$0xf]
      %v947 = vld [vmem:[%s939 + $0x1c] sm:$0xf]
      %v948 = vld [vmem:[%s939 + $0x20] sm:$0xf]
      %v949 = vld [vmem:[%s939 + $0x24] sm:$0xf]
      %v950 = vld [vmem:[%s939 + $0x28] sm:$0xf]
      %v951 = vld [vmem:[%s939 + $0x2c] sm:$0xf]
      %v952 = vld [vmem:[%s939 + $0x30] sm:$0xf]
      %v953 = vld [vmem:[%s939 + $0x34] sm:$0xf]
      %v954 = vld [vmem:[%s939 + $0x38] sm:$0xf]
      %v955 = vld [vmem:[%s939 + $0x3c] sm:$0xf]
      %v972 = vunpack.c.l.b16 %v940
      %v973 = vunpack.c.l.b16 %v941
      %v974 = vunpack.c.l.b16 %v942
      %v975 = vunpack.c.l.b16 %v943
      %v976 = vunpack.c.l.b16 %v944
      %v977 = vunpack.c.l.b16 %v945
      %v978 = vunpack.c.l.b16 %v946
      %v979 = vunpack.c.l.b16 %v947
      %v980 = vunpack.c.l.b16 %v948
      %v981 = vunpack.c.l.b16 %v949
      %v982 = vunpack.c.l.b16 %v950
      %v983 = vunpack.c.l.b16 %v951
      %v984 = vunpack.c.l.b16 %v952
      %v985 = vunpack.c.l.b16 %v953
      %v986 = vunpack.c.l.b16 %v954
      %v987 = vunpack.c.l.b16 %v955
      %v988 = vpack.c.b16 %v973, %v972
      %v989 = vpack.c.b16 %v975, %v974
      %v990 = vpack.c.b16 %v977, %v976
      %v991 = vpack.c.b16 %v979, %v978
      %v992 = vpack.c.b16 %v981, %v980
      %v993 = vpack.c.b16 %v983, %v982
      %v994 = vpack.c.b16 %v985, %v984
      %v995 = vpack.c.b16 %v987, %v986
      %1004 = vmatprep.subr.bf16.mxu0 0
      %1005 = vmatpush1.bf16.msra.mxu0 %v988
      %1006 = vmatprep.subr.bf16.mxu0 0
      %1007 = vmatpush1.bf16.msra.mxu0 %v989
      %1008 = vmatprep.subr.bf16.mxu0 0
      %1009 = vmatpush1.bf16.msra.mxu0 %v990
      %1010 = vmatprep.subr.bf16.mxu0 0
      %1011 = vmatpush1.bf16.msra.mxu0 %v991
      %1012 = vmatprep.subr.bf16.mxu0 0
      %1013 = vmatpush1.bf16.msra.mxu0 %v992
      %1014 = vmatprep.subr.bf16.mxu0 0
      %1015 = vmatpush1.bf16.msra.mxu0 %v993
      %1016 = vmatprep.subr.bf16.mxu0 0
      %1017 = vmatpush1.bf16.msra.mxu0 %v994
      %1018 = vmatprep.subr.bf16.mxu0 0
      %1019 = vmatpush1.bf16.msra.mxu0 %v995
      %1020 = vmatprep.subr.bf16.mxu0 0
      %1021 = vmatpush1.bf16.msra.mxu0 0
      %1022 = vmatprep.subr.bf16.mxu0 0
      %1023 = vmatpush1.bf16.msra.mxu0 0
      %1024 = vmatprep.subr.bf16.mxu0 0
      %1025 = vmatpush1.bf16.msra.mxu0 0
      %1026 = vmatprep.subr.bf16.mxu0 0
      %1027 = vmatpush1.bf16.msra.mxu0 0
      %1028 = vmatprep.subr.bf16.mxu0 0
      %1029 = vmatpush1.bf16.msra.mxu0 0
      %1030 = vmatprep.subr.bf16.mxu0 0
      %1031 = vmatpush1.bf16.msra.mxu0 0
      %1032 = vmatprep.subr.bf16.mxu0 0
      %1033 = vmatpush1.bf16.msra.mxu0 0
      %1034 = vmatprep.subr.bf16.mxu0 0
      %1035 = vmatpush1.bf16.msra.mxu0 0
      %1036 = vmatprep.mubr.bf16.mxu0 0
      %1037 = vmatmul.mubr.bf16.gmra.mrb[0].mxu0 %v935
      %v1038 = vpop.f32.mrb[0].mxu0
      %v1039 = vadd.f32 0.0, %v1038
      %v1040 = vpop.f32.mrb[0].mxu0
      %v1041 = vpop.f32.mrb[0].mxu0
      %v1042 = vadd.f32 0.0, %v1041
      %v1043 = vpop.f32.mrb[0].mxu0
      %1044 = vmatprep.mubr.bf16.mxu0 0
      %1045 = vmatmul.mubr.bf16.gmra.mrb[0].mxu0 %v936
      %v1046 = vpop.f32.mrb[0].mxu0
      %v1047 = vadd.f32 0.0, %v1046
      %v1048 = vpop.f32.mrb[0].mxu0
      %v1049 = vpop.f32.mrb[0].mxu0
      %v1050 = vadd.f32 0.0, %v1049
      %v1051 = vpop.f32.mrb[0].mxu0
      %1052 = vmatprep.mubr.bf16.mxu0 0
      %1053 = vmatmul.mubr.bf16.gmra.mrb[0].mxu0 %v937
      %v1054 = vpop.f32.mrb[0].mxu0
      %v1055 = vadd.f32 0.0, %v1054
      %v1056 = vpop.f32.mrb[0].mxu0
      %v1057 = vpop.f32.mrb[0].mxu0
      %v1058 = vadd.f32 0.0, %v1057
      %v1059 = vpop.f32.mrb[0].mxu0
      %1060 = vmatprep.mubr.bf16.mxu0 0
      %1061 = vmatmul.mubr.bf16.gmra.mrb[0].mxu0 %v938
      %v1062 = vpop.f32.mrb[0].mxu0
      %v1063 = vadd.f32 0.0, %v1062
      %v1064 = vpop.f32.mrb[0].mxu0
      %v1065 = vpop.f32.mrb[0].mxu0
      %v1066 = vadd.f32 0.0, %v1065
      %v1067 = vpop.f32.mrb[0].mxu0
      %1068 = vdwg.mxu0
      %v1069 = vadd.f32 %v919, %v1039
      %v1070 = vadd.f32 %v920, %v1042
      %v1071 = vadd.f32 %v921, %v1047
      %v1072 = vadd.f32 %v922, %v1050
      %v1073 = vadd.f32 %v923, %v1055
      %v1074 = vadd.f32 %v924, %v1058
      %v1075 = vadd.f32 %v925, %v1063
      %v1076 = vadd.f32 %v926, %v1066
      %v1077 = vld [vmem:[%s461 + $0x1] sm:$0xff]
      %v1078 = vld [vmem:[%s461 + $0x11] sm:$0xff]
      %v1079 = vld [vmem:[%s461 + $0x21] sm:$0xff]
      %v1080 = vld [vmem:[%s461 + $0x31] sm:$0xff]
      %v1081 = vld [vmem:[%s461 + $0x41] sm:$0xff]
      %v1082 = vld [vmem:[%s461 + $0x51] sm:$0xff]
      %v1083 = vld [vmem:[%s461 + $0x61] sm:$0xff]
      %v1084 = vld [vmem:[%s461 + $0x71] sm:$0xff]
      %v1085 = vpack.c.bf16 %v1078, %v1077
      %v1086 = vpack.c.bf16 %v1080, %v1079
      %v1087 = vpack.c.bf16 %v1082, %v1081
      %v1088 = vpack.c.bf16 %v1084, %v1083
      %s1089 = scalar_lea.vmem %s361, 256
      %v1090 = vld [vmem:[%s1089] sm:$0xf]
      %v1091 = vld [vmem:[%s1089 + $0x4] sm:$0xf]
      %v1092 = vld [vmem:[%s1089 + $0x8] sm:$0xf]
      %v1093 = vld [vmem:[%s1089 + $0xc] sm:$0xf]
      %v1094 = vld [vmem:[%s1089 + $0x10] sm:$0xf]
      %v1095 = vld [vmem:[%s1089 + $0x14] sm:$0xf]
      %v1096 = vld [vmem:[%s1089 + $0x18] sm:$0xf]
      %v1097 = vld [vmem:[%s1089 + $0x1c] sm:$0xf]
      %v1098 = vld [vmem:[%s1089 + $0x20] sm:$0xf]
      %v1099 = vld [vmem:[%s1089 + $0x24] sm:$0xf]
      %v1100 = vld [vmem:[%s1089 + $0x28] sm:$0xf]
      %v1101 = vld [vmem:[%s1089 + $0x2c] sm:$0xf]
      %v1102 = vld [vmem:[%s1089 + $0x30] sm:$0xf]
      %v1103 = vld [vmem:[%s1089 + $0x34] sm:$0xf]
      %v1104 = vld [vmem:[%s1089 + $0x38] sm:$0xf]
      %v1105 = vld [vmem:[%s1089 + $0x3c] sm:$0xf]
      %v1122 = vunpack.c.l.b16 %v1090
      %v1123 = vunpack.c.l.b16 %v1091
      %v1124 = vunpack.c.l.b16 %v1092
      %v1125 = vunpack.c.l.b16 %v1093
      %v1126 = vunpack.c.l.b16 %v1094
      %v1127 = vunpack.c.l.b16 %v1095
      %v1128 = vunpack.c.l.b16 %v1096
      %v1129 = vunpack.c.l.b16 %v1097
      %v1130 = vunpack.c.l.b16 %v1098
      %v1131 = vunpack.c.l.b16 %v1099
      %v1132 = vunpack.c.l.b16 %v1100
      %v1133 = vunpack.c.l.b16 %v1101
      %v1134 = vunpack.c.l.b16 %v1102
      %v1135 = vunpack.c.l.b16 %v1103
      %v1136 = vunpack.c.l.b16 %v1104
      %v1137 = vunpack.c.l.b16 %v1105
      %v1138 = vpack.c.b16 %v1123, %v1122
      %v1139 = vpack.c.b16 %v1125, %v1124
      %v1140 = vpack.c.b16 %v1127, %v1126
      %v1141 = vpack.c.b16 %v1129, %v1128
      %v1142 = vpack.c.b16 %v1131, %v1130
      %v1143 = vpack.c.b16 %v1133, %v1132
      %v1144 = vpack.c.b16 %v1135, %v1134
      %v1145 = vpack.c.b16 %v1137, %v1136
      %1154 = vmatprep.subr.bf16.mxu0 0
      %1155 = vmatpush1.bf16.msra.mxu0 %v1138
      %1156 = vmatprep.subr.bf16.mxu0 0
      %1157 = vmatpush1.bf16.msra.mxu0 %v1139
      %1158 = vmatprep.subr.bf16.mxu0 0
      %1159 = vmatpush1.bf16.msra.mxu0 %v1140
      %1160 = vmatprep.subr.bf16.mxu0 0
      %1161 = vmatpush1.bf16.msra.mxu0 %v1141
      %1162 = vmatprep.subr.bf16.mxu0 0
      %1163 = vmatpush1.bf16.msra.mxu0 %v1142
      %1164 = vmatprep.subr.bf16.mxu0 0
      %1165 = vmatpush1.bf16.msra.mxu0 %v1143
      %1166 = vmatprep.subr.bf16.mxu0 0
      %1167 = vmatpush1.bf16.msra.mxu0 %v1144
      %1168 = vmatprep.subr.bf16.mxu0 0
      %1169 = vmatpush1.bf16.msra.mxu0 %v1145
      %1170 = vmatprep.subr.bf16.mxu0 0
      %1171 = vmatpush1.bf16.msra.mxu0 0
      %1172 = vmatprep.subr.bf16.mxu0 0
      %1173 = vmatpush1.bf16.msra.mxu0 0
      %1174 = vmatprep.subr.bf16.mxu0 0
      %1175 = vmatpush1.bf16.msra.mxu0 0
      %1176 = vmatprep.subr.bf16.mxu0 0
      %1177 = vmatpush1.bf16.msra.mxu0 0
      %1178 = vmatprep.subr.bf16.mxu0 0
      %1179 = vmatpush1.bf16.msra.mxu0 0
      %1180 = vmatprep.subr.bf16.mxu0 0
      %1181 = vmatpush1.bf16.msra.mxu0 0
      %1182 = vmatprep.subr.bf16.mxu0 0
      %1183 = vmatpush1.bf16.msra.mxu0 0
      %1184 = vmatprep.subr.bf16.mxu0 0
      %1185 = vmatpush1.bf16.msra.mxu0 0
      %1186 = vmatprep.mubr.bf16.mxu0 0
      %1187 = vmatmul.mubr.bf16.gmra.mrb[0].mxu0 %v1085
      %v1188 = vpop.f32.mrb[0].mxu0
      %v1189 = vadd.f32 0.0, %v1188
      %v1190 = vpop.f32.mrb[0].mxu0
      %v1191 = vpop.f32.mrb[0].mxu0
      %v1192 = vadd.f32 0.0, %v1191
      %v1193 = vpop.f32.mrb[0].mxu0
      %1194 = vmatprep.mubr.bf16.mxu0 0
      %1195 = vmatmul.mubr.bf16.gmra.mrb[0].mxu0 %v1086
      %v1196 = vpop.f32.mrb[0].mxu0
      %v1197 = vadd.f32 0.0, %v1196
      %v1198 = vpop.f32.mrb[0].mxu0
      %v1199 = vpop.f32.mrb[0].mxu0
      %v1200 = vadd.f32 0.0, %v1199
      %v1201 = vpop.f32.mrb[0].mxu0
      %1202 = vmatprep.mubr.bf16.mxu0 0
      %1203 = vmatmul.mubr.bf16.gmra.mrb[0].mxu0 %v1087
      %v1204 = vpop.f32.mrb[0].mxu0
      %v1205 = vadd.f32 0.0, %v1204
      %v1206 = vpop.f32.mrb[0].mxu0
      %v1207 = vpop.f32.mrb[0].mxu0
      %v1208 = vadd.f32 0.0, %v1207
      %v1209 = vpop.f32.mrb[0].mxu0
      %1210 = vmatprep.mubr.bf16.mxu0 0
      %1211 = vmatmul.mubr.bf16.gmra.mrb[0].mxu0 %v1088
      %v1212 = vpop.f32.mrb[0].mxu0
      %v1213 = vadd.f32 0.0, %v1212
      %v1214 = vpop.f32.mrb[0].mxu0
      %v1215 = vpop.f32.mrb[0].mxu0
      %v1216 = vadd.f32 0.0, %v1215
      %v1217 = vpop.f32.mrb[0].mxu0
      %1218 = vdwg.mxu0
      %v1219 = vadd.f32 %v1069, %v1189
      %v1220 = vadd.f32 %v1070, %v1192
      %v1221 = vadd.f32 %v1071, %v1197
      %v1222 = vadd.f32 %v1072, %v1200
      %v1223 = vadd.f32 %v1073, %v1205
      %v1224 = vadd.f32 %v1074, %v1208
      %v1225 = vadd.f32 %v1075, %v1213
      %v1226 = vadd.f32 %v1076, %v1216
      %v1227 = vld [vmem:[%s461 + $0x2] sm:$0xff]
      %v1228 = vld [vmem:[%s461 + $0x12] sm:$0xff]
      %v1229 = vld [vmem:[%s461 + $0x22] sm:$0xff]
      %v1230 = vld [vmem:[%s461 + $0x32] sm:$0xff]
      %v1231 = vld [vmem:[%s461 + $0x42] sm:$0xff]
      %v1232 = vld [vmem:[%s461 + $0x52] sm:$0xff]
      %v1233 = vld [vmem:[%s461 + $0x62] sm:$0xff]
      %v1234 = vld [vmem:[%s461 + $0x72] sm:$0xff]
      %v1235 = vpack.c.bf16 %v1228, %v1227
      %v1236 = vpack.c.bf16 %v1230, %v1229
      %v1237 = vpack.c.bf16 %v1232, %v1231
      %v1238 = vpack.c.bf16 %v1234, %v1233
      %s1239 = scalar_lea.vmem %s361, 320
      %v1240 = vld [vmem:[%s1239] sm:$0xf]
      %v1241 = vld [vmem:[%s1239 + $0x4] sm:$0xf]
      %v1242 = vld [vmem:[%s1239 + $0x8] sm:$0xf]
      %v1243 = vld [vmem:[%s1239 + $0xc] sm:$0xf]
      %v1244 = vld [vmem:[%s1239 + $0x10] sm:$0xf]
      %v1245 = vld [vmem:[%s1239 + $0x14] sm:$0xf]
      %v1246 = vld [vmem:[%s1239 + $0x18] sm:$0xf]
      %v1247 = vld [vmem:[%s1239 + $0x1c] sm:$0xf]
      %v1248 = vld [vmem:[%s1239 + $0x20] sm:$0xf]
      %v1249 = vld [vmem:[%s1239 + $0x24] sm:$0xf]
      %v1250 = vld [vmem:[%s1239 + $0x28] sm:$0xf]
      %v1251 = vld [vmem:[%s1239 + $0x2c] sm:$0xf]
      %v1252 = vld [vmem:[%s1239 + $0x30] sm:$0xf]
      %v1253 = vld [vmem:[%s1239 + $0x34] sm:$0xf]
      %v1254 = vld [vmem:[%s1239 + $0x38] sm:$0xf]
      %v1255 = vld [vmem:[%s1239 + $0x3c] sm:$0xf]
      %v1272 = vunpack.c.l.b16 %v1240
      %v1273 = vunpack.c.l.b16 %v1241
      %v1274 = vunpack.c.l.b16 %v1242
      %v1275 = vunpack.c.l.b16 %v1243
      %v1276 = vunpack.c.l.b16 %v1244
      %v1277 = vunpack.c.l.b16 %v1245
      %v1278 = vunpack.c.l.b16 %v1246
      %v1279 = vunpack.c.l.b16 %v1247
      %v1280 = vunpack.c.l.b16 %v1248
      %v1281 = vunpack.c.l.b16 %v1249
      %v1282 = vunpack.c.l.b16 %v1250
      %v1283 = vunpack.c.l.b16 %v1251
      %v1284 = vunpack.c.l.b16 %v1252
      %v1285 = vunpack.c.l.b16 %v1253
      %v1286 = vunpack.c.l.b16 %v1254
      %v1287 = vunpack.c.l.b16 %v1255
      %v1288 = vpack.c.b16 %v1273, %v1272
      %v1289 = vpack.c.b16 %v1275, %v1274
      %v1290 = vpack.c.b16 %v1277, %v1276
      %v1291 = vpack.c.b16 %v1279, %v1278
      %v1292 = vpack.c.b16 %v1281, %v1280
      %v1293 = vpack.c.b16 %v1283, %v1282
      %v1294 = vpack.c.b16 %v1285, %v1284
      %v1295 = vpack.c.b16 %v1287, %v1286
      %1304 = vmatprep.subr.bf16.mxu0 0
      %1305 = vmatpush1.bf16.msra.mxu0 %v1288
      %1306 = vmatprep.subr.bf16.mxu0 0
      %1307 = vmatpush1.bf16.msra.mxu0 %v1289
      %1308 = vmatprep.subr.bf16.mxu0 0
      %1309 = vmatpush1.bf16.msra.mxu0 %v1290
      %1310 = vmatprep.subr.bf16.mxu0 0
      %1311 = vmatpush1.bf16.msra.mxu0 %v1291
      %1312 = vmatprep.subr.bf16.mxu0 0
      %1313 = vmatpush1.bf16.msra.mxu0 %v1292
      %1314 = vmatprep.subr.bf16.mxu0 0
      %1315 = vmatpush1.bf16.msra.mxu0 %v1293
      %1316 = vmatprep.subr.bf16.mxu0 0
      %1317 = vmatpush1.bf16.msra.mxu0 %v1294
      %1318 = vmatprep.subr.bf16.mxu0 0
      %1319 = vmatpush1.bf16.msra.mxu0 %v1295
      %1320 = vmatprep.subr.bf16.mxu0 0
      %1321 = vmatpush1.bf16.msra.mxu0 0
      %1322 = vmatprep.subr.bf16.mxu0 0
      %1323 = vmatpush1.bf16.msra.mxu0 0
      %1324 = vmatprep.subr.bf16.mxu0 0
      %1325 = vmatpush1.bf16.msra.mxu0 0
      %1326 = vmatprep.subr.bf16.mxu0 0
      %1327 = vmatpush1.bf16.msra.mxu0 0
      %1328 = vmatprep.subr.bf16.mxu0 0
      %1329 = vmatpush1.bf16.msra.mxu0 0
      %1330 = vmatprep.subr.bf16.mxu0 0
      %1331 = vmatpush1.bf16.msra.mxu0 0
      %1332 = vmatprep.subr.bf16.mxu0 0
      %1333 = vmatpush1.bf16.msra.mxu0 0
      %1334 = vmatprep.subr.bf16.mxu0 0
      %1335 = vmatpush1.bf16.msra.mxu0 0
      %1336 = vmatprep.mubr.bf16.mxu0 0
      %1337 = vmatmul.mubr.bf16.gmra.mrb[0].mxu0 %v1235
      %v1338 = vpop.f32.mrb[0].mxu0
      %v1339 = vadd.f32 0.0, %v1338
      %v1340 = vpop.f32.mrb[0].mxu0
      %v1341 = vpop.f32.mrb[0].mxu0
      %v1342 = vadd.f32 0.0, %v1341
      %v1343 = vpop.f32.mrb[0].mxu0
      %1344 = vmatprep.mubr.bf16.mxu0 0
      %1345 = vmatmul.mubr.bf16.gmra.mrb[0].mxu0 %v1236
      %v1346 = vpop.f32.mrb[0].mxu0
      %v1347 = vadd.f32 0.0, %v1346
      %v1348 = vpop.f32.mrb[0].mxu0
      %v1349 = vpop.f32.mrb[0].mxu0
      %v1350 = vadd.f32 0.0, %v1349
      %v1351 = vpop.f32.mrb[0].mxu0
      %1352 = vmatprep.mubr.bf16.mxu0 0
      %1353 = vmatmul.mubr.bf16.gmra.mrb[0].mxu0 %v1237
      %v1354 = vpop.f32.mrb[0].mxu0
      %v1355 = vadd.f32 0.0, %v1354
      %v1356 = vpop.f32.mrb[0].mxu0
      %v1357 = vpop.f32.mrb[0].mxu0
      %v1358 = vadd.f32 0.0, %v1357
      %v1359 = vpop.f32.mrb[0].mxu0
      %1360 = vmatprep.mubr.bf16.mxu0 0
      %1361 = vmatmul.mubr.bf16.gmra.mrb[0].mxu0 %v1238
      %v1362 = vpop.f32.mrb[0].mxu0
      %v1363 = vadd.f32 0.0, %v1362
      %v1364 = vpop.f32.mrb[0].mxu0
      %v1365 = vpop.f32.mrb[0].mxu0
      %v1366 = vadd.f32 0.0, %v1365
      %v1367 = vpop.f32.mrb[0].mxu0
      %1368 = vdwg.mxu0
      %v1369 = vadd.f32 %v1219, %v1339
      %v1370 = vadd.f32 %v1220, %v1342
      %v1371 = vadd.f32 %v1221, %v1347
      %v1372 = vadd.f32 %v1222, %v1350
      %v1373 = vadd.f32 %v1223, %v1355
      %v1374 = vadd.f32 %v1224, %v1358
      %v1375 = vadd.f32 %v1225, %v1363
      %v1376 = vadd.f32 %v1226, %v1366
      %s1377 = scalar_lea.vmem [#allocation2], 32
      %v1378 = vld [vmem:[%s1377] sm:$0xff]
      %v1379 = vld [vmem:[%s1377 + $0x10] sm:$0xff]
      %v1380 = vld [vmem:[%s1377 + $0x20] sm:$0xff]
      %v1381 = vld [vmem:[%s1377 + $0x30] sm:$0xff]
      %v1382 = vld [vmem:[%s1377 + $0x40] sm:$0xff]
      %v1383 = vld [vmem:[%s1377 + $0x50] sm:$0xff]
      %v1384 = vld [vmem:[%s1377 + $0x60] sm:$0xff]
      %v1385 = vld [vmem:[%s1377 + $0x70] sm:$0xff]
      %v1386 = vpack.c.bf16 %v1379, %v1378
      %v1387 = vpack.c.bf16 %v1381, %v1380
      %v1388 = vpack.c.bf16 %v1383, %v1382
      %v1389 = vpack.c.bf16 %v1385, %v1384
      %s1390 = scalar_lea.vmem %s361, 384
      %v1391 = vld [vmem:[%s1390] sm:$0xf]
      %v1392 = vld [vmem:[%s1390 + $0x4] sm:$0xf]
      %v1393 = vld [vmem:[%s1390 + $0x8] sm:$0xf]
      %v1394 = vld [vmem:[%s1390 + $0xc] sm:$0xf]
      %v1395 = vld [vmem:[%s1390 + $0x10] sm:$0xf]
      %v1396 = vld [vmem:[%s1390 + $0x14] sm:$0xf]
      %v1397 = vld [vmem:[%s1390 + $0x18] sm:$0xf]
      %v1398 = vld [vmem:[%s1390 + $0x1c] sm:$0xf]
      %v1399 = vld [vmem:[%s1390 + $0x20] sm:$0xf]
      %v1400 = vld [vmem:[%s1390 + $0x24] sm:$0xf]
      %v1401 = vld [vmem:[%s1390 + $0x28] sm:$0xf]
      %v1402 = vld [vmem:[%s1390 + $0x2c] sm:$0xf]
      %v1403 = vld [vmem:[%s1390 + $0x30] sm:$0xf]
      %v1404 = vld [vmem:[%s1390 + $0x34] sm:$0xf]
      %v1405 = vld [vmem:[%s1390 + $0x38] sm:$0xf]
      %v1406 = vld [vmem:[%s1390 + $0x3c] sm:$0xf]
      %v1423 = vunpack.c.l.b16 %v1391
      %v1424 = vunpack.c.l.b16 %v1392
      %v1425 = vunpack.c.l.b16 %v1393
      %v1426 = vunpack.c.l.b16 %v1394
      %v1427 = vunpack.c.l.b16 %v1395
      %v1428 = vunpack.c.l.b16 %v1396
      %v1429 = vunpack.c.l.b16 %v1397
      %v1430 = vunpack.c.l.b16 %v1398
      %v1431 = vunpack.c.l.b16 %v1399
      %v1432 = vunpack.c.l.b16 %v1400
      %v1433 = vunpack.c.l.b16 %v1401
      %v1434 = vunpack.c.l.b16 %v1402
      %v1435 = vunpack.c.l.b16 %v1403
      %v1436 = vunpack.c.l.b16 %v1404
      %v1437 = vunpack.c.l.b16 %v1405
      %v1438 = vunpack.c.l.b16 %v1406
      %v1439 = vpack.c.b16 %v1424, %v1423
      %v1440 = vpack.c.b16 %v1426, %v1425
      %v1441 = vpack.c.b16 %v1428, %v1427
      %v1442 = vpack.c.b16 %v1430, %v1429
      %v1443 = vpack.c.b16 %v1432, %v1431
      %v1444 = vpack.c.b16 %v1434, %v1433
      %v1445 = vpack.c.b16 %v1436, %v1435
      %v1446 = vpack.c.b16 %v1438, %v1437
      %1455 = vmatprep.subr.bf16.mxu0 0
      %1456 = vmatpush1.bf16.msra.mxu0 %v1439
      %1457 = vmatprep.subr.bf16.mxu0 0
      %1458 = vmatpush1.bf16.msra.mxu0 %v1440
      %1459 = vmatprep.subr.bf16.mxu0 0
      %1460 = vmatpush1.bf16.msra.mxu0 %v1441
      %1461 = vmatprep.subr.bf16.mxu0 0
      %1462 = vmatpush1.bf16.msra.mxu0 %v1442
      %1463 = vmatprep.subr.bf16.mxu0 0
      %1464 = vmatpush1.bf16.msra.mxu0 %v1443
      %1465 = vmatprep.subr.bf16.mxu0 0
      %1466 = vmatpush1.bf16.msra.mxu0 %v1444
      %1467 = vmatprep.subr.bf16.mxu0 0
      %1468 = vmatpush1.bf16.msra.mxu0 %v1445
      %1469 = vmatprep.subr.bf16.mxu0 0
      %1470 = vmatpush1.bf16.msra.mxu0 %v1446
      %1471 = vmatprep.subr.bf16.mxu0 0
      %1472 = vmatpush1.bf16.msra.mxu0 0
      %1473 = vmatprep.subr.bf16.mxu0 0
      %1474 = vmatpush1.bf16.msra.mxu0 0
      %1475 = vmatprep.subr.bf16.mxu0 0
      %1476 = vmatpush1.bf16.msra.mxu0 0
      %1477 = vmatprep.subr.bf16.mxu0 0
      %1478 = vmatpush1.bf16.msra.mxu0 0
      %1479 = vmatprep.subr.bf16.mxu0 0
      %1480 = vmatpush1.bf16.msra.mxu0 0
      %1481 = vmatprep.subr.bf16.mxu0 0
      %1482 = vmatpush1.bf16.msra.mxu0 0
      %1483 = vmatprep.subr.bf16.mxu0 0
      %1484 = vmatpush1.bf16.msra.mxu0 0
      %1485 = vmatprep.subr.bf16.mxu0 0
      %1486 = vmatpush1.bf16.msra.mxu0 0
      %1487 = vmatprep.mubr.bf16.mxu0 0
      %1488 = vmatmul.mubr.bf16.gmra.mrb[0].mxu0 %v1386
      %v1489 = vpop.f32.mrb[0].mxu0
      %v1490 = vadd.f32 0.0, %v1489
      %v1491 = vpop.f32.mrb[0].mxu0
      %v1492 = vpop.f32.mrb[0].mxu0
      %v1493 = vadd.f32 0.0, %v1492
      %v1494 = vpop.f32.mrb[0].mxu0
      %1495 = vmatprep.mubr.bf16.mxu0 0
      %1496 = vmatmul.mubr.bf16.gmra.mrb[0].mxu0 %v1387
      %v1497 = vpop.f32.mrb[0].mxu0
      %v1498 = vadd.f32 0.0, %v1497
      %v1499 = vpop.f32.mrb[0].mxu0
      %v1500 = vpop.f32.mrb[0].mxu0
      %v1501 = vadd.f32 0.0, %v1500
      %v1502 = vpop.f32.mrb[0].mxu0
      %1503 = vmatprep.mubr.bf16.mxu0 0
      %1504 = vmatmul.mubr.bf16.gmra.mrb[0].mxu0 %v1388
      %v1505 = vpop.f32.mrb[0].mxu0
      %v1506 = vadd.f32 0.0, %v1505
      %v1507 = vpop.f32.mrb[0].mxu0
      %v1508 = vpop.f32.mrb[0].mxu0
      %v1509 = vadd.f32 0.0, %v1508
      %v1510 = vpop.f32.mrb[0].mxu0
      %1511 = vmatprep.mubr.bf16.mxu0 0
      %1512 = vmatmul.mubr.bf16.gmra.mrb[0].mxu0 %v1389
      %v1513 = vpop.f32.mrb[0].mxu0
      %v1514 = vadd.f32 0.0, %v1513
      %v1515 = vpop.f32.mrb[0].mxu0
      %v1516 = vpop.f32.mrb[0].mxu0
      %v1517 = vadd.f32 0.0, %v1516
      %v1518 = vpop.f32.mrb[0].mxu0
      %1519 = vdwg.mxu0
      %v1520 = vadd.f32 %v1369, %v1490
      %v1521 = vadd.f32 %v1370, %v1493
      %v1522 = vadd.f32 %v1371, %v1498
      %v1523 = vadd.f32 %v1372, %v1501
      %v1524 = vadd.f32 %v1373, %v1506
      %v1525 = vadd.f32 %v1374, %v1509
      %v1526 = vadd.f32 %v1375, %v1514
      %v1527 = vadd.f32 %v1376, %v1517
      %v1528 = vld [vmem:[%s1377 + $0x1] sm:$0xff]
      %v1529 = vld [vmem:[%s1377 + $0x11] sm:$0xff]
      %v1530 = vld [vmem:[%s1377 + $0x21] sm:$0xff]
      %v1531 = vld [vmem:[%s1377 + $0x31] sm:$0xff]
      %v1532 = vld [vmem:[%s1377 + $0x41] sm:$0xff]
      %v1533 = vld [vmem:[%s1377 + $0x51] sm:$0xff]
      %v1534 = vld [vmem:[%s1377 + $0x61] sm:$0xff]
      %v1535 = vld [vmem:[%s1377 + $0x71] sm:$0xff]
      %v1536 = vpack.c.bf16 %v1529, %v1528
      %v1537 = vpack.c.bf16 %v1531, %v1530
      %v1538 = vpack.c.bf16 %v1533, %v1532
      %v1539 = vpack.c.bf16 %v1535, %v1534
      %s1540 = scalar_lea.vmem %s361, 448
      %v1541 = vld [vmem:[%s1540] sm:$0xf]
      %v1542 = vld [vmem:[%s1540 + $0x4] sm:$0xf]
      %v1543 = vld [vmem:[%s1540 + $0x8] sm:$0xf]
      %v1544 = vld [vmem:[%s1540 + $0xc] sm:$0xf]
      %v1545 = vld [vmem:[%s1540 + $0x10] sm:$0xf]
      %v1546 = vld [vmem:[%s1540 + $0x14] sm:$0xf]
      %v1547 = vld [vmem:[%s1540 + $0x18] sm:$0xf]
      %v1548 = vld [vmem:[%s1540 + $0x1c] sm:$0xf]
      %v1549 = vld [vmem:[%s1540 + $0x20] sm:$0xf]
      %v1550 = vld [vmem:[%s1540 + $0x24] sm:$0xf]
      %v1551 = vld [vmem:[%s1540 + $0x28] sm:$0xf]
      %v1552 = vld [vmem:[%s1540 + $0x2c] sm:$0xf]
      %v1553 = vld [vmem:[%s1540 + $0x30] sm:$0xf]
      %v1554 = vld [vmem:[%s1540 + $0x34] sm:$0xf]
      %v1555 = vld [vmem:[%s1540 + $0x38] sm:$0xf]
      %v1556 = vld [vmem:[%s1540 + $0x3c] sm:$0xf]
      %v1573 = vunpack.c.l.b16 %v1541
      %v1574 = vunpack.c.l.b16 %v1542
      %v1575 = vunpack.c.l.b16 %v1543
      %v1576 = vunpack.c.l.b16 %v1544
      %v1577 = vunpack.c.l.b16 %v1545
      %v1578 = vunpack.c.l.b16 %v1546
      %v1579 = vunpack.c.l.b16 %v1547
      %v1580 = vunpack.c.l.b16 %v1548
      %v1581 = vunpack.c.l.b16 %v1549
      %v1582 = vunpack.c.l.b16 %v1550
      %v1583 = vunpack.c.l.b16 %v1551
      %v1584 = vunpack.c.l.b16 %v1552
      %v1585 = vunpack.c.l.b16 %v1553
      %v1586 = vunpack.c.l.b16 %v1554
      %v1587 = vunpack.c.l.b16 %v1555
      %v1588 = vunpack.c.l.b16 %v1556
      %v1589 = vpack.c.b16 %v1574, %v1573
      %v1590 = vpack.c.b16 %v1576, %v1575
      %v1591 = vpack.c.b16 %v1578, %v1577
      %v1592 = vpack.c.b16 %v1580, %v1579
      %v1593 = vpack.c.b16 %v1582, %v1581
      %v1594 = vpack.c.b16 %v1584, %v1583
      %v1595 = vpack.c.b16 %v1586, %v1585
      %v1596 = vpack.c.b16 %v1588, %v1587
      %1605 = vmatprep.subr.bf16.mxu0 0
      %1606 = vmatpush1.bf16.msra.mxu0 %v1589
      %1607 = vmatprep.subr.bf16.mxu0 0
      %1608 = vmatpush1.bf16.msra.mxu0 %v1590
      %1609 = vmatprep.subr.bf16.mxu0 0
      %1610 = vmatpush1.bf16.msra.mxu0 %v1591
      %1611 = vmatprep.subr.bf16.mxu0 0
      %1612 = vmatpush1.bf16.msra.mxu0 %v1592
      %1613 = vmatprep.subr.bf16.mxu0 0
      %1614 = vmatpush1.bf16.msra.mxu0 %v1593
      %1615 = vmatprep.subr.bf16.mxu0 0
      %1616 = vmatpush1.bf16.msra.mxu0 %v1594
      %1617 = vmatprep.subr.bf16.mxu0 0
      %1618 = vmatpush1.bf16.msra.mxu0 %v1595
      %1619 = vmatprep.subr.bf16.mxu0 0
      %1620 = vmatpush1.bf16.msra.mxu0 %v1596
      %1621 = vmatprep.subr.bf16.mxu0 0
      %1622 = vmatpush1.bf16.msra.mxu0 0
      %1623 = vmatprep.subr.bf16.mxu0 0
      %1624 = vmatpush1.bf16.msra.mxu0 0
      %1625 = vmatprep.subr.bf16.mxu0 0
      %1626 = vmatpush1.bf16.msra.mxu0 0
      %1627 = vmatprep.subr.bf16.mxu0 0
      %1628 = vmatpush1.bf16.msra.mxu0 0
      %1629 = vmatprep.subr.bf16.mxu0 0
      %1630 = vmatpush1.bf16.msra.mxu0 0
      %1631 = vmatprep.subr.bf16.mxu0 0
      %1632 = vmatpush1.bf16.msra.mxu0 0
      %1633 = vmatprep.subr.bf16.mxu0 0
      %1634 = vmatpush1.bf16.msra.mxu0 0
      %1635 = vmatprep.subr.bf16.mxu0 0
      %1636 = vmatpush1.bf16.msra.mxu0 0
      %1637 = vmatprep.mubr.bf16.mxu0 0
      %1638 = vmatmul.mubr.bf16.gmra.mrb[0].mxu0 %v1536
      %v1639 = vpop.f32.mrb[0].mxu0
      %v1640 = vadd.f32 0.0, %v1639
      %v1641 = vpop.f32.mrb[0].mxu0
      %v1642 = vpop.f32.mrb[0].mxu0
      %v1643 = vadd.f32 0.0, %v1642
      %v1644 = vpop.f32.mrb[0].mxu0
      %1645 = vmatprep.mubr.bf16.mxu0 0
      %1646 = vmatmul.mubr.bf16.gmra.mrb[0].mxu0 %v1537
      %v1647 = vpop.f32.mrb[0].mxu0
      %v1648 = vadd.f32 0.0, %v1647
      %v1649 = vpop.f32.mrb[0].mxu0
      %v1650 = vpop.f32.mrb[0].mxu0
      %v1651 = vadd.f32 0.0, %v1650
      %v1652 = vpop.f32.mrb[0].mxu0
      %1653 = vmatprep.mubr.bf16.mxu0 0
      %1654 = vmatmul.mubr.bf16.gmra.mrb[0].mxu0 %v1538
      %v1655 = vpop.f32.mrb[0].mxu0
      %v1656 = vadd.f32 0.0, %v1655
      %v1657 = vpop.f32.mrb[0].mxu0
      %v1658 = vpop.f32.mrb[0].mxu0
      %v1659 = vadd.f32 0.0, %v1658
      %v1660 = vpop.f32.mrb[0].mxu0
      %1661 = vmatprep.mubr.bf16.mxu0 0
      %1662 = vmatmul.mubr.bf16.gmra.mrb[0].mxu0 %v1539
      %v1663 = vpop.f32.mrb[0].mxu0
      %v1664 = vadd.f32 0.0, %v1663
      %v1665 = vpop.f32.mrb[0].mxu0
      %v1666 = vpop.f32.mrb[0].mxu0
      %v1667 = vadd.f32 0.0, %v1666
      %v1668 = vpop.f32.mrb[0].mxu0
      %1669 = vdwg.mxu0
      %v1670 = vadd.f32 %v1520, %v1640
      %v1671 = vadd.f32 %v1521, %v1643
      %v1672 = vadd.f32 %v1522, %v1648
      %v1673 = vadd.f32 %v1523, %v1651
      %v1674 = vadd.f32 %v1524, %v1656
      %v1675 = vadd.f32 %v1525, %v1659
      %v1676 = vadd.f32 %v1526, %v1664
      %v1677 = vadd.f32 %v1527, %v1667
      %v1678 = vld [vmem:[%s1377 + $0x2] sm:$0xff]
      %v1679 = vld [vmem:[%s1377 + $0x12] sm:$0xff]
      %v1680 = vld [vmem:[%s1377 + $0x22] sm:$0xff]
      %v1681 = vld [vmem:[%s1377 + $0x32] sm:$0xff]
      %v1682 = vld [vmem:[%s1377 + $0x42] sm:$0xff]
      %v1683 = vld [vmem:[%s1377 + $0x52] sm:$0xff]
      %v1684 = vld [vmem:[%s1377 + $0x62] sm:$0xff]
      %v1685 = vld [vmem:[%s1377 + $0x72] sm:$0xff]
      %v1686 = vpack.c.bf16 %v1679, %v1678
      %v1687 = vpack.c.bf16 %v1681, %v1680
      %v1688 = vpack.c.bf16 %v1683, %v1682
      %v1689 = vpack.c.bf16 %v1685, %v1684
      %s1690 = scalar_lea.vmem %s361, 512
      %v1691 = vld [vmem:[%s1690] sm:$0xf]
      %v1692 = vld [vmem:[%s1690 + $0x4] sm:$0xf]
      %v1693 = vld [vmem:[%s1690 + $0x8] sm:$0xf]
      %v1694 = vld [vmem:[%s1690 + $0xc] sm:$0xf]
      %v1695 = vld [vmem:[%s1690 + $0x10] sm:$0xf]
      %v1696 = vld [vmem:[%s1690 + $0x14] sm:$0xf]
      %v1697 = vld [vmem:[%s1690 + $0x18] sm:$0xf]
      %v1698 = vld [vmem:[%s1690 + $0x1c] sm:$0xf]
      %v1699 = vld [vmem:[%s1690 + $0x20] sm:$0xf]
      %v1700 = vld [vmem:[%s1690 + $0x24] sm:$0xf]
      %v1701 = vld [vmem:[%s1690 + $0x28] sm:$0xf]
      %v1702 = vld [vmem:[%s1690 + $0x2c] sm:$0xf]
      %v1703 = vld [vmem:[%s1690 + $0x30] sm:$0xf]
      %v1704 = vld [vmem:[%s1690 + $0x34] sm:$0xf]
      %v1705 = vld [vmem:[%s1690 + $0x38] sm:$0xf]
      %v1706 = vld [vmem:[%s1690 + $0x3c] sm:$0xf]
      %v1723 = vunpack.c.l.b16 %v1691
      %v1724 = vunpack.c.l.b16 %v1692
      %v1725 = vunpack.c.l.b16 %v1693
      %v1726 = vunpack.c.l.b16 %v1694
      %v1727 = vunpack.c.l.b16 %v1695
      %v1728 = vunpack.c.l.b16 %v1696
      %v1729 = vunpack.c.l.b16 %v1697
      %v1730 = vunpack.c.l.b16 %v1698
      %v1731 = vunpack.c.l.b16 %v1699
      %v1732 = vunpack.c.l.b16 %v1700
      %v1733 = vunpack.c.l.b16 %v1701
      %v1734 = vunpack.c.l.b16 %v1702
      %v1735 = vunpack.c.l.b16 %v1703
      %v1736 = vunpack.c.l.b16 %v1704
      %v1737 = vunpack.c.l.b16 %v1705
      %v1738 = vunpack.c.l.b16 %v1706
      %v1739 = vpack.c.b16 %v1724, %v1723
      %v1740 = vpack.c.b16 %v1726, %v1725
      %v1741 = vpack.c.b16 %v1728, %v1727
      %v1742 = vpack.c.b16 %v1730, %v1729
      %v1743 = vpack.c.b16 %v1732, %v1731
      %v1744 = vpack.c.b16 %v1734, %v1733
      %v1745 = vpack.c.b16 %v1736, %v1735
      %v1746 = vpack.c.b16 %v1738, %v1737
      %1755 = vmatprep.subr.bf16.mxu0 0
      %1756 = vmatpush1.bf16.msra.mxu0 %v1739
      %1757 = vmatprep.subr.bf16.mxu0 0
      %1758 = vmatpush1.bf16.msra.mxu0 %v1740
      %1759 = vmatprep.subr.bf16.mxu0 0
      %1760 = vmatpush1.bf16.msra.mxu0 %v1741
      %1761 = vmatprep.subr.bf16.mxu0 0
      %1762 = vmatpush1.bf16.msra.mxu0 %v1742
      %1763 = vmatprep.subr.bf16.mxu0 0
      %1764 = vmatpush1.bf16.msra.mxu0 %v1743
      %1765 = vmatprep.subr.bf16.mxu0 0
      %1766 = vmatpush1.bf16.msra.mxu0 %v1744
      %1767 = vmatprep.subr.bf16.mxu0 0
      %1768 = vmatpush1.bf16.msra.mxu0 %v1745
      %1769 = vmatprep.subr.bf16.mxu0 0
      %1770 = vmatpush1.bf16.msra.mxu0 %v1746
      %1771 = vmatprep.subr.bf16.mxu0 0
      %1772 = vmatpush1.bf16.msra.mxu0 0
      %1773 = vmatprep.subr.bf16.mxu0 0
      %1774 = vmatpush1.bf16.msra.mxu0 0
      %1775 = vmatprep.subr.bf16.mxu0 0
      %1776 = vmatpush1.bf16.msra.mxu0 0
      %1777 = vmatprep.subr.bf16.mxu0 0
      %1778 = vmatpush1.bf16.msra.mxu0 0
      %1779 = vmatprep.subr.bf16.mxu0 0
      %1780 = vmatpush1.bf16.msra.mxu0 0
      %1781 = vmatprep.subr.bf16.mxu0 0
      %1782 = vmatpush1.bf16.msra.mxu0 0
      %1783 = vmatprep.subr.bf16.mxu0 0
      %1784 = vmatpush1.bf16.msra.mxu0 0
      %1785 = vmatprep.subr.bf16.mxu0 0
      %1786 = vmatpush1.bf16.msra.mxu0 0
      %1787 = vmatprep.mubr.bf16.mxu0 0
      %1788 = vmatmul.mubr.bf16.gmra.mrb[0].mxu0 %v1686
      %v1789 = vpop.f32.mrb[0].mxu0
      %v1790 = vadd.f32 0.0, %v1789
      %v1791 = vpop.f32.mrb[0].mxu0
      %v1792 = vpop.f32.mrb[0].mxu0
      %v1793 = vadd.f32 0.0, %v1792
      %v1794 = vpop.f32.mrb[0].mxu0
      %1795 = vmatprep.mubr.bf16.mxu0 0
      %1796 = vmatmul.mubr.bf16.gmra.mrb[0].mxu0 %v1687
      %v1797 = vpop.f32.mrb[0].mxu0
      %v1798 = vadd.f32 0.0, %v1797
      %v1799 = vpop.f32.mrb[0].mxu0
      %v1800 = vpop.f32.mrb[0].mxu0
      %v1801 = vadd.f32 0.0, %v1800
      %v1802 = vpop.f32.mrb[0].mxu0
      %1803 = vmatprep.mubr.bf16.mxu0 0
      %1804 = vmatmul.mubr.bf16.gmra.mrb[0].mxu0 %v1688
      %v1805 = vpop.f32.mrb[0].mxu0
      %v1806 = vadd.f32 0.0, %v1805
      %v1807 = vpop.f32.mrb[0].mxu0
      %v1808 = vpop.f32.mrb[0].mxu0
      %v1809 = vadd.f32 0.0, %v1808
      %v1810 = vpop.f32.mrb[0].mxu0
      %1811 = vmatprep.mubr.bf16.mxu0 0
      %1812 = vmatmul.mubr.bf16.gmra.mrb[0].mxu0 %v1689
      %v1813 = vpop.f32.mrb[0].mxu0
      %v1814 = vadd.f32 0.0, %v1813
      %v1815 = vpop.f32.mrb[0].mxu0
      %v1816 = vpop.f32.mrb[0].mxu0
      %v1817 = vadd.f32 0.0, %v1816
      %v1818 = vpop.f32.mrb[0].mxu0
      %1819 = vdwg.mxu0
      %v1820 = vadd.f32 %v1670, %v1790
      %v1821 = vadd.f32 %v1671, %v1793
      %v1822 = vadd.f32 %v1672, %v1798
      %v1823 = vadd.f32 %v1673, %v1801
      %v1824 = vadd.f32 %v1674, %v1806
      %v1825 = vadd.f32 %v1675, %v1809
      %v1826 = vadd.f32 %v1676, %v1814
      %v1827 = vadd.f32 %v1677, %v1817
      %1828 = vst [vmem:[#allocation3] sm:$0xff] %v1820
      %1829 = vst [vmem:[#allocation3 + $0x8] sm:$0xff] %v1821
      %1830 = vst [vmem:[#allocation3 + $0x10] sm:$0xff] %v1822
      %1831 = vst [vmem:[#allocation3 + $0x18] sm:$0xff] %v1823
      %1832 = vst [vmem:[#allocation3 + $0x20] sm:$0xff] %v1824
      %1833 = vst [vmem:[#allocation3 + $0x28] sm:$0xff] %v1825
      %1834 = vst [vmem:[#allocation3 + $0x30] sm:$0xff] %v1826
      %1835 = vst [vmem:[#allocation3 + $0x38] sm:$0xff] %v1827
      // Predicated region
      $region45: #{dense_block_forward.4} parent=39 // pred_check
        %p1836 = pneg %p376
      $region46: #{dense_block_forward.4} parent=39 // pred_check_branch
        %1838 = sbr.rel (%p1836) target = $region48
      $region47: #{dense_block_forward.4} parent=39 // pred_region
        %1839 = vst [vmem:[%s367] sm:$0xff] %v1820
        %1840 = vst [vmem:[%s367 + $0x8] sm:$0xff] %v1821
        %1841 = vst [vmem:[%s367 + $0x10] sm:$0xff] %v1822
        %1842 = vst [vmem:[%s367 + $0x18] sm:$0xff] %v1823
        %1843 = vst [vmem:[%s367 + $0x20] sm:$0xff] %v1824
        %1844 = vst [vmem:[%s367 + $0x28] sm:$0xff] %v1825
        %1845 = vst [vmem:[%s367 + $0x30] sm:$0xff] %v1826
        %1846 = vst [vmem:[%s367 + $0x38] sm:$0xff] %v1827
        %v1847 = vadd.f32 %v1820, %v1821
        %v1848 = vadd.f32 %v1847, %v1822
        %v1849 = vadd.f32 %v1848, %v1823
        %v1850 = vadd.f32 %v1849, %v1824
        %v1851 = vadd.f32 %v1850, %v1825
        %v1852 = vadd.f32 %v1851, %v1826
        %v1853 = vadd.f32 %v1852, %v1827
        %v1854 = vrot.slane %v1853, 4
        %v1855 = vadd.f32 %v1853, %v1854
        %v1856 = vrot.slane %v1855, 2
        %v1857 = vadd.f32 %v1855, %v1856
        %v1858 = vrot.slane %v1857, 1
        %v1859 = vadd.f32 %v1857, %v1858
        %1860 = vst [vmem:[%s371] sm:$0x1] %v1859
        %v1861 = vmul.f32 %v1820, %v1820
        %v1862 = vmul.f32 %v1821, %v1821
        %v1863 = vmul.f32 %v1822, %v1822
        %v1864 = vmul.f32 %v1823, %v1823
        %v1865 = vmul.f32 %v1824, %v1824
        %v1866 = vmul.f32 %v1825, %v1825
        %v1867 = vmul.f32 %v1826, %v1826
        %v1868 = vmul.f32 %v1827, %v1827
        %v1869 = vadd.f32 %v1861, %v1862
        %v1870 = vadd.f32 %v1869, %v1863
        %v1871 = vadd.f32 %v1870, %v1864
        %v1872 = vadd.f32 %v1871, %v1865
        %v1873 = vadd.f32 %v1872, %v1866
        %v1874 = vadd.f32 %v1873, %v1867
        %v1875 = vadd.f32 %v1874, %v1868
        %v1876 = vrot.slane %v1875, 4
        %v1877 = vadd.f32 %v1875, %v1876
        %v1878 = vrot.slane %v1877, 2
        %v1879 = vadd.f32 %v1877, %v1878
        %v1880 = vrot.slane %v1879, 1
        %v1881 = vadd.f32 %v1879, %v1880
        %1882 = vst [vmem:[%s374] sm:$0x1] %v1881
      $region48: #{dense_block_forward.4} parent=39 // pred_fallthru
        _
      %s1883 = sadd.s32 %s23, 4
      %p1884 = scmp.lt.s32.totalorder %s1883, 11
      %s1885 = scalar_select %p1884, %s1883, 11
      %s1886 = smul.addr %s1885, 8
      %s1887 = smul.addr %s1886, 8
      %s1888 = scalar_lea.vmem %s5, %s1887
      %p1889 = scmp.lt.s32.totalorder %s23, 3
      %s1890 = scalar_select %p1889, %s23, 3
      %s1891 = scalar_lea.vmem %s6, %s1890
      %p1892 = scmp.lt.s32.totalorder %s23, 3
      %s1893 = scalar_select %p1892, %s23, 3
      %s1894 = scalar_lea.vmem %s7, %s1893
      // Predicated region
      $region49: #{dense_block_forward.4} parent=39 // pred_check
        %p1895 = pneg %p180
      $region50: #{dense_block_forward.4} parent=39 // pred_check_branch
        %1897 = sbr.rel (%p1895) target = $region52
      $region51: #{dense_block_forward.4} parent=39 // pred_region
        %s1898 = sadd.s32 %s23, 4
      $region52: #{dense_block_forward.4} parent=39 // pred_fallthru
        _
      // Predicated region
      $region53: #{dense_block_forward.4} parent=39 // pred_check
        %p1899 = pneg %p206
      $region54: #{dense_block_forward.4} parent=39 // pred_check_branch
        %1901 = sbr.rel (%p1899) target = $region56
      $region55: #{dense_block_forward.4} parent=39 // pred_region
        _
      $region56: #{dense_block_forward.4} parent=39 // pred_fallthru
        _
      // Predicated region
      $region57: #{dense_block_forward.4} parent=39 // pred_check
        %p1902 = pneg %p232
      $region58: #{dense_block_forward.4} parent=39 // pred_check_branch
        %1904 = sbr.rel (%p1902) target = $region60
      $region59: #{dense_block_forward.4} parent=39 // pred_region
        _
      $region60: #{dense_block_forward.4} parent=39 // pred_fallthru
        _
    $region40: #{dense_block_forward.4} parent=5 // pred_fallthru
      _
    %p1905 = scmp.le.s32.totalorder 2, %s14
    // Predicated region
    $region61: #{dense_block_forward.4} parent=5 // pred_check
      %p1906 = pneg %p1905
    $region62: #{dense_block_forward.4} parent=5 // pred_check_branch
      %1908 = sbr.rel (%p1906) target = $region64
    $region63: #{dense_block_forward.4} parent=5 // pred_region
      %s1909 = ssub.s32 %s14, 2
      // Predicated region
      $region65: #{dense_block_forward.4} parent=63 // pred_check
        %p1910 = pneg %p186
      $region66: #{dense_block_forward.4} parent=63 // pred_check_branch
        %1912 = sbr.rel (%p1910) target = $region68
      $region67: #{dense_block_forward.4} parent=63 // pred_region
        %s1913 = sadd.s32 %s25, 4
        %p1914 = scmp.lt.s32.totalorder %s1913, 11
        %s1915 = scalar_select %p1914, %s1913, 11
        %s1916 = smul.addr %s1915, 8
        %s1917 = smul.addr %s1916, 8
        %s1918 = scalar_lea.vmem %s5, %s1917
      $region68: #{dense_block_forward.4} parent=63 // pred_fallthru
        _
      // Predicated region
      $region69: #{dense_block_forward.4} parent=63 // pred_check
        %p1919 = pneg %p212
      $region70: #{dense_block_forward.4} parent=63 // pred_check_branch
        %1921 = sbr.rel (%p1919) target = $region72
      $region71: #{dense_block_forward.4} parent=63 // pred_region
        %p1922 = scmp.lt.s32.totalorder %s25, 3
        %s1923 = scalar_select %p1922, %s25, 3
        %s1924 = scalar_lea.vmem %s6, %s1923
      $region72: #{dense_block_forward.4} parent=63 // pred_fallthru
        _
      // Predicated region
      $region73: #{dense_block_forward.4} parent=63 // pred_check
        %p1925 = pneg %p238
      $region74: #{dense_block_forward.4} parent=63 // pred_check_branch
        %1927 = sbr.rel (%p1925) target = $region76
      $region75: #{dense_block_forward.4} parent=63 // pred_region
        %p1928 = scmp.lt.s32.totalorder %s25, 3
        %s1929 = scalar_select %p1928, %s25, 3
        %s1930 = scalar_lea.vmem %s7, %s1929
      $region76: #{dense_block_forward.4} parent=63 // pred_fallthru
        _
    $region64: #{dense_block_forward.4} parent=5 // pred_fallthru
      _
  $region6: #{dense_block_forward.4} parent=0 // loop_footer
    %s18 = sadd.s32 1, %s14
  $region7: #{dense_block_forward.4} parent=0 // loop_footer_branch
    %13 = sbr.rel target = $region3
  $region8: #{dense_block_forward.4} parent=0 // loop_exit
    _

// kernel: dense_block_forward.5
$region0: #{dense_block_forward.5}
  #allocation0 [shape = 'u32[]', space=smem, size = 0x4, offset = 0x4, fixed_abs, tag = 'smem constant byte address 0x4 - core index']
  #allocation1 [shape = 'u32[144,128]{1,0:T(1,128)}', space=vmem, size = 0x12000, scoped, tag = 'internal scratch']
  #allocation2 [shape = 'f32[10,10,128]{2,1,0:T(8,128)}', space=vmem, size = 0x14000, scoped, tag = 'scratch operand']
  #allocation3 [shape = 'f32[64,128]{1,0:T(8,128)}', space=vmem, size = 0x8000, scoped, tag = 'scratch operand']
  %s0 = inlined_call_operand.vmem [shape: f32[12,8,8,128], index: 0, kind: input, shape index: {}, may-alias: {0,5}]
  %s1 = inlined_call_operand.vmem [shape: f32[2,1,128], index: 1, kind: input, shape index: {}]
  %s2 = inlined_call_operand.vmem [shape: f32[2,1,128], index: 2, kind: input, shape index: {}]
  %s3 = inlined_call_operand.vmem [shape: bf16[2,9,128,128], index: 3, kind: input, shape index: {}]
  %s4 = inlined_call_operand.vmem [shape: f32[1,128], index: 4, kind: input, shape index: {}]
  %s5 = inlined_call_operand.vmem [shape: f32[12,8,8,128], index: 5, kind: output, shape index: {0}, may-alias: {0,5}]
  %s6 = inlined_call_operand.hbm [shape: f32[4,1,128], index: 6, kind: output, shape index: {1}]
  %s7 = inlined_call_operand.hbm [shape: f32[4,1,128], index: 7, kind: output, shape index: {2}]
  %8 = xla_tuple %s5, %s6, %s7
  %s9 = sld [smem:[#allocation0]]
  $region77: #{dense_block_forward.5} parent=0
    _
  %s11 = ssub.s32 1, %s9
  %s12 = scalar_select 0, %s11, %s9
  $region1: #{dense_block_forward.5} parent=0
    #allocation4 [shape = 'u8[1024]{0}', space=vmem, size = 0x400, scoped, tag = 'output window, operand 1']
    #allocation5 [shape = 's32[2]{0}', space=sflag, size = 0x8, scoped, tag = 'scoped memory for dense_block_forward.5']
    #allocation6 [shape = 'u8[1024]{0}', space=vmem, size = 0x400, scoped, tag = 'output window, operand 2']
    #allocation7 [shape = 's32[2]{0}', space=sflag, size = 0x8, scoped, tag = 'scoped memory for dense_block_forward.5']
    %13 = vsyncpa [#allocation5], 0
    %s14 = scalar_lea.sflag [#allocation5], 1
    %15 = vsyncpa %s14, 0
    %16 = vsyncpa [#allocation7], 0
    %s17 = scalar_lea.sflag [#allocation7], 1
    %18 = vsyncpa %s17, 0
    loop: start=0, step=1, limit=10
    $region2: #{dense_block_forward.5} parent=1 // loop_pre_header
      _
    $region3: #{dense_block_forward.5} parent=1 // loop_header
      %s20 = sphi 0, %s24
      %p21 = scmp.ge.s32.totalorder %s20, 10
      %s27 = sphi 0, %s39
      %s28 = sphi 0, %s35
      %s29 = sphi 0, %s27
      %s30 = sphi 0, %s28
      %s31 = sphi 0, %s29
      %s32 = sphi 0, %s30
      %s46 = sphi 0, %s48
      %s49 = sphi 0, %s46
      %s50 = sphi 0, %s49
      %s66 = sphi 0, %s50
      %s72 = sphi 0, %s74
      %s75 = sphi 0, %s72
      %s76 = sphi 0, %s75
      %s92 = sphi 0, %s76
      %s98 = sphi 0, %s100
      %s101 = sphi 0, %s98
      %s102 = sphi 0, %s101
      %s118 = sphi 0, %s102
      %s124 = sphi 0, %s126
      %s127 = sphi 0, %s124
      %s128 = sphi 0, %s127
      %s144 = sphi 0, %s128
      %s148 = sphi 0, %s148
      %s150 = sphi 0, %s148
      %s151 = sphi 0, %s150
      %s165 = sphi 0, %s151
      %s173 = sphi 0, %s175
      %s176 = sphi 0, %s173
      %s177 = sphi 0, %s176
      %s193 = sphi 0, %s177
      %s199 = sphi 0, %s201
      %s202 = sphi 0, %s199
      %s203 = sphi 0, %s202
      %s219 = sphi 0, %s203
      %s225 = sphi 0, %s227
      %s228 = sphi 0, %s225
      %s229 = sphi 0, %s228
      %s245 = sphi 0, %s229
    $region4: #{dense_block_forward.5} parent=1 // loop_header_branch
      %23 = sbr.rel (%p21) target = $region8
    $region5: #{dense_block_forward.5} parent=1 // loop_body
      %s25 = ssub.s32 %s20, 1
      %s26 = ssub.s32 %s20, 2
      %s33 = sadd.s32 1, %s28
      %p34 = scmp.ge.s32.totalorder %s33, 2
      %s35 = scalar_select %p34, 0, %s33
      %s36 = sadd.s32 1, %s27
      %s37 = scalar_select %p34, %s36, %s27
      %p38 = scmp.ge.s32.totalorder %s37, 4
      %s39 = scalar_select %p38, 0, %s37
      %s40 = smul.u32 %s28, 4
      %s41 = sadd.s32 %s40, %s27
      %s42 = smul.u32 %s35, 4
      %s43 = sadd.s32 %s42, %s39
      %s44 = ssub.s32 %s41, %s43
      %p45 = scmp.eq.s32.totalorder %s44, 0
      %s47 = sadd.s32 %s46, 1
      %s48 = scalar_select %p45, %s46, %s47
      %p51 = pneg %p45
      %p52 = scmp.eq.s32.totalorder %s20, 7
      %p53 = por %p51, %p52
      %p54 = scmp.ne.s32.totalorder %s46, %s49
      %p55 = scmp.eq.s32.totalorder %s20, 0
      %p56 = por %p54, %p55
      %p57 = scmp.ne.s32.totalorder %s46, %s49
      %p58 = scmp.eq.s32.totalorder %s25, 7
      %p59 = por %p57, %p58
      %p60 = scmp.ne.s32.totalorder %s49, %s50
      %p61 = scmp.eq.s32.totalorder %s25, 0
      %p62 = por %p60, %p61
      %p63 = scmp.ne.s32.totalorder %s49, %s50
      %p64 = scmp.eq.s32.totalorder %s26, 7
      %p65 = por %p63, %p64
      %p67 = scmp.ne.s32.totalorder %s50, %s66
      %p68 = scmp.eq.s32.totalorder %s26, 0
      %p69 = por %p67, %p68
      %s70 = ssub.s32 %s28, %s35
      %p71 = scmp.eq.s32.totalorder %s70, 0
      %s73 = sadd.s32 %s72, 1
      %s74 = scalar_select %p71, %s72, %s73
      %p77 = pneg %p71
      %p78 = scmp.eq.s32.totalorder %s20, 7
      %p79 = por %p77, %p78
      %p80 = scmp.ne.s32.totalorder %s72, %s75
      %p81 = scmp.eq.s32.totalorder %s20, 0
      %p82 = por %p80, %p81
      %p83 = scmp.ne.s32.totalorder %s72, %s75
      %p84 = scmp.eq.s32.totalorder %s25, 7
      %p85 = por %p83, %p84
      %p86 = scmp.ne.s32.totalorder %s75, %s76
      %p87 = scmp.eq.s32.totalorder %s25, 0
      %p88 = por %p86, %p87
      %p89 = scmp.ne.s32.totalorder %s75, %s76
      %p90 = scmp.eq.s32.totalorder %s26, 7
      %p91 = por %p89, %p90
      %p93 = scmp.ne.s32.totalorder %s76, %s92
      %p94 = scmp.eq.s32.totalorder %s26, 0
      %p95 = por %p93, %p94
      %s96 = ssub.s32 %s28, %s35
      %p97 = scmp.eq.s32.totalorder %s96, 0
      %s99 = sadd.s32 %s98, 1
      %s100 = scalar_select %p97, %s98, %s99
      %p103 = pneg %p97
      %p104 = scmp.eq.s32.totalorder %s20, 7
      %p105 = por %p103, %p104
      %p106 = scmp.ne.s32.totalorder %s98, %s101
      %p107 = scmp.eq.s32.totalorder %s20, 0
      %p108 = por %p106, %p107
      %p109 = scmp.ne.s32.totalorder %s98, %s101
      %p110 = scmp.eq.s32.totalorder %s25, 7
      %p111 = por %p109, %p110
      %p112 = scmp.ne.s32.totalorder %s101, %s102
      %p113 = scmp.eq.s32.totalorder %s25, 0
      %p114 = por %p112, %p113
      %p115 = scmp.ne.s32.totalorder %s101, %s102
      %p116 = scmp.eq.s32.totalorder %s26, 7
      %p117 = por %p115, %p116
      %p119 = scmp.ne.s32.totalorder %s102, %s118
      %p120 = scmp.eq.s32.totalorder %s26, 0
      %p121 = por %p119, %p120
      %s122 = ssub.s32 %s28, %s35
      %p123 = scmp.eq.s32.totalorder %s122, 0
      %s125 = sadd.s32 %s124, 1
      %s126 = scalar_select %p123, %s124, %s125
      %p129 = pneg %p123
      %p130 = scmp.eq.s32.totalorder %s20, 7
      %p131 = por %p129, %p130
      %p132 = scmp.ne.s32.totalorder %s124, %s127
      %p133 = scmp.eq.s32.totalorder %s20, 0
      %p134 = por %p132, %p133
      %p135 = scmp.ne.s32.totalorder %s124, %s127
      %p136 = scmp.eq.s32.totalorder %s25, 7
      %p137 = por %p135, %p136
      %p138 = scmp.ne.s32.totalorder %s127, %s128
      %p139 = scmp.eq.s32.totalorder %s25, 0
      %p140 = por %p138, %p139
      %p141 = scmp.ne.s32.totalorder %s127, %s128
      %p142 = scmp.eq.s32.totalorder %s26, 7
      %p143 = por %p141, %p142
      %p145 = scmp.ne.s32.totalorder %s128, %s144
      %p146 = scmp.eq.s32.totalorder %s26, 0
      %p147 = por %p145, %p146
      %s149 = sadd.s32 %s148, 1
      %p152 = scmp.eq.s32.totalorder %s20, 7
      %p153 = scmp.ne.s32.totalorder %s148, %s150
      %p154 = scmp.eq.s32.totalorder %s20, 0
      %p155 = por %p153, %p154
      %p156 = scmp.ne.s32.totalorder %s148, %s150
      %p157 = scmp.eq.s32.totalorder %s25, 7
      %p158 = por %p156, %p157
      %p159 = scmp.ne.s32.totalorder %s150, %s151
      %p160 = scmp.eq.s32.totalorder %s25, 0
      %p161 = por %p159, %p160
      %p162 = scmp.ne.s32.totalorder %s150, %s151
      %p163 = scmp.eq.s32.totalorder %s26, 7
      %p164 = por %p162, %p163
      %p166 = scmp.ne.s32.totalorder %s151, %s165
      %p167 = scmp.eq.s32.totalorder %s26, 0
      %p168 = por %p166, %p167
      %s169 = sadd.s32 %s27, 8
      %s170 = sadd.s32 %s39, 8
      %s171 = ssub.s32 %s169, %s170
      %p172 = scmp.eq.s32.totalorder %s171, 0
      %s174 = sadd.s32 %s173, 1
      %s175 = scalar_select %p172, %s173, %s174
      %p178 = pneg %p172
      %p179 = scmp.eq.s32.totalorder %s20, 7
      %p180 = por %p178, %p179
      %p181 = scmp.ne.s32.totalorder %s173, %s176
      %p182 = scmp.eq.s32.totalorder %s20, 0
      %p183 = por %p181, %p182
      %p184 = scmp.ne.s32.totalorder %s173, %s176
      %p185 = scmp.eq.s32.totalorder %s25, 7
      %p186 = por %p184, %p185
      %p187 = scmp.ne.s32.totalorder %s176, %s177
      %p188 = scmp.eq.s32.totalorder %s25, 0
      %p189 = por %p187, %p188
      %p190 = scmp.ne.s32.totalorder %s176, %s177
      %p191 = scmp.eq.s32.totalorder %s26, 7
      %p192 = por %p190, %p191
      %p194 = scmp.ne.s32.totalorder %s177, %s193
      %p195 = scmp.eq.s32.totalorder %s26, 0
      %p196 = por %p194, %p195
      %s197 = ssub.s32 %s27, %s39
      %p198 = scmp.eq.s32.totalorder %s197, 0
      %s200 = sadd.s32 %s199, 1
      %s201 = scalar_select %p198, %s199, %s200
      %p204 = pneg %p198
      %p205 = scmp.eq.s32.totalorder %s20, 7
      %p206 = por %p204, %p205
      %p207 = scmp.ne.s32.totalorder %s199, %s202
      %p208 = scmp.eq.s32.totalorder %s20, 0
      %p209 = por %p207, %p208
      %p210 = scmp.ne.s32.totalorder %s199, %s202
      %p211 = scmp.eq.s32.totalorder %s25, 7
      %p212 = por %p210, %p211
      %p213 = scmp.ne.s32.totalorder %s202, %s203
      %p214 = scmp.eq.s32.totalorder %s25, 0
      %p215 = por %p213, %p214
      %p216 = scmp.ne.s32.totalorder %s202, %s203
      %p217 = scmp.eq.s32.totalorder %s26, 7
      %p218 = por %p216, %p217
      %p220 = scmp.ne.s32.totalorder %s203, %s219
      %p221 = scmp.eq.s32.totalorder %s26, 0
      %p222 = por %p220, %p221
      %s223 = ssub.s32 %s27, %s39
      %p224 = scmp.eq.s32.totalorder %s223, 0
      %s226 = sadd.s32 %s225, 1
      %s227 = scalar_select %p224, %s225, %s226
      %p230 = pneg %p224
      %p231 = scmp.eq.s32.totalorder %s20, 7
      %p232 = por %p230, %p231
      %p233 = scmp.ne.s32.totalorder %s225, %s228
      %p234 = scmp.eq.s32.totalorder %s20, 0
      %p235 = por %p233, %p234
      %p236 = scmp.ne.s32.totalorder %s225, %s228
      %p237 = scmp.eq.s32.totalorder %s25, 7
      %p238 = por %p236, %p237
      %p239 = scmp.ne.s32.totalorder %s228, %s229
      %p240 = scmp.eq.s32.totalorder %s25, 0
      %p241 = por %p239, %p240
      %p242 = scmp.ne.s32.totalorder %s228, %s229
      %p243 = scmp.eq.s32.totalorder %s26, 7
      %p244 = por %p242, %p243
      %p246 = scmp.ne.s32.totalorder %s229, %s245
      %p247 = scmp.eq.s32.totalorder %s26, 0
      %p248 = por %p246, %p247
      %p249 = scmp.le.s32.totalorder 1, %s20
      %p250 = scmp.lt.s32.totalorder %s20, 9
      %p251 = pnand %p249, %p250
      %p252 = pneg %p251
      // Predicated region
      $region9: #{dense_block_forward.5} parent=5 // pred_check
        _
      $region10: #{dense_block_forward.5} parent=5 // pred_check_branch
        %254 = sbr.rel (%p251) target = $region12
      $region11: #{dense_block_forward.5} parent=5 // pred_region
        %s255 = ssub.s32 %s20, 1
        // Predicated region
        $region13: #{dense_block_forward.5} parent=11 // pred_check
          %p256 = pneg %p161
        $region14: #{dense_block_forward.5} parent=11 // pred_check_branch
          %258 = sbr.rel (%p256) target = $region16
        $region15: #{dense_block_forward.5} parent=11 // pred_region
          _
        $region16: #{dense_block_forward.5} parent=11 // pred_fallthru
          _
      $region12: #{dense_block_forward.5} parent=5 // pred_fallthru
        _
      %p259 = scmp.lt.s32.totalorder %s20, 8
      // Predicated region
      $region17: #{dense_block_forward.5} parent=5 // pred_check
        %p260 = pneg %p259
      $region18: #{dense_block_forward.5} parent=5 // pred_check_branch
        %262 = sbr.rel (%p260) target = $region20
      $region19: #{dense_block_forward.5} parent=5 // pred_region
        // Predicated region
        $region21: #{dense_block_forward.5} parent=19 // pred_check
          %p263 = pneg %p56
        $region22: #{dense_block_forward.5} parent=19 // pred_check_branch
          %265 = sbr.rel (%p263) target = $region24
        $region23: #{dense_block_forward.5} parent=19 // pred_region
          %s266 = smul.u32 %s28, 4
          %s267 = sadd.s32 %s266, %s27
          %p268 = scmp.lt.s32.totalorder %s267, 11
          %s269 = scalar_select %p268, %s267, 11
          %s270 = smul.addr %s269, 8
          %s271 = smul.addr %s270, 8
          %s272 = scalar_lea.vmem %s0, %s271
          %s273 = smul.u32 %s28, 4
          %s274 = sadd.s32 %s273, %s27
        $region24: #{dense_block_forward.5} parent=19 // pred_fallthru
          _
        // Predicated region
        $region25: #{dense_block_forward.5} parent=19 // pred_check
          %p275 = pneg %p82
        $region26: #{dense_block_forward.5} parent=19 // pred_check_branch
          %277 = sbr.rel (%p275) target = $region28
        $region27: #{dense_block_forward.5} parent=19 // pred_region
          %p278 = scmp.lt.s32.totalorder %s28, 1
          %s279 = scalar_select %p278, %s28, 1
          %s280 = scalar_lea.vmem %s1, %s279
        $region28: #{dense_block_forward.5} parent=19 // pred_fallthru
          _
        // Predicated region
        $region29: #{dense_block_forward.5} parent=19 // pred_check
          %p281 = pneg %p108
        $region30: #{dense_block_forward.5} parent=19 // pred_check_branch
          %283 = sbr.rel (%p281) target = $region32
        $region31: #{dense_block_forward.5} parent=19 // pred_region
          %p284 = scmp.lt.s32.totalorder %s28, 1
          %s285 = scalar_select %p284, %s28, 1
          %s286 = scalar_lea.vmem %s2, %s285
        $region32: #{dense_block_forward.5} parent=19 // pred_fallthru
          _
        // Predicated region
        $region33: #{dense_block_forward.5} parent=19 // pred_check
          %p287 = pneg %p134
        $region34: #{dense_block_forward.5} parent=19 // pred_check_branch
          %289 = sbr.rel (%p287) target = $region36
        $region35: #{dense_block_forward.5} parent=19 // pred_region
          %p290 = scmp.lt.s32.totalorder %s28, 1
          %s291 = scalar_select %p290, %s28, 1
          %s292 = smul.addr %s291, 144
          %s293 = smul.addr %s292, 4
          %s294 = scalar_lea.vmem %s3, %s293
        $region36: #{dense_block_forward.5} parent=19 // pred_fallthru
          _
      $region20: #{dense_block_forward.5} parent=5 // pred_fallthru
        _
      %p295 = scmp.le.s32.totalorder 1, %s20
      %p296 = scmp.lt.s32.totalorder %s20, 9
      %p297 = pnand %p295, %p296
      %p298 = pneg %p297
      // Predicated region
      $region37: #{dense_block_forward.5} parent=5 // pred_check
        _
      $region38: #{dense_block_forward.5} parent=5 // pred_check_branch
        %300 = sbr.rel (%p297) target = $region40
      $region39: #{dense_block_forward.5} parent=5 // pred_region
        %s301 = ssub.s32 %s20, 1
        %s302 = smul.u32 %s30, 4
        %s303 = sadd.s32 %s302, %s29
        %p304 = scmp.lt.s32.totalorder %s303, 11
        %s305 = scalar_select %p304, %s303, 11
        %s306 = smul.addr %s305, 8
        %s307 = smul.addr %s306, 8
        %s308 = scalar_lea.vmem %s0, %s307
        %p309 = pneg %p62
        %p310 = pneg %p59
        %p311 = scmp.lt.s32.totalorder %s30, 1
        %s312 = scalar_select %p311, %s30, 1
        %s313 = scalar_lea.vmem %s1, %s312
        %p314 = pneg %p88
        %p315 = pneg %p85
        %p316 = scmp.lt.s32.totalorder %s30, 1
        %s317 = scalar_select %p316, %s30, 1
        %s318 = scalar_lea.vmem %s2, %s317
        %p319 = pneg %p114
        %p320 = pneg %p111
        %p321 = scmp.lt.s32.totalorder %s30, 1
        %s322 = scalar_select %p321, %s30, 1
        %s323 = smul.addr %s322, 144
        %s324 = smul.addr %s323, 4
        %s325 = scalar_lea.vmem %s3, %s324
        %p326 = pneg %p140
        %p327 = pneg %p137
        %p328 = pneg %p161
        %p329 = pneg %p158
        %p330 = pneg %p189
        %p331 = pneg %p186
        %s332 = sadd.s32 %s29, 8
        %p333 = scmp.lt.s32.totalorder %s332, 11
        %s334 = scalar_select %p333, %s332, 11
        %s335 = smul.addr %s334, 8
        %s336 = smul.addr %s335, 8
        %s337 = scalar_lea.vmem %s5, %s336
        %p338 = pneg %p215
        %p339 = pneg %p212
        %s340 = sand.u32 %s202, 1
        %s341 = scalar_lea.sflag [#allocation5], %s340
        %s342 = sand.u32 %s202, 1
        %s343 = scalar_lea.vmem [#allocation4], %s342
        %p344 = pneg %p241
        %p345 = pneg %p238
        %s346 = sand.u32 %s228, 1
        %s347 = scalar_lea.sflag [#allocation7], %s346
        %s348 = sand.u32 %s228, 1
        %s349 = scalar_lea.vmem [#allocation6], %s348
        %s350 = smul.u32 %s30, 4
        %s351 = sadd.s32 %s350, %s29
        %p352 = scmp.lt.s32.totalorder %s351, 11
        %s353 = scalar_select %p352, %s351, 11
        %s354 = smul.addr %s353, 8
        %s355 = smul.addr %s354, 8
        %s356 = scalar_lea.vmem %s0, %s355
        %s357 = smul.u32 %s30, 4
        %s358 = sadd.s32 %s357, %s29
        %p359 = scmp.lt.s32.totalorder %s30, 1
        %s360 = scalar_select %p359, %s30, 1
        %s361 = scalar_lea.vmem %s1, %s360
        %p362 = scmp.lt.s32.totalorder %s30, 1
        %s363 = scalar_select %p362, %s30, 1
        %s364 = scalar_lea.vmem %s2, %s363
        %p365 = scmp.lt.s32.totalorder %s30, 1
        %s366 = scalar_select %p365, %s30, 1
        %s367 = smul.addr %s366, 144
        %s368 = smul.addr %s367, 4
        %s369 = scalar_lea.vmem %s3, %s368
        %s370 = sadd.s32 %s29, 8
        %p371 = scmp.lt.s32.totalorder %s370, 11
        %s372 = scalar_select %p371, %s370, 11
        %s373 = smul.addr %s372, 8
        %s374 = smul.addr %s373, 8
        %s375 = scalar_lea.vmem %s5, %s374
        %s376 = sadd.s32 %s29, 8
        %p378 = scmp.eq.s32.totalorder %s30, 0
        // Predicated region
        $region41: #{dense_block_forward.5} parent=39 // pred_check
          %p379 = pneg %p378
        $region42: #{dense_block_forward.5} parent=39 // pred_check_branch
          %381 = sbr.rel (%p379) target = $region44
        $region43: #{dense_block_forward.5} parent=39 // pred_region
          %v382 = vld [vmem:[%s4] sm:$0x1]
          %v384 = vlaneseq
          %v385 = vshrl.u32 %v384, 7
          %v386 = vsub.s32 0, %v385
          %v387 = vrot.slane %v382, %v386
          %389 = vst [vmem:[#allocation3] sm:$0xff] %v387
          %390 = vst [vmem:[#allocation3 + $0x8] sm:$0xff] %v387
          %391 = vst [vmem:[#allocation3 + $0x10] sm:$0xff] %v387
          %392 = vst [vmem:[#allocation3 + $0x18] sm:$0xff] %v387
          %393 = vst [vmem:[#allocation3 + $0x20] sm:$0xff] %v387
          %394 = vst [vmem:[#allocation3 + $0x28] sm:$0xff] %v387
          %395 = vst [vmem:[#allocation3 + $0x30] sm:$0xff] %v387
          %396 = vst [vmem:[#allocation3 + $0x38] sm:$0xff] %v387
        $region44: #{dense_block_forward.5} parent=39 // pred_fallthru
          _
        %v397 = vld [vmem:[%s356] sm:$0xff]
        %v398 = vld [vmem:[%s356 + $0x8] sm:$0xff]
        %v399 = vld [vmem:[%s356 + $0x10] sm:$0xff]
        %v400 = vld [vmem:[%s356 + $0x18] sm:$0xff]
        %v401 = vld [vmem:[%s356 + $0x20] sm:$0xff]
        %v402 = vld [vmem:[%s356 + $0x28] sm:$0xff]
        %v403 = vld [vmem:[%s356 + $0x30] sm:$0xff]
        %v404 = vld [vmem:[%s356 + $0x38] sm:$0xff]
        %v405 = vld [vmem:[%s361] sm:$0x1]
        %v407 = vlaneseq
        %v408 = vshrl.u32 %v407, 7
        %v409 = vsub.s32 0, %v408
        %v410 = vrot.slane %v405, %v409
        %v412 = vmul.f32 %v397, %v410
        %v413 = vmul.f32 %v398, %v410
        %v414 = vmul.f32 %v399, %v410
        %v415 = vmul.f32 %v400, %v410
        %v416 = vmul.f32 %v401, %v410
        %v417 = vmul.f32 %v402, %v410
        %v418 = vmul.f32 %v403, %v410
        %v419 = vmul.f32 %v404, %v410
        %v420 = vld [vmem:[%s364] sm:$0x1]
        %v422 = vlaneseq
        %v423 = vshrl.u32 %v422, 7
        %v424 = vsub.s32 0, %v423
        %v425 = vrot.slane %v420, %v424
        %v427 = vadd.f32 %v412, %v425
        %v428 = vadd.f32 %v413, %v425
        %v429 = vadd.f32 %v414, %v425
        %v430 = vadd.f32 %v415, %v425
        %v431 = vadd.f32 %v416, %v425
        %v432 = vadd.f32 %v417, %v425
        %v433 = vadd.f32 %v418, %v425
        %v434 = vadd.f32 %v419, %v425
        %v435 = vmax.f32 %v427, 0.0
        %v436 = vmax.f32 %v428, 0.0
        %v437 = vmax.f32 %v429, 0.0
        %v438 = vmax.f32 %v430, 0.0
        %v439 = vmax.f32 %v431, 0.0
        %v440 = vmax.f32 %v432, 0.0
        %v441 = vmax.f32 %v433, 0.0
        %v442 = vmax.f32 %v434, 0.0
        %443 = vst [vmem:[#allocation2] sm:$0xff] 0.0
        %444 = vst [vmem:[#allocation2 + $0x8] sm:$0x3] 0.0
        %445 = vst [vmem:[#allocation2 + $0x10] sm:$0xff] 0.0
        %446 = vst [vmem:[#allocation2 + $0x18] sm:$0x3] 0.0
        %447 = vst [vmem:[#allocation2 + $0x20] sm:$0xff] 0.0
        %448 = vst [vmem:[#allocation2 + $0x28] sm:$0x3] 0.0
        %449 = vst [vmem:[#allocation2 + $0x30] sm:$0xff] 0.0
        %450 = vst [vmem:[#allocation2 + $0x38] sm:$0x3] 0.0
        %451 = vst [vmem:[#allocation2 + $0x40] sm:$0xff] 0.0
        %452 = vst [vmem:[#allocation2 + $0x48] sm:$0x3] 0.0
        %453 = vst [vmem:[#allocation2 + $0x50] sm:$0xff] 0.0
        %454 = vst [vmem:[#allocation2 + $0x58] sm:$0x3] 0.0
        %455 = vst [vmem:[#allocation2 + $0x60] sm:$0xff] 0.0
        %456 = vst [vmem:[#allocation2 + $0x68] sm:$0x3] 0.0
        %457 = vst [vmem:[#allocation2 + $0x70] sm:$0xff] 0.0
        %458 = vst [vmem:[#allocation2 + $0x78] sm:$0x3] 0.0
        %459 = vst [vmem:[#allocation2 + $0x80] sm:$0xff] 0.0
        %460 = vst [vmem:[#allocation2 + $0x88] sm:$0x3] 0.0
        %461 = vst [vmem:[#allocation2 + $0x90] sm:$0xff] 0.0
        %462 = vst [vmem:[#allocation2 + $0x98] sm:$0x3] 0.0
        %s463 = scalar_lea.vmem [#allocation2], 16
        %464 = vst [vmem:[%s463 + $0x1] sm:$0xff] %v435
        %465 = vst [vmem:[%s463 + $0x11] sm:$0xff] %v436
        %466 = vst [vmem:[%s463 + $0x21] sm:$0xff] %v437
        %467 = vst [vmem:[%s463 + $0x31] sm:$0xff] %v438
        %468 = vst [vmem:[%s463 + $0x41] sm:$0xff] %v439
        %469 = vst [vmem:[%s463 + $0x51] sm:$0xff] %v440
        %470 = vst [vmem:[%s463 + $0x61] sm:$0xff] %v441
        %471 = vst [vmem:[%s463 + $0x71] sm:$0xff] %v442
        %v472 = vld [vmem:[#allocation3] sm:$0xff]
        %v473 = vld [vmem:[#allocation3 + $0x8] sm:$0xff]
        %v474 = vld [vmem:[#allocation3 + $0x10] sm:$0xff]
        %v475 = vld [vmem:[#allocation3 + $0x18] sm:$0xff]
        %v476 = vld [vmem:[#allocation3 + $0x20] sm:$0xff]
        %v477 = vld [vmem:[#allocation3 + $0x28] sm:$0xff]
        %v478 = vld [vmem:[#allocation3 + $0x30] sm:$0xff]
        %v479 = vld [vmem:[#allocation3 + $0x38] sm:$0xff]
        %v480 = vld [vmem:[#allocation2] sm:$0xff]
        %v481 = vld [vmem:[#allocation2 + $0x10] sm:$0xff]
        %v482 = vld [vmem:[#allocation2 + $0x20] sm:$0xff]
        %v483 = vld [vmem:[#allocation2 + $0x30] sm:$0xff]
        %v484 = vld [vmem:[#allocation2 + $0x40] sm:$0xff]
        %v485 = vld [vmem:[#allocation2 + $0x50] sm:$0xff]
        %v486 = vld [vmem:[#allocation2 + $0x60] sm:$0xff]
        %v487 = vld [vmem:[#allocation2 + $0x70] sm:$0xff]
        %v488 = vpack.c.bf16 %v481, %v480
        %v489 = vpack.c.bf16 %v483, %v482
        %v490 = vpack.c.bf16 %v485, %v484
        %v491 = vpack.c.bf16 %v487, %v486
        %v492 = vld [vmem:[%s369] sm:$0xf]
        %v493 = vld [vmem:[%s369 + $0x4] sm:$0xf]
        %v494 = vld [vmem:[%s369 + $0x8] sm:$0xf]
        %v495 = vld [vmem:[%s369 + $0xc] sm:$0xf]
        %v496 = vld [vmem:[%s369 + $0x10] sm:$0xf]
        %v497 = vld [vmem:[%s369 + $0x14] sm:$0xf]
        %v498 = vld [vmem:[%s369 + $0x18] sm:$0xf]
        %v499 = vld [vmem:[%s369 + $0x1c] sm:$0xf]
        %v500 = vld [vmem:[%s369 + $0x20] sm:$0xf]
        %v501 = vld [vmem:[%s369 + $0x24] sm:$0xf]
        %v502 = vld [vmem:[%s369 + $0x28] sm:$0xf]
        %v503 = vld [vmem:[%s369 + $0x2c] sm:$0xf]
        %v504 = vld [vmem:[%s369 + $0x30] sm:$0xf]
        %v505 = vld [vmem:[%s369 + $0x34] sm:$0xf]
        %v506 = vld [vmem:[%s369 + $0x38] sm:$0xf]
        %v507 = vld [vmem:[%s369 + $0x3c] sm:$0xf]
        %v524 = vunpack.c.l.b16 %v492
        %v525 = vunpack.c.l.b16 %v493
        %v526 = vunpack.c.l.b16 %v494
        %v527 = vunpack.c.l.b16 %v495
        %v528 = vunpack.c.l.b16 %v496
        %v529 = vunpack.c.l.b16 %v497
        %v530 = vunpack.c.l.b16 %v498
        %v531 = vunpack.c.l.b16 %v499
        %v532 = vunpack.c.l.b16 %v500
        %v533 = vunpack.c.l.b16 %v501
        %v534 = vunpack.c.l.b16 %v502
        %v535 = vunpack.c.l.b16 %v503
        %v536 = vunpack.c.l.b16 %v504
        %v537 = vunpack.c.l.b16 %v505
        %v538 = vunpack.c.l.b16 %v506
        %v539 = vunpack.c.l.b16 %v507
        %v540 = vpack.c.b16 %v525, %v524
        %v541 = vpack.c.b16 %v527, %v526
        %v542 = vpack.c.b16 %v529, %v528
        %v543 = vpack.c.b16 %v531, %v530
        %v544 = vpack.c.b16 %v533, %v532
        %v545 = vpack.c.b16 %v535, %v534
        %v546 = vpack.c.b16 %v537, %v536
        %v547 = vpack.c.b16 %v539, %v538
        %556 = vmatprep.subr.bf16.mxu0 0
        %557 = vmatpush1.bf16.msra.mxu0 %v540
        %558 = vmatprep.subr.bf16.mxu0 0
        %559 = vmatpush1.bf16.msra.mxu0 %v541
        %560 = vmatprep.subr.bf16.mxu0 0
        %561 = vmatpush1.bf16.msra.mxu0 %v542
        %562 = vmatprep.subr.bf16.mxu0 0
        %563 = vmatpush1.bf16.msra.mxu0 %v543
        %564 = vmatprep.subr.bf16.mxu0 0
        %565 = vmatpush1.bf16.msra.mxu0 %v544
        %566 = vmatprep.subr.bf16.mxu0 0
        %567 = vmatpush1.bf16.msra.mxu0 %v545
        %568 = vmatprep.subr.bf16.mxu0 0
        %569 = vmatpush1.bf16.msra.mxu0 %v546
        %570 = vmatprep.subr.bf16.mxu0 0
        %571 = vmatpush1.bf16.msra.mxu0 %v547
        %572 = vmatprep.subr.bf16.mxu0 0
        %573 = vmatpush1.bf16.msra.mxu0 0
        %574 = vmatprep.subr.bf16.mxu0 0
        %575 = vmatpush1.bf16.msra.mxu0 0
        %576 = vmatprep.subr.bf16.mxu0 0
        %577 = vmatpush1.bf16.msra.mxu0 0
        %578 = vmatprep.subr.bf16.mxu0 0
        %579 = vmatpush1.bf16.msra.mxu0 0
        %580 = vmatprep.subr.bf16.mxu0 0
        %581 = vmatpush1.bf16.msra.mxu0 0
        %582 = vmatprep.subr.bf16.mxu0 0
        %583 = vmatpush1.bf16.msra.mxu0 0
        %584 = vmatprep.subr.bf16.mxu0 0
        %585 = vmatpush1.bf16.msra.mxu0 0
        %586 = vmatprep.subr.bf16.mxu0 0
        %587 = vmatpush1.bf16.msra.mxu0 0
        %588 = vmatprep.mubr.bf16.mxu0 0
        %589 = vmatmul.mubr.bf16.gmra.mrb[0].mxu0 %v488
        %v590 = vpop.f32.mrb[0].mxu0
        %v591 = vadd.f32 0.0, %v590
        %v592 = vpop.f32.mrb[0].mxu0
        %v593 = vpop.f32.mrb[0].mxu0
        %v594 = vadd.f32 0.0, %v593
        %v595 = vpop.f32.mrb[0].mxu0
        %596 = vmatprep.mubr.bf16.mxu0 0
        %597 = vmatmul.mubr.bf16.gmra.mrb[0].mxu0 %v489
        %v598 = vpop.f32.mrb[0].mxu0
        %v599 = vadd.f32 0.0, %v598
        %v600 = vpop.f32.mrb[0].mxu0
        %v601 = vpop.f32.mrb[0].mxu0
        %v602 = vadd.f32 0.0, %v601
        %v603 = vpop.f32.mrb[0].mxu0
        %604 = vmatprep.mubr.bf16.mxu0 0
        %605 = vmatmul.mubr.bf16.gmra.mrb[0].mxu0 %v490
        %v606 = vpop.f32.mrb[0].mxu0
        %v607 = vadd.f32 0.0, %v606
        %v608 = vpop.f32.mrb[0].mxu0
        %v609 = vpop.f32.mrb[0].mxu0
        %v610 = vadd.f32 0.0, %v609
        %v611 = vpop.f32.mrb[0].mxu0
        %612 = vmatprep.mubr.bf16.mxu0 0
        %613 = vmatmul.mubr.bf16.gmra.mrb[0].mxu0 %v491
        %v614 = vpop.f32.mrb[0].mxu0
        %v615 = vadd.f32 0.0, %v614
        %v616 = vpop.f32.mrb[0].mxu0
        %v617 = vpop.f32.mrb[0].mxu0
        %v618 = vadd.f32 0.0, %v617
        %v619 = vpop.f32.mrb[0].mxu0
        %620 = vdwg.mxu0
        %v621 = vadd.f32 %v472, %v591
        %v622 = vadd.f32 %v473, %v594
        %v623 = vadd.f32 %v474, %v599
        %v624 = vadd.f32 %v475, %v602
        %v625 = vadd.f32 %v476, %v607
        %v626 = vadd.f32 %v477, %v610
        %v627 = vadd.f32 %v478, %v615
        %v628 = vadd.f32 %v479, %v618
        %v629 = vld [vmem:[#allocation2 + $0x1] sm:$0xff]
        %v630 = vld [vmem:[#allocation2 + $0x11] sm:$0xff]
        %v631 = vld [vmem:[#allocation2 + $0x21] sm:$0xff]
        %v632 = vld [vmem:[#allocation2 + $0x31] sm:$0xff]
        %v633 = vld [vmem:[#allocation2 + $0x41] sm:$0xff]
        %v634 = vld [vmem:[#allocation2 + $0x51] sm:$0xff]
        %v635 = vld [vmem:[#allocation2 + $0x61] sm:$0xff]
        %v636 = vld [vmem:[#allocation2 + $0x71] sm:$0xff]
        %v637 = vpack.c.bf16 %v630, %v629
        %v638 = vpack.c.bf16 %v632, %v631
        %v639 = vpack.c.bf16 %v634, %v633
        %v640 = vpack.c.bf16 %v636, %v635
        %s641 = scalar_lea.vmem %s369, 64
        %v642 = vld [vmem:[%s641] sm:$0xf]
        %v643 = vld [vmem:[%s641 + $0x4] sm:$0xf]
        %v644 = vld [vmem:[%s641 + $0x8] sm:$0xf]
        %v645 = vld [vmem:[%s641 + $0xc] sm:$0xf]
        %v646 = vld [vmem:[%s641 + $0x10] sm:$0xf]
        %v647 = vld [vmem:[%s641 + $0x14] sm:$0xf]
        %v648 = vld [vmem:[%s641 + $0x18] sm:$0xf]
        %v649 = vld [vmem:[%s641 + $0x1c] sm:$0xf]
        %v650 = vld [vmem:[%s641 + $0x20] sm:$0xf]
        %v651 = vld [vmem:[%s641 + $0x24] sm:$0xf]
        %v652 = vld [vmem:[%s641 + $0x28] sm:$0xf]
        %v653 = vld [vmem:[%s641 + $0x2c] sm:$0xf]
        %v654 = vld [vmem:[%s641 + $0x30] sm:$0xf]
        %v655 = vld [vmem:[%s641 + $0x34] sm:$0xf]
        %v656 = vld [vmem:[%s641 + $0x38] sm:$0xf]
        %v657 = vld [vmem:[%s641 + $0x3c] sm:$0xf]
        %v674 = vunpack.c.l.b16 %v642
        %v675 = vunpack.c.l.b16 %v643
        %v676 = vunpack.c.l.b16 %v644
        %v677 = vunpack.c.l.b16 %v645
        %v678 = vunpack.c.l.b16 %v646
        %v679 = vunpack.c.l.b16 %v647
        %v680 = vunpack.c.l.b16 %v648
        %v681 = vunpack.c.l.b16 %v649
        %v682 = vunpack.c.l.b16 %v650
        %v683 = vunpack.c.l.b16 %v651
        %v684 = vunpack.c.l.b16 %v652
        %v685 = vunpack.c.l.b16 %v653
        %v686 = vunpack.c.l.b16 %v654
        %v687 = vunpack.c.l.b16 %v655
        %v688 = vunpack.c.l.b16 %v656
        %v689 = vunpack.c.l.b16 %v657
        %v690 = vpack.c.b16 %v675, %v674
        %v691 = vpack.c.b16 %v677, %v676
        %v692 = vpack.c.b16 %v679, %v678
        %v693 = vpack.c.b16 %v681, %v680
        %v694 = vpack.c.b16 %v683, %v682
        %v695 = vpack.c.b16 %v685, %v684
        %v696 = vpack.c.b16 %v687, %v686
        %v697 = vpack.c.b16 %v689, %v688
        %706 = vmatprep.subr.bf16.mxu0 0
        %707 = vmatpush1.bf16.msra.mxu0 %v690
        %708 = vmatprep.subr.bf16.mxu0 0
        %709 = vmatpush1.bf16.msra.mxu0 %v691
        %710 = vmatprep.subr.bf16.mxu0 0
        %711 = vmatpush1.bf16.msra.mxu0 %v692
        %712 = vmatprep.subr.bf16.mxu0 0
        %713 = vmatpush1.bf16.msra.mxu0 %v693
        %714 = vmatprep.subr.bf16.mxu0 0
        %715 = vmatpush1.bf16.msra.mxu0 %v694
        %716 = vmatprep.subr.bf16.mxu0 0
        %717 = vmatpush1.bf16.msra.mxu0 %v695
        %718 = vmatprep.subr.bf16.mxu0 0
        %719 = vmatpush1.bf16.msra.mxu0 %v696
        %720 = vmatprep.subr.bf16.mxu0 0
        %721 = vmatpush1.bf16.msra.mxu0 %v697
        %722 = vmatprep.subr.bf16.mxu0 0
        %723 = vmatpush1.bf16.msra.mxu0 0
        %724 = vmatprep.subr.bf16.mxu0 0
        %725 = vmatpush1.bf16.msra.mxu0 0
        %726 = vmatprep.subr.bf16.mxu0 0
        %727 = vmatpush1.bf16.msra.mxu0 0
        %728 = vmatprep.subr.bf16.mxu0 0
        %729 = vmatpush1.bf16.msra.mxu0 0
        %730 = vmatprep.subr.bf16.mxu0 0
        %731 = vmatpush1.bf16.msra.mxu0 0
        %732 = vmatprep.subr.bf16.mxu0 0
        %733 = vmatpush1.bf16.msra.mxu0 0
        %734 = vmatprep.subr.bf16.mxu0 0
        %735 = vmatpush1.bf16.msra.mxu0 0
        %736 = vmatprep.subr.bf16.mxu0 0
        %737 = vmatpush1.bf16.msra.mxu0 0
        %738 = vmatprep.mubr.bf16.mxu0 0
        %739 = vmatmul.mubr.bf16.gmra.mrb[0].mxu0 %v637
        %v740 = vpop.f32.mrb[0].mxu0
        %v741 = vadd.f32 0.0, %v740
        %v742 = vpop.f32.mrb[0].mxu0
        %v743 = vpop.f32.mrb[0].mxu0
        %v744 = vadd.f32 0.0, %v743
        %v745 = vpop.f32.mrb[0].mxu0
        %746 = vmatprep.mubr.bf16.mxu0 0
        %747 = vmatmul.mubr.bf16.gmra.mrb[0].mxu0 %v638
        %v748 = vpop.f32.mrb[0].mxu0
        %v749 = vadd.f32 0.0, %v748
        %v750 = vpop.f32.mrb[0].mxu0
        %v751 = vpop.f32.mrb[0].mxu0
        %v752 = vadd.f32 0.0, %v751
        %v753 = vpop.f32.mrb[0].mxu0
        %754 = vmatprep.mubr.bf16.mxu0 0
        %755 = vmatmul.mubr.bf16.gmra.mrb[0].mxu0 %v639
        %v756 = vpop.f32.mrb[0].mxu0
        %v757 = vadd.f32 0.0, %v756
        %v758 = vpop.f32.mrb[0].mxu0
        %v759 = vpop.f32.mrb[0].mxu0
        %v760 = vadd.f32 0.0, %v759
        %v761 = vpop.f32.mrb[0].mxu0
        %762 = vmatprep.mubr.bf16.mxu0 0
        %763 = vmatmul.mubr.bf16.gmra.mrb[0].mxu0 %v640
        %v764 = vpop.f32.mrb[0].mxu0
        %v765 = vadd.f32 0.0, %v764
        %v766 = vpop.f32.mrb[0].mxu0
        %v767 = vpop.f32.mrb[0].mxu0
        %v768 = vadd.f32 0.0, %v767
        %v769 = vpop.f32.mrb[0].mxu0
        %770 = vdwg.mxu0
        %v771 = vadd.f32 %v621, %v741
        %v772 = vadd.f32 %v622, %v744
        %v773 = vadd.f32 %v623, %v749
        %v774 = vadd.f32 %v624, %v752
        %v775 = vadd.f32 %v625, %v757
        %v776 = vadd.f32 %v626, %v760
        %v777 = vadd.f32 %v627, %v765
        %v778 = vadd.f32 %v628, %v768
        %v779 = vld [vmem:[#allocation2 + $0x2] sm:$0xff]
        %v780 = vld [vmem:[#allocation2 + $0x12] sm:$0xff]
        %v781 = vld [vmem:[#allocation2 + $0x22] sm:$0xff]
        %v782 = vld [vmem:[#allocation2 + $0x32] sm:$0xff]
        %v783 = vld [vmem:[#allocation2 + $0x42] sm:$0xff]
        %v784 = vld [vmem:[#allocation2 + $0x52] sm:$0xff]
        %v785 = vld [vmem:[#allocation2 + $0x62] sm:$0xff]
        %v786 = vld [vmem:[#allocation2 + $0x72] sm:$0xff]
        %v787 = vpack.c.bf16 %v780, %v779
        %v788 = vpack.c.bf16 %v782, %v781
        %v789 = vpack.c.bf16 %v784, %v783
        %v790 = vpack.c.bf16 %v786, %v785
        %s791 = scalar_lea.vmem %s369, 128
        %v792 = vld [vmem:[%s791] sm:$0xf]
        %v793 = vld [vmem:[%s791 + $0x4] sm:$0xf]
        %v794 = vld [vmem:[%s791 + $0x8] sm:$0xf]
        %v795 = vld [vmem:[%s791 + $0xc] sm:$0xf]
        %v796 = vld [vmem:[%s791 + $0x10] sm:$0xf]
        %v797 = vld [vmem:[%s791 + $0x14] sm:$0xf]
        %v798 = vld [vmem:[%s791 + $0x18] sm:$0xf]
        %v799 = vld [vmem:[%s791 + $0x1c] sm:$0xf]
        %v800 = vld [vmem:[%s791 + $0x20] sm:$0xf]
        %v801 = vld [vmem:[%s791 + $0x24] sm:$0xf]
        %v802 = vld [vmem:[%s791 + $0x28] sm:$0xf]
        %v803 = vld [vmem:[%s791 + $0x2c] sm:$0xf]
        %v804 = vld [vmem:[%s791 + $0x30] sm:$0xf]
        %v805 = vld [vmem:[%s791 + $0x34] sm:$0xf]
        %v806 = vld [vmem:[%s791 + $0x38] sm:$0xf]
        %v807 = vld [vmem:[%s791 + $0x3c] sm:$0xf]
        %v824 = vunpack.c.l.b16 %v792
        %v825 = vunpack.c.l.b16 %v793
        %v826 = vunpack.c.l.b16 %v794
        %v827 = vunpack.c.l.b16 %v795
        %v828 = vunpack.c.l.b16 %v796
        %v829 = vunpack.c.l.b16 %v797
        %v830 = vunpack.c.l.b16 %v798
        %v831 = vunpack.c.l.b16 %v799
        %v832 = vunpack.c.l.b16 %v800
        %v833 = vunpack.c.l.b16 %v801
        %v834 = vunpack.c.l.b16 %v802
        %v835 = vunpack.c.l.b16 %v803
        %v836 = vunpack.c.l.b16 %v804
        %v837 = vunpack.c.l.b16 %v805
        %v838 = vunpack.c.l.b16 %v806
        %v839 = vunpack.c.l.b16 %v807
        %v840 = vpack.c.b16 %v825, %v824
        %v841 = vpack.c.b16 %v827, %v826
        %v842 = vpack.c.b16 %v829, %v828
        %v843 = vpack.c.b16 %v831, %v830
        %v844 = vpack.c.b16 %v833, %v832
        %v845 = vpack.c.b16 %v835, %v834
        %v846 = vpack.c.b16 %v837, %v836
        %v847 = vpack.c.b16 %v839, %v838
        %856 = vmatprep.subr.bf16.mxu0 0
        %857 = vmatpush1.bf16.msra.mxu0 %v840
        %858 = vmatprep.subr.bf16.mxu0 0
        %859 = vmatpush1.bf16.msra.mxu0 %v841
        %860 = vmatprep.subr.bf16.mxu0 0
        %861 = vmatpush1.bf16.msra.mxu0 %v842
        %862 = vmatprep.subr.bf16.mxu0 0
        %863 = vmatpush1.bf16.msra.mxu0 %v843
        %864 = vmatprep.subr.bf16.mxu0 0
        %865 = vmatpush1.bf16.msra.mxu0 %v844
        %866 = vmatprep.subr.bf16.mxu0 0
        %867 = vmatpush1.bf16.msra.mxu0 %v845
        %868 = vmatprep.subr.bf16.mxu0 0
        %869 = vmatpush1.bf16.msra.mxu0 %v846
        %870 = vmatprep.subr.bf16.mxu0 0
        %871 = vmatpush1.bf16.msra.mxu0 %v847
        %872 = vmatprep.subr.bf16.mxu0 0
        %873 = vmatpush1.bf16.msra.mxu0 0
        %874 = vmatprep.subr.bf16.mxu0 0
        %875 = vmatpush1.bf16.msra.mxu0 0
        %876 = vmatprep.subr.bf16.mxu0 0
        %877 = vmatpush1.bf16.msra.mxu0 0
        %878 = vmatprep.subr.bf16.mxu0 0
        %879 = vmatpush1.bf16.msra.mxu0 0
        %880 = vmatprep.subr.bf16.mxu0 0
        %881 = vmatpush1.bf16.msra.mxu0 0
        %882 = vmatprep.subr.bf16.mxu0 0
        %883 = vmatpush1.bf16.msra.mxu0 0
        %884 = vmatprep.subr.bf16.mxu0 0
        %885 = vmatpush1.bf16.msra.mxu0 0
        %886 = vmatprep.subr.bf16.mxu0 0
        %887 = vmatpush1.bf16.msra.mxu0 0
        %888 = vmatprep.mubr.bf16.mxu0 0
        %889 = vmatmul.mubr.bf16.gmra.mrb[0].mxu0 %v787
        %v890 = vpop.f32.mrb[0].mxu0
        %v891 = vadd.f32 0.0, %v890
        %v892 = vpop.f32.mrb[0].mxu0
        %v893 = vpop.f32.mrb[0].mxu0
        %v894 = vadd.f32 0.0, %v893
        %v895 = vpop.f32.mrb[0].mxu0
        %896 = vmatprep.mubr.bf16.mxu0 0
        %897 = vmatmul.mubr.bf16.gmra.mrb[0].mxu0 %v788
        %v898 = vpop.f32.mrb[0].mxu0
        %v899 = vadd.f32 0.0, %v898
        %v900 = vpop.f32.mrb[0].mxu0
        %v901 = vpop.f32.mrb[0].mxu0
        %v902 = vadd.f32 0.0, %v901
        %v903 = vpop.f32.mrb[0].mxu0
        %904 = vmatprep.mubr.bf16.mxu0 0
        %905 = vmatmul.mubr.bf16.gmra.mrb[0].mxu0 %v789
        %v906 = vpop.f32.mrb[0].mxu0
        %v907 = vadd.f32 0.0, %v906
        %v908 = vpop.f32.mrb[0].mxu0
        %v909 = vpop.f32.mrb[0].mxu0
        %v910 = vadd.f32 0.0, %v909
        %v911 = vpop.f32.mrb[0].mxu0
        %912 = vmatprep.mubr.bf16.mxu0 0
        %913 = vmatmul.mubr.bf16.gmra.mrb[0].mxu0 %v790
        %v914 = vpop.f32.mrb[0].mxu0
        %v915 = vadd.f32 0.0, %v914
        %v916 = vpop.f32.mrb[0].mxu0
        %v917 = vpop.f32.mrb[0].mxu0
        %v918 = vadd.f32 0.0, %v917
        %v919 = vpop.f32.mrb[0].mxu0
        %920 = vdwg.mxu0
        %v921 = vadd.f32 %v771, %v891
        %v922 = vadd.f32 %v772, %v894
        %v923 = vadd.f32 %v773, %v899
        %v924 = vadd.f32 %v774, %v902
        %v925 = vadd.f32 %v775, %v907
        %v926 = vadd.f32 %v776, %v910
        %v927 = vadd.f32 %v777, %v915
        %v928 = vadd.f32 %v778, %v918
        %v929 = vld [vmem:[%s463] sm:$0xff]
        %v930 = vld [vmem:[%s463 + $0x10] sm:$0xff]
        %v931 = vld [vmem:[%s463 + $0x20] sm:$0xff]
        %v932 = vld [vmem:[%s463 + $0x30] sm:$0xff]
        %v933 = vld [vmem:[%s463 + $0x40] sm:$0xff]
        %v934 = vld [vmem:[%s463 + $0x50] sm:$0xff]
        %v935 = vld [vmem:[%s463 + $0x60] sm:$0xff]
        %v936 = vld [vmem:[%s463 + $0x70] sm:$0xff]
        %v937 = vpack.c.bf16 %v930, %v929
        %v938 = vpack.c.bf16 %v932, %v931
        %v939 = vpack.c.bf16 %v934, %v933
        %v940 = vpack.c.bf16 %v936, %v935
        %s941 = scalar_lea.vmem %s369, 192
        %v942 = vld [vmem:[%s941] sm:$0xf]
        %v943 = vld [vmem:[%s941 + $0x4] sm:$0xf]
        %v944 = vld [vmem:[%s941 + $0x8] sm:$0xf]
        %v945 = vld [vmem:[%s941 + $0xc] sm:$0xf]
        %v946 = vld [vmem:[%s941 + $0x10] sm:$0xf]
        %v947 = vld [vmem:[%s941 + $0x14] sm:$0xf]
        %v948 = vld [vmem:[%s941 + $0x18] sm:$0xf]
        %v949 = vld [vmem:[%s941 + $0x1c] sm:$0xf]
        %v950 = vld [vmem:[%s941 + $0x20] sm:$0xf]
        %v951 = vld [vmem:[%s941 + $0x24] sm:$0xf]
        %v952 = vld [vmem:[%s941 + $0x28] sm:$0xf]
        %v953 = vld [vmem:[%s941 + $0x2c] sm:$0xf]
        %v954 = vld [vmem:[%s941 + $0x30] sm:$0xf]
        %v955 = vld [vmem:[%s941 + $0x34] sm:$0xf]
        %v956 = vld [vmem:[%s941 + $0x38] sm:$0xf]
        %v957 = vld [vmem:[%s941 + $0x3c] sm:$0xf]
        %v974 = vunpack.c.l.b16 %v942
        %v975 = vunpack.c.l.b16 %v943
        %v976 = vunpack.c.l.b16 %v944
        %v977 = vunpack.c.l.b16 %v945
        %v978 = vunpack.c.l.b16 %v946
        %v979 = vunpack.c.l.b16 %v947
        %v980 = vunpack.c.l.b16 %v948
        %v981 = vunpack.c.l.b16 %v949
        %v982 = vunpack.c.l.b16 %v950
        %v983 = vunpack.c.l.b16 %v951
        %v984 = vunpack.c.l.b16 %v952
        %v985 = vunpack.c.l.b16 %v953
        %v986 = vunpack.c.l.b16 %v954
        %v987 = vunpack.c.l.b16 %v955
        %v988 = vunpack.c.l.b16 %v956
        %v989 = vunpack.c.l.b16 %v957
        %v990 = vpack.c.b16 %v975, %v974
        %v991 = vpack.c.b16 %v977, %v976
        %v992 = vpack.c.b16 %v979, %v978
        %v993 = vpack.c.b16 %v981, %v980
        %v994 = vpack.c.b16 %v983, %v982
        %v995 = vpack.c.b16 %v985, %v984
        %v996 = vpack.c.b16 %v987, %v986
        %v997 = vpack.c.b16 %v989, %v988
        %1006 = vmatprep.subr.bf16.mxu0 0
        %1007 = vmatpush1.bf16.msra.mxu0 %v990
        %1008 = vmatprep.subr.bf16.mxu0 0
        %1009 = vmatpush1.bf16.msra.mxu0 %v991
        %1010 = vmatprep.subr.bf16.mxu0 0
        %1011 = vmatpush1.bf16.msra.mxu0 %v992
        %1012 = vmatprep.subr.bf16.mxu0 0
        %1013 = vmatpush1.bf16.msra.mxu0 %v993
        %1014 = vmatprep.subr.bf16.mxu0 0
        %1015 = vmatpush1.bf16.msra.mxu0 %v994
        %1016 = vmatprep.subr.bf16.mxu0 0
        %1017 = vmatpush1.bf16.msra.mxu0 %v995
        %1018 = vmatprep.subr.bf16.mxu0 0
        %1019 = vmatpush1.bf16.msra.mxu0 %v996
        %1020 = vmatprep.subr.bf16.mxu0 0
        %1021 = vmatpush1.bf16.msra.mxu0 %v997
        %1022 = vmatprep.subr.bf16.mxu0 0
        %1023 = vmatpush1.bf16.msra.mxu0 0
        %1024 = vmatprep.subr.bf16.mxu0 0
        %1025 = vmatpush1.bf16.msra.mxu0 0
        %1026 = vmatprep.subr.bf16.mxu0 0
        %1027 = vmatpush1.bf16.msra.mxu0 0
        %1028 = vmatprep.subr.bf16.mxu0 0
        %1029 = vmatpush1.bf16.msra.mxu0 0
        %1030 = vmatprep.subr.bf16.mxu0 0
        %1031 = vmatpush1.bf16.msra.mxu0 0
        %1032 = vmatprep.subr.bf16.mxu0 0
        %1033 = vmatpush1.bf16.msra.mxu0 0
        %1034 = vmatprep.subr.bf16.mxu0 0
        %1035 = vmatpush1.bf16.msra.mxu0 0
        %1036 = vmatprep.subr.bf16.mxu0 0
        %1037 = vmatpush1.bf16.msra.mxu0 0
        %1038 = vmatprep.mubr.bf16.mxu0 0
        %1039 = vmatmul.mubr.bf16.gmra.mrb[0].mxu0 %v937
        %v1040 = vpop.f32.mrb[0].mxu0
        %v1041 = vadd.f32 0.0, %v1040
        %v1042 = vpop.f32.mrb[0].mxu0
        %v1043 = vpop.f32.mrb[0].mxu0
        %v1044 = vadd.f32 0.0, %v1043
        %v1045 = vpop.f32.mrb[0].mxu0
        %1046 = vmatprep.mubr.bf16.mxu0 0
        %1047 = vmatmul.mubr.bf16.gmra.mrb[0].mxu0 %v938
        %v1048 = vpop.f32.mrb[0].mxu0
        %v1049 = vadd.f32 0.0, %v1048
        %v1050 = vpop.f32.mrb[0].mxu0
        %v1051 = vpop.f32.mrb[0].mxu0
        %v1052 = vadd.f32 0.0, %v1051
        %v1053 = vpop.f32.mrb[0].mxu0
        %1054 = vmatprep.mubr.bf16.mxu0 0
        %1055 = vmatmul.mubr.bf16.gmra.mrb[0].mxu0 %v939
        %v1056 = vpop.f32.mrb[0].mxu0
        %v1057 = vadd.f32 0.0, %v1056
        %v1058 = vpop.f32.mrb[0].mxu0
        %v1059 = vpop.f32.mrb[0].mxu0
        %v1060 = vadd.f32 0.0, %v1059
        %v1061 = vpop.f32.mrb[0].mxu0
        %1062 = vmatprep.mubr.bf16.mxu0 0
        %1063 = vmatmul.mubr.bf16.gmra.mrb[0].mxu0 %v940
        %v1064 = vpop.f32.mrb[0].mxu0
        %v1065 = vadd.f32 0.0, %v1064
        %v1066 = vpop.f32.mrb[0].mxu0
        %v1067 = vpop.f32.mrb[0].mxu0
        %v1068 = vadd.f32 0.0, %v1067
        %v1069 = vpop.f32.mrb[0].mxu0
        %1070 = vdwg.mxu0
        %v1071 = vadd.f32 %v921, %v1041
        %v1072 = vadd.f32 %v922, %v1044
        %v1073 = vadd.f32 %v923, %v1049
        %v1074 = vadd.f32 %v924, %v1052
        %v1075 = vadd.f32 %v925, %v1057
        %v1076 = vadd.f32 %v926, %v1060
        %v1077 = vadd.f32 %v927, %v1065
        %v1078 = vadd.f32 %v928, %v1068
        %v1079 = vld [vmem:[%s463 + $0x1] sm:$0xff]
        %v1080 = vld [vmem:[%s463 + $0x11] sm:$0xff]
        %v1081 = vld [vmem:[%s463 + $0x21] sm:$0xff]
        %v1082 = vld [vmem:[%s463 + $0x31] sm:$0xff]
        %v1083 = vld [vmem:[%s463 + $0x41] sm:$0xff]
        %v1084 = vld [vmem:[%s463 + $0x51] sm:$0xff]
        %v1085 = vld [vmem:[%s463 + $0x61] sm:$0xff]
        %v1086 = vld [vmem:[%s463 + $0x71] sm:$0xff]
        %v1087 = vpack.c.bf16 %v1080, %v1079
        %v1088 = vpack.c.bf16 %v1082, %v1081
        %v1089 = vpack.c.bf16 %v1084, %v1083
        %v1090 = vpack.c.bf16 %v1086, %v1085
        %s1091 = scalar_lea.vmem %s369, 256
        %v1092 = vld [vmem:[%s1091] sm:$0xf]
        %v1093 = vld [vmem:[%s1091 + $0x4] sm:$0xf]
        %v1094 = vld [vmem:[%s1091 + $0x8] sm:$0xf]
        %v1095 = vld [vmem:[%s1091 + $0xc] sm:$0xf]
        %v1096 = vld [vmem:[%s1091 + $0x10] sm:$0xf]
        %v1097 = vld [vmem:[%s1091 + $0x14] sm:$0xf]
        %v1098 = vld [vmem:[%s1091 + $0x18] sm:$0xf]
        %v1099 = vld [vmem:[%s1091 + $0x1c] sm:$0xf]
        %v1100 = vld [vmem:[%s1091 + $0x20] sm:$0xf]
        %v1101 = vld [vmem:[%s1091 + $0x24] sm:$0xf]
        %v1102 = vld [vmem:[%s1091 + $0x28] sm:$0xf]
        %v1103 = vld [vmem:[%s1091 + $0x2c] sm:$0xf]
        %v1104 = vld [vmem:[%s1091 + $0x30] sm:$0xf]
        %v1105 = vld [vmem:[%s1091 + $0x34] sm:$0xf]
        %v1106 = vld [vmem:[%s1091 + $0x38] sm:$0xf]
        %v1107 = vld [vmem:[%s1091 + $0x3c] sm:$0xf]
        %v1124 = vunpack.c.l.b16 %v1092
        %v1125 = vunpack.c.l.b16 %v1093
        %v1126 = vunpack.c.l.b16 %v1094
        %v1127 = vunpack.c.l.b16 %v1095
        %v1128 = vunpack.c.l.b16 %v1096
        %v1129 = vunpack.c.l.b16 %v1097
        %v1130 = vunpack.c.l.b16 %v1098
        %v1131 = vunpack.c.l.b16 %v1099
        %v1132 = vunpack.c.l.b16 %v1100
        %v1133 = vunpack.c.l.b16 %v1101
        %v1134 = vunpack.c.l.b16 %v1102
        %v1135 = vunpack.c.l.b16 %v1103
        %v1136 = vunpack.c.l.b16 %v1104
        %v1137 = vunpack.c.l.b16 %v1105
        %v1138 = vunpack.c.l.b16 %v1106
        %v1139 = vunpack.c.l.b16 %v1107
        %v1140 = vpack.c.b16 %v1125, %v1124
        %v1141 = vpack.c.b16 %v1127, %v1126
        %v1142 = vpack.c.b16 %v1129, %v1128
        %v1143 = vpack.c.b16 %v1131, %v1130
        %v1144 = vpack.c.b16 %v1133, %v1132
        %v1145 = vpack.c.b16 %v1135, %v1134
        %v1146 = vpack.c.b16 %v1137, %v1136
        %v1147 = vpack.c.b16 %v1139, %v1138
        %1156 = vmatprep.subr.bf16.mxu0 0
        %1157 = vmatpush1.bf16.msra.mxu0 %v1140
        %1158 = vmatprep.subr.bf16.mxu0 0
        %1159 = vmatpush1.bf16.msra.mxu0 %v1141
        %1160 = vmatprep.subr.bf16.mxu0 0
        %1161 = vmatpush1.bf16.msra.mxu0 %v1142
        %1162 = vmatprep.subr.bf16.mxu0 0
        %1163 = vmatpush1.bf16.msra.mxu0 %v1143
        %1164 = vmatprep.subr.bf16.mxu0 0
        %1165 = vmatpush1.bf16.msra.mxu0 %v1144
        %1166 = vmatprep.subr.bf16.mxu0 0
        %1167 = vmatpush1.bf16.msra.mxu0 %v1145
        %1168 = vmatprep.subr.bf16.mxu0 0
        %1169 = vmatpush1.bf16.msra.mxu0 %v1146
        %1170 = vmatprep.subr.bf16.mxu0 0
        %1171 = vmatpush1.bf16.msra.mxu0 %v1147
        %1172 = vmatprep.subr.bf16.mxu0 0
        %1173 = vmatpush1.bf16.msra.mxu0 0
        %1174 = vmatprep.subr.bf16.mxu0 0
        %1175 = vmatpush1.bf16.msra.mxu0 0
        %1176 = vmatprep.subr.bf16.mxu0 0
        %1177 = vmatpush1.bf16.msra.mxu0 0
        %1178 = vmatprep.subr.bf16.mxu0 0
        %1179 = vmatpush1.bf16.msra.mxu0 0
        %1180 = vmatprep.subr.bf16.mxu0 0
        %1181 = vmatpush1.bf16.msra.mxu0 0
        %1182 = vmatprep.subr.bf16.mxu0 0
        %1183 = vmatpush1.bf16.msra.mxu0 0
        %1184 = vmatprep.subr.bf16.mxu0 0
        %1185 = vmatpush1.bf16.msra.mxu0 0
        %1186 = vmatprep.subr.bf16.mxu0 0
        %1187 = vmatpush1.bf16.msra.mxu0 0
        %1188 = vmatprep.mubr.bf16.mxu0 0
        %1189 = vmatmul.mubr.bf16.gmra.mrb[0].mxu0 %v1087
        %v1190 = vpop.f32.mrb[0].mxu0
        %v1191 = vadd.f32 0.0, %v1190
        %v1192 = vpop.f32.mrb[0].mxu0
        %v1193 = vpop.f32.mrb[0].mxu0
        %v1194 = vadd.f32 0.0, %v1193
        %v1195 = vpop.f32.mrb[0].mxu0
        %1196 = vmatprep.mubr.bf16.mxu0 0
        %1197 = vmatmul.mubr.bf16.gmra.mrb[0].mxu0 %v1088
        %v1198 = vpop.f32.mrb[0].mxu0
        %v1199 = vadd.f32 0.0, %v1198
        %v1200 = vpop.f32.mrb[0].mxu0
        %v1201 = vpop.f32.mrb[0].mxu0
        %v1202 = vadd.f32 0.0, %v1201
        %v1203 = vpop.f32.mrb[0].mxu0
        %1204 = vmatprep.mubr.bf16.mxu0 0
        %1205 = vmatmul.mubr.bf16.gmra.mrb[0].mxu0 %v1089
        %v1206 = vpop.f32.mrb[0].mxu0
        %v1207 = vadd.f32 0.0, %v1206
        %v1208 = vpop.f32.mrb[0].mxu0
        %v1209 = vpop.f32.mrb[0].mxu0
        %v1210 = vadd.f32 0.0, %v1209
        %v1211 = vpop.f32.mrb[0].mxu0
        %1212 = vmatprep.mubr.bf16.mxu0 0
        %1213 = vmatmul.mubr.bf16.gmra.mrb[0].mxu0 %v1090
        %v1214 = vpop.f32.mrb[0].mxu0
        %v1215 = vadd.f32 0.0, %v1214
        %v1216 = vpop.f32.mrb[0].mxu0
        %v1217 = vpop.f32.mrb[0].mxu0
        %v1218 = vadd.f32 0.0, %v1217
        %v1219 = vpop.f32.mrb[0].mxu0
        %1220 = vdwg.mxu0
        %v1221 = vadd.f32 %v1071, %v1191
        %v1222 = vadd.f32 %v1072, %v1194
        %v1223 = vadd.f32 %v1073, %v1199
        %v1224 = vadd.f32 %v1074, %v1202
        %v1225 = vadd.f32 %v1075, %v1207
        %v1226 = vadd.f32 %v1076, %v1210
        %v1227 = vadd.f32 %v1077, %v1215
        %v1228 = vadd.f32 %v1078, %v1218
        %v1229 = vld [vmem:[%s463 + $0x2] sm:$0xff]
        %v1230 = vld [vmem:[%s463 + $0x12] sm:$0xff]
        %v1231 = vld [vmem:[%s463 + $0x22] sm:$0xff]
        %v1232 = vld [vmem:[%s463 + $0x32] sm:$0xff]
        %v1233 = vld [vmem:[%s463 + $0x42] sm:$0xff]
        %v1234 = vld [vmem:[%s463 + $0x52] sm:$0xff]
        %v1235 = vld [vmem:[%s463 + $0x62] sm:$0xff]
        %v1236 = vld [vmem:[%s463 + $0x72] sm:$0xff]
        %v1237 = vpack.c.bf16 %v1230, %v1229
        %v1238 = vpack.c.bf16 %v1232, %v1231
        %v1239 = vpack.c.bf16 %v1234, %v1233
        %v1240 = vpack.c.bf16 %v1236, %v1235
        %s1241 = scalar_lea.vmem %s369, 320
        %v1242 = vld [vmem:[%s1241] sm:$0xf]
        %v1243 = vld [vmem:[%s1241 + $0x4] sm:$0xf]
        %v1244 = vld [vmem:[%s1241 + $0x8] sm:$0xf]
        %v1245 = vld [vmem:[%s1241 + $0xc] sm:$0xf]
        %v1246 = vld [vmem:[%s1241 + $0x10] sm:$0xf]
        %v1247 = vld [vmem:[%s1241 + $0x14] sm:$0xf]
        %v1248 = vld [vmem:[%s1241 + $0x18] sm:$0xf]
        %v1249 = vld [vmem:[%s1241 + $0x1c] sm:$0xf]
        %v1250 = vld [vmem:[%s1241 + $0x20] sm:$0xf]
        %v1251 = vld [vmem:[%s1241 + $0x24] sm:$0xf]
        %v1252 = vld [vmem:[%s1241 + $0x28] sm:$0xf]
        %v1253 = vld [vmem:[%s1241 + $0x2c] sm:$0xf]
        %v1254 = vld [vmem:[%s1241 + $0x30] sm:$0xf]
        %v1255 = vld [vmem:[%s1241 + $0x34] sm:$0xf]
        %v1256 = vld [vmem:[%s1241 + $0x38] sm:$0xf]
        %v1257 = vld [vmem:[%s1241 + $0x3c] sm:$0xf]
        %v1274 = vunpack.c.l.b16 %v1242
        %v1275 = vunpack.c.l.b16 %v1243
        %v1276 = vunpack.c.l.b16 %v1244
        %v1277 = vunpack.c.l.b16 %v1245
        %v1278 = vunpack.c.l.b16 %v1246
        %v1279 = vunpack.c.l.b16 %v1247
        %v1280 = vunpack.c.l.b16 %v1248
        %v1281 = vunpack.c.l.b16 %v1249
        %v1282 = vunpack.c.l.b16 %v1250
        %v1283 = vunpack.c.l.b16 %v1251
        %v1284 = vunpack.c.l.b16 %v1252
        %v1285 = vunpack.c.l.b16 %v1253
        %v1286 = vunpack.c.l.b16 %v1254
        %v1287 = vunpack.c.l.b16 %v1255
        %v1288 = vunpack.c.l.b16 %v1256
        %v1289 = vunpack.c.l.b16 %v1257
        %v1290 = vpack.c.b16 %v1275, %v1274
        %v1291 = vpack.c.b16 %v1277, %v1276
        %v1292 = vpack.c.b16 %v1279, %v1278
        %v1293 = vpack.c.b16 %v1281, %v1280
        %v1294 = vpack.c.b16 %v1283, %v1282
        %v1295 = vpack.c.b16 %v1285, %v1284
        %v1296 = vpack.c.b16 %v1287, %v1286
        %v1297 = vpack.c.b16 %v1289, %v1288
        %1306 = vmatprep.subr.bf16.mxu0 0
        %1307 = vmatpush1.bf16.msra.mxu0 %v1290
        %1308 = vmatprep.subr.bf16.mxu0 0
        %1309 = vmatpush1.bf16.msra.mxu0 %v1291
        %1310 = vmatprep.subr.bf16.mxu0 0
        %1311 = vmatpush1.bf16.msra.mxu0 %v1292
        %1312 = vmatprep.subr.bf16.mxu0 0
        %1313 = vmatpush1.bf16.msra.mxu0 %v1293
        %1314 = vmatprep.subr.bf16.mxu0 0
        %1315 = vmatpush1.bf16.msra.mxu0 %v1294
        %1316 = vmatprep.subr.bf16.mxu0 0
        %1317 = vmatpush1.bf16.msra.mxu0 %v1295
        %1318 = vmatprep.subr.bf16.mxu0 0
        %1319 = vmatpush1.bf16.msra.mxu0 %v1296
        %1320 = vmatprep.subr.bf16.mxu0 0
        %1321 = vmatpush1.bf16.msra.mxu0 %v1297
        %1322 = vmatprep.subr.bf16.mxu0 0
        %1323 = vmatpush1.bf16.msra.mxu0 0
        %1324 = vmatprep.subr.bf16.mxu0 0
        %1325 = vmatpush1.bf16.msra.mxu0 0
        %1326 = vmatprep.subr.bf16.mxu0 0
        %1327 = vmatpush1.bf16.msra.mxu0 0
        %1328 = vmatprep.subr.bf16.mxu0 0
        %1329 = vmatpush1.bf16.msra.mxu0 0
        %1330 = vmatprep.subr.bf16.mxu0 0
        %1331 = vmatpush1.bf16.msra.mxu0 0
        %1332 = vmatprep.subr.bf16.mxu0 0
        %1333 = vmatpush1.bf16.msra.mxu0 0
        %1334 = vmatprep.subr.bf16.mxu0 0
        %1335 = vmatpush1.bf16.msra.mxu0 0
        %1336 = vmatprep.subr.bf16.mxu0 0
        %1337 = vmatpush1.bf16.msra.mxu0 0
        %1338 = vmatprep.mubr.bf16.mxu0 0
        %1339 = vmatmul.mubr.bf16.gmra.mrb[0].mxu0 %v1237
        %v1340 = vpop.f32.mrb[0].mxu0
        %v1341 = vadd.f32 0.0, %v1340
        %v1342 = vpop.f32.mrb[0].mxu0
        %v1343 = vpop.f32.mrb[0].mxu0
        %v1344 = vadd.f32 0.0, %v1343
        %v1345 = vpop.f32.mrb[0].mxu0
        %1346 = vmatprep.mubr.bf16.mxu0 0
        %1347 = vmatmul.mubr.bf16.gmra.mrb[0].mxu0 %v1238
        %v1348 = vpop.f32.mrb[0].mxu0
        %v1349 = vadd.f32 0.0, %v1348
        %v1350 = vpop.f32.mrb[0].mxu0
        %v1351 = vpop.f32.mrb[0].mxu0
        %v1352 = vadd.f32 0.0, %v1351
        %v1353 = vpop.f32.mrb[0].mxu0
        %1354 = vmatprep.mubr.bf16.mxu0 0
        %1355 = vmatmul.mubr.bf16.gmra.mrb[0].mxu0 %v1239
        %v1356 = vpop.f32.mrb[0].mxu0
        %v1357 = vadd.f32 0.0, %v1356
        %v1358 = vpop.f32.mrb[0].mxu0
        %v1359 = vpop.f32.mrb[0].mxu0
        %v1360 = vadd.f32 0.0, %v1359
        %v1361 = vpop.f32.mrb[0].mxu0
        %1362 = vmatprep.mubr.bf16.mxu0 0
        %1363 = vmatmul.mubr.bf16.gmra.mrb[0].mxu0 %v1240
        %v1364 = vpop.f32.mrb[0].mxu0
        %v1365 = vadd.f32 0.0, %v1364
        %v1366 = vpop.f32.mrb[0].mxu0
        %v1367 = vpop.f32.mrb[0].mxu0
        %v1368 = vadd.f32 0.0, %v1367
        %v1369 = vpop.f32.mrb[0].mxu0
        %1370 = vdwg.mxu0
        %v1371 = vadd.f32 %v1221, %v1341
        %v1372 = vadd.f32 %v1222, %v1344
        %v1373 = vadd.f32 %v1223, %v1349
        %v1374 = vadd.f32 %v1224, %v1352
        %v1375 = vadd.f32 %v1225, %v1357
        %v1376 = vadd.f32 %v1226, %v1360
        %v1377 = vadd.f32 %v1227, %v1365
        %v1378 = vadd.f32 %v1228, %v1368
        %s1379 = scalar_lea.vmem [#allocation2], 32
        %v1380 = vld [vmem:[%s1379] sm:$0xff]
        %v1381 = vld [vmem:[%s1379 + $0x10] sm:$0xff]
        %v1382 = vld [vmem:[%s1379 + $0x20] sm:$0xff]
        %v1383 = vld [vmem:[%s1379 + $0x30] sm:$0xff]
        %v1384 = vld [vmem:[%s1379 + $0x40] sm:$0xff]
        %v1385 = vld [vmem:[%s1379 + $0x50] sm:$0xff]
        %v1386 = vld [vmem:[%s1379 + $0x60] sm:$0xff]
        %v1387 = vld [vmem:[%s1379 + $0x70] sm:$0xff]
        %v1388 = vpack.c.bf16 %v1381, %v1380
        %v1389 = vpack.c.bf16 %v1383, %v1382
        %v1390 = vpack.c.bf16 %v1385, %v1384
        %v1391 = vpack.c.bf16 %v1387, %v1386
        %s1392 = scalar_lea.vmem %s369, 384
        %v1393 = vld [vmem:[%s1392] sm:$0xf]
        %v1394 = vld [vmem:[%s1392 + $0x4] sm:$0xf]
        %v1395 = vld [vmem:[%s1392 + $0x8] sm:$0xf]
        %v1396 = vld [vmem:[%s1392 + $0xc] sm:$0xf]
        %v1397 = vld [vmem:[%s1392 + $0x10] sm:$0xf]
        %v1398 = vld [vmem:[%s1392 + $0x14] sm:$0xf]
        %v1399 = vld [vmem:[%s1392 + $0x18] sm:$0xf]
        %v1400 = vld [vmem:[%s1392 + $0x1c] sm:$0xf]
        %v1401 = vld [vmem:[%s1392 + $0x20] sm:$0xf]
        %v1402 = vld [vmem:[%s1392 + $0x24] sm:$0xf]
        %v1403 = vld [vmem:[%s1392 + $0x28] sm:$0xf]
        %v1404 = vld [vmem:[%s1392 + $0x2c] sm:$0xf]
        %v1405 = vld [vmem:[%s1392 + $0x30] sm:$0xf]
        %v1406 = vld [vmem:[%s1392 + $0x34] sm:$0xf]
        %v1407 = vld [vmem:[%s1392 + $0x38] sm:$0xf]
        %v1408 = vld [vmem:[%s1392 + $0x3c] sm:$0xf]
        %v1425 = vunpack.c.l.b16 %v1393
        %v1426 = vunpack.c.l.b16 %v1394
        %v1427 = vunpack.c.l.b16 %v1395
        %v1428 = vunpack.c.l.b16 %v1396
        %v1429 = vunpack.c.l.b16 %v1397
        %v1430 = vunpack.c.l.b16 %v1398
        %v1431 = vunpack.c.l.b16 %v1399
        %v1432 = vunpack.c.l.b16 %v1400
        %v1433 = vunpack.c.l.b16 %v1401
        %v1434 = vunpack.c.l.b16 %v1402
        %v1435 = vunpack.c.l.b16 %v1403
        %v1436 = vunpack.c.l.b16 %v1404
        %v1437 = vunpack.c.l.b16 %v1405
        %v1438 = vunpack.c.l.b16 %v1406
        %v1439 = vunpack.c.l.b16 %v1407
        %v1440 = vunpack.c.l.b16 %v1408
        %v1441 = vpack.c.b16 %v1426, %v1425
        %v1442 = vpack.c.b16 %v1428, %v1427
        %v1443 = vpack.c.b16 %v1430, %v1429
        %v1444 = vpack.c.b16 %v1432, %v1431
        %v1445 = vpack.c.b16 %v1434, %v1433
        %v1446 = vpack.c.b16 %v1436, %v1435
        %v1447 = vpack.c.b16 %v1438, %v1437
        %v1448 = vpack.c.b16 %v1440, %v1439
        %1457 = vmatprep.subr.bf16.mxu0 0
        %1458 = vmatpush1.bf16.msra.mxu0 %v1441
        %1459 = vmatprep.subr.bf16.mxu0 0
        %1460 = vmatpush1.bf16.msra.mxu0 %v1442
        %1461 = vmatprep.subr.bf16.mxu0 0
        %1462 = vmatpush1.bf16.msra.mxu0 %v1443
        %1463 = vmatprep.subr.bf16.mxu0 0
        %1464 = vmatpush1.bf16.msra.mxu0 %v1444
        %1465 = vmatprep.subr.bf16.mxu0 0
        %1466 = vmatpush1.bf16.msra.mxu0 %v1445
        %1467 = vmatprep.subr.bf16.mxu0 0
        %1468 = vmatpush1.bf16.msra.mxu0 %v1446
        %1469 = vmatprep.subr.bf16.mxu0 0
        %1470 = vmatpush1.bf16.msra.mxu0 %v1447
        %1471 = vmatprep.subr.bf16.mxu0 0
        %1472 = vmatpush1.bf16.msra.mxu0 %v1448
        %1473 = vmatprep.subr.bf16.mxu0 0
        %1474 = vmatpush1.bf16.msra.mxu0 0
        %1475 = vmatprep.subr.bf16.mxu0 0
        %1476 = vmatpush1.bf16.msra.mxu0 0
        %1477 = vmatprep.subr.bf16.mxu0 0
        %1478 = vmatpush1.bf16.msra.mxu0 0
        %1479 = vmatprep.subr.bf16.mxu0 0
        %1480 = vmatpush1.bf16.msra.mxu0 0
        %1481 = vmatprep.subr.bf16.mxu0 0
        %1482 = vmatpush1.bf16.msra.mxu0 0
        %1483 = vmatprep.subr.bf16.mxu0 0
        %1484 = vmatpush1.bf16.msra.mxu0 0
        %1485 = vmatprep.subr.bf16.mxu0 0
        %1486 = vmatpush1.bf16.msra.mxu0 0
        %1487 = vmatprep.subr.bf16.mxu0 0
        %1488 = vmatpush1.bf16.msra.mxu0 0
        %1489 = vmatprep.mubr.bf16.mxu0 0
        %1490 = vmatmul.mubr.bf16.gmra.mrb[0].mxu0 %v1388
        %v1491 = vpop.f32.mrb[0].mxu0
        %v1492 = vadd.f32 0.0, %v1491
        %v1493 = vpop.f32.mrb[0].mxu0
        %v1494 = vpop.f32.mrb[0].mxu0
        %v1495 = vadd.f32 0.0, %v1494
        %v1496 = vpop.f32.mrb[0].mxu0
        %1497 = vmatprep.mubr.bf16.mxu0 0
        %1498 = vmatmul.mubr.bf16.gmra.mrb[0].mxu0 %v1389
        %v1499 = vpop.f32.mrb[0].mxu0
        %v1500 = vadd.f32 0.0, %v1499
        %v1501 = vpop.f32.mrb[0].mxu0
        %v1502 = vpop.f32.mrb[0].mxu0
        %v1503 = vadd.f32 0.0, %v1502
        %v1504 = vpop.f32.mrb[0].mxu0
        %1505 = vmatprep.mubr.bf16.mxu0 0
        %1506 = vmatmul.mubr.bf16.gmra.mrb[0].mxu0 %v1390
        %v1507 = vpop.f32.mrb[0].mxu0
        %v1508 = vadd.f32 0.0, %v1507
        %v1509 = vpop.f32.mrb[0].mxu0
        %v1510 = vpop.f32.mrb[0].mxu0
        %v1511 = vadd.f32 0.0, %v1510
        %v1512 = vpop.f32.mrb[0].mxu0
        %1513 = vmatprep.mubr.bf16.mxu0 0
        %1514 = vmatmul.mubr.bf16.gmra.mrb[0].mxu0 %v1391
        %v1515 = vpop.f32.mrb[0].mxu0
        %v1516 = vadd.f32 0.0, %v1515
        %v1517 = vpop.f32.mrb[0].mxu0
        %v1518 = vpop.f32.mrb[0].mxu0
        %v1519 = vadd.f32 0.0, %v1518
        %v1520 = vpop.f32.mrb[0].mxu0
        %1521 = vdwg.mxu0
        %v1522 = vadd.f32 %v1371, %v1492
        %v1523 = vadd.f32 %v1372, %v1495
        %v1524 = vadd.f32 %v1373, %v1500
        %v1525 = vadd.f32 %v1374, %v1503
        %v1526 = vadd.f32 %v1375, %v1508
        %v1527 = vadd.f32 %v1376, %v1511
        %v1528 = vadd.f32 %v1377, %v1516
        %v1529 = vadd.f32 %v1378, %v1519
        %v1530 = vld [vmem:[%s1379 + $0x1] sm:$0xff]
        %v1531 = vld [vmem:[%s1379 + $0x11] sm:$0xff]
        %v1532 = vld [vmem:[%s1379 + $0x21] sm:$0xff]
        %v1533 = vld [vmem:[%s1379 + $0x31] sm:$0xff]
        %v1534 = vld [vmem:[%s1379 + $0x41] sm:$0xff]
        %v1535 = vld [vmem:[%s1379 + $0x51] sm:$0xff]
        %v1536 = vld [vmem:[%s1379 + $0x61] sm:$0xff]
        %v1537 = vld [vmem:[%s1379 + $0x71] sm:$0xff]
        %v1538 = vpack.c.bf16 %v1531, %v1530
        %v1539 = vpack.c.bf16 %v1533, %v1532
        %v1540 = vpack.c.bf16 %v1535, %v1534
        %v1541 = vpack.c.bf16 %v1537, %v1536
        %s1542 = scalar_lea.vmem %s369, 448
        %v1543 = vld [vmem:[%s1542] sm:$0xf]
        %v1544 = vld [vmem:[%s1542 + $0x4] sm:$0xf]
        %v1545 = vld [vmem:[%s1542 + $0x8] sm:$0xf]
        %v1546 = vld [vmem:[%s1542 + $0xc] sm:$0xf]
        %v1547 = vld [vmem:[%s1542 + $0x10] sm:$0xf]
        %v1548 = vld [vmem:[%s1542 + $0x14] sm:$0xf]
        %v1549 = vld [vmem:[%s1542 + $0x18] sm:$0xf]
        %v1550 = vld [vmem:[%s1542 + $0x1c] sm:$0xf]
        %v1551 = vld [vmem:[%s1542 + $0x20] sm:$0xf]
        %v1552 = vld [vmem:[%s1542 + $0x24] sm:$0xf]
        %v1553 = vld [vmem:[%s1542 + $0x28] sm:$0xf]
        %v1554 = vld [vmem:[%s1542 + $0x2c] sm:$0xf]
        %v1555 = vld [vmem:[%s1542 + $0x30] sm:$0xf]
        %v1556 = vld [vmem:[%s1542 + $0x34] sm:$0xf]
        %v1557 = vld [vmem:[%s1542 + $0x38] sm:$0xf]
        %v1558 = vld [vmem:[%s1542 + $0x3c] sm:$0xf]
        %v1575 = vunpack.c.l.b16 %v1543
        %v1576 = vunpack.c.l.b16 %v1544
        %v1577 = vunpack.c.l.b16 %v1545
        %v1578 = vunpack.c.l.b16 %v1546
        %v1579 = vunpack.c.l.b16 %v1547
        %v1580 = vunpack.c.l.b16 %v1548
        %v1581 = vunpack.c.l.b16 %v1549
        %v1582 = vunpack.c.l.b16 %v1550
        %v1583 = vunpack.c.l.b16 %v1551
        %v1584 = vunpack.c.l.b16 %v1552
        %v1585 = vunpack.c.l.b16 %v1553
        %v1586 = vunpack.c.l.b16 %v1554
        %v1587 = vunpack.c.l.b16 %v1555
        %v1588 = vunpack.c.l.b16 %v1556
        %v1589 = vunpack.c.l.b16 %v1557
        %v1590 = vunpack.c.l.b16 %v1558
        %v1591 = vpack.c.b16 %v1576, %v1575
        %v1592 = vpack.c.b16 %v1578, %v1577
        %v1593 = vpack.c.b16 %v1580, %v1579
        %v1594 = vpack.c.b16 %v1582, %v1581
        %v1595 = vpack.c.b16 %v1584, %v1583
        %v1596 = vpack.c.b16 %v1586, %v1585
        %v1597 = vpack.c.b16 %v1588, %v1587
        %v1598 = vpack.c.b16 %v1590, %v1589
        %1607 = vmatprep.subr.bf16.mxu0 0
        %1608 = vmatpush1.bf16.msra.mxu0 %v1591
        %1609 = vmatprep.subr.bf16.mxu0 0
        %1610 = vmatpush1.bf16.msra.mxu0 %v1592
        %1611 = vmatprep.subr.bf16.mxu0 0
        %1612 = vmatpush1.bf16.msra.mxu0 %v1593
        %1613 = vmatprep.subr.bf16.mxu0 0
        %1614 = vmatpush1.bf16.msra.mxu0 %v1594
        %1615 = vmatprep.subr.bf16.mxu0 0
        %1616 = vmatpush1.bf16.msra.mxu0 %v1595
        %1617 = vmatprep.subr.bf16.mxu0 0
        %1618 = vmatpush1.bf16.msra.mxu0 %v1596
        %1619 = vmatprep.subr.bf16.mxu0 0
        %1620 = vmatpush1.bf16.msra.mxu0 %v1597
        %1621 = vmatprep.subr.bf16.mxu0 0
        %1622 = vmatpush1.bf16.msra.mxu0 %v1598
        %1623 = vmatprep.subr.bf16.mxu0 0
        %1624 = vmatpush1.bf16.msra.mxu0 0
        %1625 = vmatprep.subr.bf16.mxu0 0
        %1626 = vmatpush1.bf16.msra.mxu0 0
        %1627 = vmatprep.subr.bf16.mxu0 0
        %1628 = vmatpush1.bf16.msra.mxu0 0
        %1629 = vmatprep.subr.bf16.mxu0 0
        %1630 = vmatpush1.bf16.msra.mxu0 0
        %1631 = vmatprep.subr.bf16.mxu0 0
        %1632 = vmatpush1.bf16.msra.mxu0 0
        %1633 = vmatprep.subr.bf16.mxu0 0
        %1634 = vmatpush1.bf16.msra.mxu0 0
        %1635 = vmatprep.subr.bf16.mxu0 0
        %1636 = vmatpush1.bf16.msra.mxu0 0
        %1637 = vmatprep.subr.bf16.mxu0 0
        %1638 = vmatpush1.bf16.msra.mxu0 0
        %1639 = vmatprep.mubr.bf16.mxu0 0
        %1640 = vmatmul.mubr.bf16.gmra.mrb[0].mxu0 %v1538
        %v1641 = vpop.f32.mrb[0].mxu0
        %v1642 = vadd.f32 0.0, %v1641
        %v1643 = vpop.f32.mrb[0].mxu0
        %v1644 = vpop.f32.mrb[0].mxu0
        %v1645 = vadd.f32 0.0, %v1644
        %v1646 = vpop.f32.mrb[0].mxu0
        %1647 = vmatprep.mubr.bf16.mxu0 0
        %1648 = vmatmul.mubr.bf16.gmra.mrb[0].mxu0 %v1539
        %v1649 = vpop.f32.mrb[0].mxu0
        %v1650 = vadd.f32 0.0, %v1649
        %v1651 = vpop.f32.mrb[0].mxu0
        %v1652 = vpop.f32.mrb[0].mxu0
        %v1653 = vadd.f32 0.0, %v1652
        %v1654 = vpop.f32.mrb[0].mxu0
        %1655 = vmatprep.mubr.bf16.mxu0 0
        %1656 = vmatmul.mubr.bf16.gmra.mrb[0].mxu0 %v1540
        %v1657 = vpop.f32.mrb[0].mxu0
        %v1658 = vadd.f32 0.0, %v1657
        %v1659 = vpop.f32.mrb[0].mxu0
        %v1660 = vpop.f32.mrb[0].mxu0
        %v1661 = vadd.f32 0.0, %v1660
        %v1662 = vpop.f32.mrb[0].mxu0
        %1663 = vmatprep.mubr.bf16.mxu0 0
        %1664 = vmatmul.mubr.bf16.gmra.mrb[0].mxu0 %v1541
        %v1665 = vpop.f32.mrb[0].mxu0
        %v1666 = vadd.f32 0.0, %v1665
        %v1667 = vpop.f32.mrb[0].mxu0
        %v1668 = vpop.f32.mrb[0].mxu0
        %v1669 = vadd.f32 0.0, %v1668
        %v1670 = vpop.f32.mrb[0].mxu0
        %1671 = vdwg.mxu0
        %v1672 = vadd.f32 %v1522, %v1642
        %v1673 = vadd.f32 %v1523, %v1645
        %v1674 = vadd.f32 %v1524, %v1650
        %v1675 = vadd.f32 %v1525, %v1653
        %v1676 = vadd.f32 %v1526, %v1658
        %v1677 = vadd.f32 %v1527, %v1661
        %v1678 = vadd.f32 %v1528, %v1666
        %v1679 = vadd.f32 %v1529, %v1669
        %v1680 = vld [vmem:[%s1379 + $0x2] sm:$0xff]
        %v1681 = vld [vmem:[%s1379 + $0x12] sm:$0xff]
        %v1682 = vld [vmem:[%s1379 + $0x22] sm:$0xff]
        %v1683 = vld [vmem:[%s1379 + $0x32] sm:$0xff]
        %v1684 = vld [vmem:[%s1379 + $0x42] sm:$0xff]
        %v1685 = vld [vmem:[%s1379 + $0x52] sm:$0xff]
        %v1686 = vld [vmem:[%s1379 + $0x62] sm:$0xff]
        %v1687 = vld [vmem:[%s1379 + $0x72] sm:$0xff]
        %v1688 = vpack.c.bf16 %v1681, %v1680
        %v1689 = vpack.c.bf16 %v1683, %v1682
        %v1690 = vpack.c.bf16 %v1685, %v1684
        %v1691 = vpack.c.bf16 %v1687, %v1686
        %s1692 = scalar_lea.vmem %s369, 512
        %v1693 = vld [vmem:[%s1692] sm:$0xf]
        %v1694 = vld [vmem:[%s1692 + $0x4] sm:$0xf]
        %v1695 = vld [vmem:[%s1692 + $0x8] sm:$0xf]
        %v1696 = vld [vmem:[%s1692 + $0xc] sm:$0xf]
        %v1697 = vld [vmem:[%s1692 + $0x10] sm:$0xf]
        %v1698 = vld [vmem:[%s1692 + $0x14] sm:$0xf]
        %v1699 = vld [vmem:[%s1692 + $0x18] sm:$0xf]
        %v1700 = vld [vmem:[%s1692 + $0x1c] sm:$0xf]
        %v1701 = vld [vmem:[%s1692 + $0x20] sm:$0xf]
        %v1702 = vld [vmem:[%s1692 + $0x24] sm:$0xf]
        %v1703 = vld [vmem:[%s1692 + $0x28] sm:$0xf]
        %v1704 = vld [vmem:[%s1692 + $0x2c] sm:$0xf]
        %v1705 = vld [vmem:[%s1692 + $0x30] sm:$0xf]
        %v1706 = vld [vmem:[%s1692 + $0x34] sm:$0xf]
        %v1707 = vld [vmem:[%s1692 + $0x38] sm:$0xf]
        %v1708 = vld [vmem:[%s1692 + $0x3c] sm:$0xf]
        %v1725 = vunpack.c.l.b16 %v1693
        %v1726 = vunpack.c.l.b16 %v1694
        %v1727 = vunpack.c.l.b16 %v1695
        %v1728 = vunpack.c.l.b16 %v1696
        %v1729 = vunpack.c.l.b16 %v1697
        %v1730 = vunpack.c.l.b16 %v1698
        %v1731 = vunpack.c.l.b16 %v1699
        %v1732 = vunpack.c.l.b16 %v1700
        %v1733 = vunpack.c.l.b16 %v1701
        %v1734 = vunpack.c.l.b16 %v1702
        %v1735 = vunpack.c.l.b16 %v1703
        %v1736 = vunpack.c.l.b16 %v1704
        %v1737 = vunpack.c.l.b16 %v1705
        %v1738 = vunpack.c.l.b16 %v1706
        %v1739 = vunpack.c.l.b16 %v1707
        %v1740 = vunpack.c.l.b16 %v1708
        %v1741 = vpack.c.b16 %v1726, %v1725
        %v1742 = vpack.c.b16 %v1728, %v1727
        %v1743 = vpack.c.b16 %v1730, %v1729
        %v1744 = vpack.c.b16 %v1732, %v1731
        %v1745 = vpack.c.b16 %v1734, %v1733
        %v1746 = vpack.c.b16 %v1736, %v1735
        %v1747 = vpack.c.b16 %v1738, %v1737
        %v1748 = vpack.c.b16 %v1740, %v1739
        %1757 = vmatprep.subr.bf16.mxu0 0
        %1758 = vmatpush1.bf16.msra.mxu0 %v1741
        %1759 = vmatprep.subr.bf16.mxu0 0
        %1760 = vmatpush1.bf16.msra.mxu0 %v1742
        %1761 = vmatprep.subr.bf16.mxu0 0
        %1762 = vmatpush1.bf16.msra.mxu0 %v1743
        %1763 = vmatprep.subr.bf16.mxu0 0
        %1764 = vmatpush1.bf16.msra.mxu0 %v1744
        %1765 = vmatprep.subr.bf16.mxu0 0
        %1766 = vmatpush1.bf16.msra.mxu0 %v1745
        %1767 = vmatprep.subr.bf16.mxu0 0
        %1768 = vmatpush1.bf16.msra.mxu0 %v1746
        %1769 = vmatprep.subr.bf16.mxu0 0
        %1770 = vmatpush1.bf16.msra.mxu0 %v1747
        %1771 = vmatprep.subr.bf16.mxu0 0
        %1772 = vmatpush1.bf16.msra.mxu0 %v1748
        %1773 = vmatprep.subr.bf16.mxu0 0
        %1774 = vmatpush1.bf16.msra.mxu0 0
        %1775 = vmatprep.subr.bf16.mxu0 0
        %1776 = vmatpush1.bf16.msra.mxu0 0
        %1777 = vmatprep.subr.bf16.mxu0 0
        %1778 = vmatpush1.bf16.msra.mxu0 0
        %1779 = vmatprep.subr.bf16.mxu0 0
        %1780 = vmatpush1.bf16.msra.mxu0 0
        %1781 = vmatprep.subr.bf16.mxu0 0
        %1782 = vmatpush1.bf16.msra.mxu0 0
        %1783 = vmatprep.subr.bf16.mxu0 0
        %1784 = vmatpush1.bf16.msra.mxu0 0
        %1785 = vmatprep.subr.bf16.mxu0 0
        %1786 = vmatpush1.bf16.msra.mxu0 0
        %1787 = vmatprep.subr.bf16.mxu0 0
        %1788 = vmatpush1.bf16.msra.mxu0 0
        %1789 = vmatprep.mubr.bf16.mxu0 0
        %1790 = vmatmul.mubr.bf16.gmra.mrb[0].mxu0 %v1688
        %v1791 = vpop.f32.mrb[0].mxu0
        %v1792 = vadd.f32 0.0, %v1791
        %v1793 = vpop.f32.mrb[0].mxu0
        %v1794 = vpop.f32.mrb[0].mxu0
        %v1795 = vadd.f32 0.0, %v1794
        %v1796 = vpop.f32.mrb[0].mxu0
        %1797 = vmatprep.mubr.bf16.mxu0 0
        %1798 = vmatmul.mubr.bf16.gmra.mrb[0].mxu0 %v1689
        %v1799 = vpop.f32.mrb[0].mxu0
        %v1800 = vadd.f32 0.0, %v1799
        %v1801 = vpop.f32.mrb[0].mxu0
        %v1802 = vpop.f32.mrb[0].mxu0
        %v1803 = vadd.f32 0.0, %v1802
        %v1804 = vpop.f32.mrb[0].mxu0
        %1805 = vmatprep.mubr.bf16.mxu0 0
        %1806 = vmatmul.mubr.bf16.gmra.mrb[0].mxu0 %v1690
        %v1807 = vpop.f32.mrb[0].mxu0
        %v1808 = vadd.f32 0.0, %v1807
        %v1809 = vpop.f32.mrb[0].mxu0
        %v1810 = vpop.f32.mrb[0].mxu0
        %v1811 = vadd.f32 0.0, %v1810
        %v1812 = vpop.f32.mrb[0].mxu0
        %1813 = vmatprep.mubr.bf16.mxu0 0
        %1814 = vmatmul.mubr.bf16.gmra.mrb[0].mxu0 %v1691
        %v1815 = vpop.f32.mrb[0].mxu0
        %v1816 = vadd.f32 0.0, %v1815
        %v1817 = vpop.f32.mrb[0].mxu0
        %v1818 = vpop.f32.mrb[0].mxu0
        %v1819 = vadd.f32 0.0, %v1818
        %v1820 = vpop.f32.mrb[0].mxu0
        %1821 = vdwg.mxu0
        %v1822 = vadd.f32 %v1672, %v1792
        %v1823 = vadd.f32 %v1673, %v1795
        %v1824 = vadd.f32 %v1674, %v1800
        %v1825 = vadd.f32 %v1675, %v1803
        %v1826 = vadd.f32 %v1676, %v1808
        %v1827 = vadd.f32 %v1677, %v1811
        %v1828 = vadd.f32 %v1678, %v1816
        %v1829 = vadd.f32 %v1679, %v1819
        %1830 = vst [vmem:[#allocation3] sm:$0xff] %v1822
        %1831 = vst [vmem:[#allocation3 + $0x8] sm:$0xff] %v1823
        %1832 = vst [vmem:[#allocation3 + $0x10] sm:$0xff] %v1824
        %1833 = vst [vmem:[#allocation3 + $0x18] sm:$0xff] %v1825
        %1834 = vst [vmem:[#allocation3 + $0x20] sm:$0xff] %v1826
        %1835 = vst [vmem:[#allocation3 + $0x28] sm:$0xff] %v1827
        %1836 = vst [vmem:[#allocation3 + $0x30] sm:$0xff] %v1828
        %1837 = vst [vmem:[#allocation3 + $0x38] sm:$0xff] %v1829
        %p1838 = scmp.eq.s32.totalorder %s30, 1
        // Predicated region
        $region45: #{dense_block_forward.5} parent=39 // pred_check
          %p1839 = pneg %p1838
        $region46: #{dense_block_forward.5} parent=39 // pred_check_branch
          %1841 = sbr.rel (%p1839) target = $region48
        $region47: #{dense_block_forward.5} parent=39 // pred_region
          %1842 = vst [vmem:[%s375] sm:$0xff] %v1822
          %1843 = vst [vmem:[%s375 + $0x8] sm:$0xff] %v1823
          %1844 = vst [vmem:[%s375 + $0x10] sm:$0xff] %v1824
          %1845 = vst [vmem:[%s375 + $0x18] sm:$0xff] %v1825
          %1846 = vst [vmem:[%s375 + $0x20] sm:$0xff] %v1826
          %1847 = vst [vmem:[%s375 + $0x28] sm:$0xff] %v1827
          %1848 = vst [vmem:[%s375 + $0x30] sm:$0xff] %v1828
          %1849 = vst [vmem:[%s375 + $0x38] sm:$0xff] %v1829
          %v1850 = vadd.f32 %v1822, %v1823
          %v1851 = vadd.f32 %v1850, %v1824
          %v1852 = vadd.f32 %v1851, %v1825
          %v1853 = vadd.f32 %v1852, %v1826
          %v1854 = vadd.f32 %v1853, %v1827
          %v1855 = vadd.f32 %v1854, %v1828
          %v1856 = vadd.f32 %v1855, %v1829
          %v1857 = vrot.slane %v1856, 4
          %v1858 = vadd.f32 %v1856, %v1857
          %v1859 = vrot.slane %v1858, 2
          %v1860 = vadd.f32 %v1858, %v1859
          %v1861 = vrot.slane %v1860, 1
          %v1862 = vadd.f32 %v1860, %v1861
          %1863 = vst [vmem:[%s343] sm:$0x1] %v1862
          %v1864 = vmul.f32 %v1822, %v1822
          %v1865 = vmul.f32 %v1823, %v1823
          %v1866 = vmul.f32 %v1824, %v1824
          %v1867 = vmul.f32 %v1825, %v1825
          %v1868 = vmul.f32 %v1826, %v1826
          %v1869 = vmul.f32 %v1827, %v1827
          %v1870 = vmul.f32 %v1828, %v1828
          %v1871 = vmul.f32 %v1829, %v1829
          %v1872 = vadd.f32 %v1864, %v1865
          %v1873 = vadd.f32 %v1872, %v1866
          %v1874 = vadd.f32 %v1873, %v1867
          %v1875 = vadd.f32 %v1874, %v1868
          %v1876 = vadd.f32 %v1875, %v1869
          %v1877 = vadd.f32 %v1876, %v1870
          %v1878 = vadd.f32 %v1877, %v1871
          %v1879 = vrot.slane %v1878, 4
          %v1880 = vadd.f32 %v1878, %v1879
          %v1881 = vrot.slane %v1880, 2
          %v1882 = vadd.f32 %v1880, %v1881
          %v1883 = vrot.slane %v1882, 1
          %v1884 = vadd.f32 %v1882, %v1883
          %1885 = vst [vmem:[%s349] sm:$0x1] %v1884
        $region48: #{dense_block_forward.5} parent=39 // pred_fallthru
          _
        %s1886 = sadd.s32 %s29, 8
        %p1887 = scmp.lt.s32.totalorder %s1886, 11
        %s1888 = scalar_select %p1887, %s1886, 11
        %s1889 = smul.addr %s1888, 8
        %s1890 = smul.addr %s1889, 8
        %s1891 = scalar_lea.vmem %s5, %s1890
        %s1892 = sand.u32 %s202, 1
        %s1893 = scalar_lea.sflag [#allocation5], %s1892
        %s1894 = sand.u32 %s202, 1
        %s1895 = scalar_lea.vmem [#allocation4], %s1894
        %s1896 = sand.u32 %s228, 1
        %s1897 = scalar_lea.sflag [#allocation7], %s1896
        %s1898 = sand.u32 %s228, 1
        %s1899 = scalar_lea.vmem [#allocation6], %s1898
        // Predicated region
        $region49: #{dense_block_forward.5} parent=39 // pred_check
          %p1900 = pneg %p186
        $region50: #{dense_block_forward.5} parent=39 // pred_check_branch
          %1902 = sbr.rel (%p1900) target = $region52
        $region51: #{dense_block_forward.5} parent=39 // pred_region
          %s1903 = sadd.s32 %s29, 8
        $region52: #{dense_block_forward.5} parent=39 // pred_fallthru
          _
        // Predicated region
        $region53: #{dense_block_forward.5} parent=39 // pred_check
          %p1904 = pneg %p212
        $region54: #{dense_block_forward.5} parent=39 // pred_check_branch
          %1906 = sbr.rel (%p1904) target = $region56
        $region55: #{dense_block_forward.5} parent=39 // pred_region
          %s1908 = ssub.s32 16, 16
          %1909 = vsyncadd %s1893, %s1908
          %s1910 = smul.addr %s29, 16
          %s1911 = scalar_lea.hbm %s6, %s1910
          %s1913 = sshll.u32 %s1895, 4
          %s1914 = int_to_ptr.vmem [resolvable:$true] %s1913
          %1916 = dma.vmem_to_hbm [thread:$0]  %s1914, 16, %s1911, %s1893
        $region56: #{dense_block_forward.5} parent=39 // pred_fallthru
          _
        // Predicated region
        $region57: #{dense_block_forward.5} parent=39 // pred_check
          %p1917 = pneg %p238
        $region58: #{dense_block_forward.5} parent=39 // pred_check_branch
          %1919 = sbr.rel (%p1917) target = $region60
        $region59: #{dense_block_forward.5} parent=39 // pred_region
          %s1921 = ssub.s32 16, 16
          %1922 = vsyncadd %s1897, %s1921
          %s1923 = smul.addr %s29, 16
          %s1924 = scalar_lea.hbm %s7, %s1923
          %s1926 = sshll.u32 %s1899, 4
          %s1927 = int_to_ptr.vmem [resolvable:$true] %s1926
          %1929 = dma.vmem_to_hbm [thread:$0]  %s1927, 16, %s1924, %s1897
        $region60: #{dense_block_forward.5} parent=39 // pred_fallthru
          _
      $region40: #{dense_block_forward.5} parent=5 // pred_fallthru
        _
      %p1930 = scmp.le.s32.totalorder 2, %s20
      // Predicated region
      $region61: #{dense_block_forward.5} parent=5 // pred_check
        %p1931 = pneg %p1930
      $region62: #{dense_block_forward.5} parent=5 // pred_check_branch
        %1933 = sbr.rel (%p1931) target = $region64
      $region63: #{dense_block_forward.5} parent=5 // pred_region
        %s1934 = ssub.s32 %s20, 2
        // Predicated region
        $region65: #{dense_block_forward.5} parent=63 // pred_check
          %p1935 = pneg %p192
        $region66: #{dense_block_forward.5} parent=63 // pred_check_branch
          %1937 = sbr.rel (%p1935) target = $region68
        $region67: #{dense_block_forward.5} parent=63 // pred_region
          %s1938 = sadd.s32 %s31, 8
          %p1939 = scmp.lt.s32.totalorder %s1938, 11
          %s1940 = scalar_select %p1939, %s1938, 11
          %s1941 = smul.addr %s1940, 8
          %s1942 = smul.addr %s1941, 8
          %s1943 = scalar_lea.vmem %s5, %s1942
        $region68: #{dense_block_forward.5} parent=63 // pred_fallthru
          _
        // Predicated region
        $region69: #{dense_block_forward.5} parent=63 // pred_check
          %p1944 = pneg %p218
        $region70: #{dense_block_forward.5} parent=63 // pred_check_branch
          %1946 = sbr.rel (%p1944) target = $region72
        $region71: #{dense_block_forward.5} parent=63 // pred_region
          %s1947 = sand.u32 %s203, 1
          %s1948 = scalar_lea.sflag [#allocation5], %s1947
          %s1949 = sand.u32 %s203, 1
          %s1950 = scalar_lea.vmem [#allocation4], %s1949
          %1951 = dma.done %s1948, 16
        $region72: #{dense_block_forward.5} parent=63 // pred_fallthru
          _
        // Predicated region
        $region73: #{dense_block_forward.5} parent=63 // pred_check
          %p1952 = pneg %p244
        $region74: #{dense_block_forward.5} parent=63 // pred_check_branch
          %1954 = sbr.rel (%p1952) target = $region76
        $region75: #{dense_block_forward.5} parent=63 // pred_region
          %s1955 = sand.u32 %s229, 1
          %s1956 = scalar_lea.sflag [#allocation7], %s1955
          %s1957 = sand.u32 %s229, 1
          %s1958 = scalar_lea.vmem [#allocation6], %s1957
          %1959 = dma.done %s1956, 16
        $region76: #{dense_block_forward.5} parent=63 // pred_fallthru
          _
      $region64: #{dense_block_forward.5} parent=5 // pred_fallthru
        _
    $region6: #{dense_block_forward.5} parent=1 // loop_footer
      %s24 = sadd.s32 1, %s20
    $region7: #{dense_block_forward.5} parent=1 // loop_footer_branch
      %19 = sbr.rel target = $region3
    $region8: #{dense_block_forward.5} parent=1 // loop_exit
      _
    %1960 = vsyncpa [#allocation5], 1
    %s1961 = scalar_lea.sflag [#allocation5], 1
    %1962 = vsyncpa %s1961, 1
    %1963 = vsyncpa [#allocation7], 1
    %s1964 = scalar_lea.sflag [#allocation7], 1
    %1965 = vsyncpa %s1964, 1

</llo_original>
